<compile_context>
chip_gen: v5e
topology: v5e:2x2
jax: 0.10.0
libtpu: 0.0.40
codegen_flags: <defaults>
</compile_context>

<pallas_src>
import functools

import jax
import jax.numpy as jnp
import numpy as np
from jax import lax
from jax.experimental import pallas as pl
from jax.experimental.pallas import tpu as pltpu


# ----------------------------------------------------------------------------
# GMR kernel construction (parameter setup — plain JAX glue)
# ----------------------------------------------------------------------------
def build_gmr_kernel(ring_w, sigmas, k):
    """Expand per-ring weights into a full kxk conv kernel.

    ring_w: (Cout, Cin, R); sigmas: (R,).  Returns (Cout, Cin, k*k), tap t = dy*k + dx.
    """
    yy, xx = jnp.meshgrid(jnp.arange(k), jnp.arange(k), indexing="ij")
    c = (k - 1) / 2.0
    d = jnp.sqrt((yy - c) ** 2 + (xx - c) ** 2).reshape(-1)           # (k*k,)
    num_rings = ring_w.shape[-1]
    mu = jnp.linspace(0.0, float(k // 2), num_rings)                   # ring radii
    g = jnp.exp(-((d[:, None] - mu[None, :]) ** 2) / (2.0 * sigmas[None, :] ** 2))
    g = g / (jnp.sum(g, axis=1, keepdims=True) + 1e-8)                 # (k*k, R)
    return jnp.einsum("oir,pr->oip", ring_w, g)                        # (Cout, Cin, k*k)


def _fold_bn(bn, eps):
    scale = bn["gamma"] / jnp.sqrt(bn["var"] + eps)
    bias = bn["beta"] - bn["mean"] * scale
    return scale.astype(jnp.float32), bias.reshape(1, -1).astype(jnp.float32)


# ----------------------------------------------------------------------------
# Fused Pallas kernel (one batch-block per grid step, banded over H)
# ----------------------------------------------------------------------------
def _gmr_block_kernel(x_ref, w1_ref, w2_ref, b1_ref, b2_ref, o_ref,
                      xp_ref, y1p_ref, *, k, band_h, compute_dtype):
    # x_ref  : (Nb, H, W, Cin)          input block (NHWC, channels on lanes)
    # w1_ref : (k*k, Cin, Cout)         BN1-scale-folded conv1 weights (compute_dtype)
    # w2_ref : (k*k, Cout, Cout)        BN2-scale-folded conv2 weights (compute_dtype)
    # b1/b2  : (1, Cout) f32            folded BN biases
    # o_ref  : (Nb, H, W, Cout)         output block
    # xp_ref : (Nb, H+2p, W+2p, Cin)    persistent VMEM halo scratch for x
    # y1p_ref: (Nb, H+2p, W+2p, Cout)   persistent VMEM halo scratch for relu(bn1(conv1))
    Nb, H, W, Cin = x_ref.shape
    Cout = o_ref.shape[-1]
    p = k // 2
    n_bands = H // band_h
    Mb = Nb * band_h * W
    taps = [(dy, dx) for dy in range(k) for dx in range(k)]
    unroll_bands = n_bands <= 2

    # -- zero only the p-wide halos (cheap, every grid step, megacore-safe) and
    #    write the input interior once as the bf16/f32 MXU operand. -------------
    if p > 0:
        for ref, c in ((xp_ref, Cin), (y1p_ref, Cout)):
            ref[:, 0:p, :, :] = jnp.zeros((Nb, p, W + 2 * p, c), compute_dtype)
            ref[:, H + p:H + 2 * p, :, :] = jnp.zeros((Nb, p, W + 2 * p, c), compute_dtype)
            ref[:, :, 0:p, :] = jnp.zeros((Nb, H + 2 * p, p, c), compute_dtype)
            ref[:, :, W + p:W + 2 * p, :] = jnp.zeros((Nb, H + 2 * p, p, c), compute_dtype)
    xp_ref[:, p:H + p, p:W + p, :] = x_ref[...].astype(compute_dtype)

    def conv_band(src_ref, w_ref, h0, cin):
        # k*k accumulate-style matmuls on tap slices; f32 accumulation on the MXU.
        acc = jnp.zeros((Mb, Cout), jnp.float32)
        for t, (dy, dx) in enumerate(taps):
            tap = src_ref[:, pl.ds(h0 + dy, band_h), dx:dx + W, :]   # (Nb,band,W,cin)
            acc = acc + jnp.dot(tap.reshape(Mb, cin), w_ref[t],
                                preferred_element_type=jnp.float32)
        return acc

    # -- pass 1: conv1 (+ folded BN1 bias) + ReLU, band by band, into y1p -------
    def band1(i, carry):
        h0 = pl.multiple_of(i * band_h, band_h)
        acc = conv_band(xp_ref, w1_ref, h0, Cin)
        y1 = jnp.maximum(acc + b1_ref[...], 0.0)            # f32 elementwise (v5e-safe)
        y1p_ref[:, pl.ds(p + h0, band_h), p:W + p, :] = (
            y1.reshape(Nb, band_h, W, Cout).astype(compute_dtype))
        return carry

    lax.fori_loop(0, n_bands, band1, 0, unroll=unroll_bands)

    # -- pass 2: conv2 (+ folded BN2 bias) + residual + ReLU, band by band ------
    def band2(i, carry):
        h0 = pl.multiple_of(i * band_h, band_h)
        acc = conv_band(y1p_ref, w2_ref, h0, Cout)
        identity = x_ref[:, pl.ds(h0, band_h), :, :].astype(jnp.float32)
        out = jnp.maximum(acc + b2_ref[...] + identity.reshape(Mb, Cout), 0.0)
        o_ref[:, pl.ds(h0, band_h), :, :] = (
            out.reshape(Nb, band_h, W, Cout).astype(o_ref.dtype))
        return carry

    lax.fori_loop(0, n_bands, band2, 0, unroll=unroll_bands)


# ----------------------------------------------------------------------------
# Tiling heuristics
# ----------------------------------------------------------------------------
def _pick_batch_block(n, hw, target_rows=512):
    """Smallest divisor of n with >= target_rows rows/step, but ALWAYS keeping
    >= 2 grid steps (when n >= 2): both v7x TensorCores get work and the
    input/output DMA pipeline has something to overlap on every generation."""
    min_steps = 2 if n >= 2 else 1
    divisors = [d for d in range(1, n + 1) if n % d == 0 and n // d >= min_steps]
    for nb in divisors:
        if nb * hw >= target_rows:
            return nb
    return divisors[-1]


def _pick_band_h(H, W, nb, cout, acc_budget_bytes=4 << 20):
    """Largest divisor of H whose per-band f32 accumulator fits the budget."""
    band = 1
    for d in range(1, H + 1):
        if H % d == 0 and nb * d * W * cout * 4 <= acc_budget_bytes:
            band = d
    return band


def _vmem_limit_bytes():
    # ~3/4 of physical VMEM, capped at 96 MiB: ~96 MiB on v5e/v6e (128 MiB
    # physical), ~48 MiB on v7x (64 MiB physical).
    try:
        cap = pltpu.get_tpu_info().vmem_capacity_bytes
    except Exception:
        cap = 64 * 1024 * 1024
    return int(min(cap * 3 // 4, 96 * 1024 * 1024))


# ----------------------------------------------------------------------------
# Wrappers
# ----------------------------------------------------------------------------
def gmr_basic_block_nhwc(x_nhwc, w1, w2, bn1, bn2, *, k=3, eps=1e-5,
                         compute_dtype=jnp.bfloat16, batch_block=None, band_h=None):
    """Forward pass of GMRBasicBlock (stride=1, no downsample, eval-mode BN).

    NHWC-native: x_nhwc (N, H, W, C) -> (N, H, W, C).  No transposes or HBM
    padding around the kernel — keep the whole network in NHWC.
    w1, w2: (Cout, Cin, k*k) effective GMR kernels; bn*: dicts gamma/beta/mean/var.
    """
    N, H, W, Cin = x_nhwc.shape
    Cout = w1.shape[0]
    assert Cin == Cout, "basic block without downsample requires inplanes == planes"
    p = k // 2

    if batch_block is None:
        batch_block = _pick_batch_block(N, H * W)
    assert N % batch_block == 0
    grid_n = N // batch_block
    if band_h is None:
        band_h = _pick_band_h(H, W, batch_block, Cout)
    assert H % band_h == 0

    # Fold the BN scale into the conv weight output columns in f32 before the
    # MXU cast; the kernel only adds the bias.  Weights laid out (k*k, Cin, Cout).
    s1, b1 = _fold_bn(bn1, eps)
    s2, b2 = _fold_bn(bn2, eps)
    w1_t = (jnp.transpose(w1, (2, 1, 0)).astype(jnp.float32)
            * s1[None, None, :]).astype(compute_dtype)
    w2_t = (jnp.transpose(w2, (2, 1, 0)).astype(jnp.float32)
            * s2[None, None, :]).astype(compute_dtype)

    kernel = functools.partial(_gmr_block_kernel, k=k, band_h=band_h,
                               compute_dtype=compute_dtype)

    return pl.pallas_call(
        kernel,
        out_shape=jax.ShapeDtypeStruct((N, H, W, Cout), x_nhwc.dtype),
        grid_spec=pltpu.PrefetchScalarGridSpec(
            num_scalar_prefetch=0,
            grid=(grid_n,),
            in_specs=[
                pl.BlockSpec((batch_block, H, W, Cin), lambda n: (n, 0, 0, 0)),
                pl.BlockSpec((k * k, Cin, Cout), lambda n: (0, 0, 0)),
                pl.BlockSpec((k * k, Cout, Cout), lambda n: (0, 0, 0)),
                pl.BlockSpec((1, Cout), lambda n: (0, 0)),
                pl.BlockSpec((1, Cout), lambda n: (0, 0)),
            ],
            out_specs=pl.BlockSpec((batch_block, H, W, Cout),
                                   lambda n: (n, 0, 0, 0)),
            scratch_shapes=[
                pltpu.VMEM((batch_block, H + 2 * p, W + 2 * p, Cin), compute_dtype),
                pltpu.VMEM((batch_block, H + 2 * p, W + 2 * p, Cout), compute_dtype),
            ],
        ),
        compiler_params=pltpu.CompilerParams(
            dimension_semantics=("parallel",),       # batch blocks are independent
            vmem_limit_bytes=_vmem_limit_bytes(),
        ),
    )(x_nhwc, w1_t, w2_t, b1, b2)


def gmr_basic_block_nchw(x_nchw, *args, **kwargs):
    """PyTorch-layout adapter (NCHW in/out).  A full network should stay NHWC
    and call gmr_basic_block_nhwc directly to avoid these two transposes."""
    out = gmr_basic_block_nhwc(jnp.transpose(x_nchw, (0, 2, 3, 1)), *args, **kwargs)
    return jnp.transpose(out, (0, 3, 1, 2))


# ----------------------------------------------------------------------------
# Pure-JAX reference (for correctness check; NCHW like the PyTorch module)
# ----------------------------------------------------------------------------
def ref_basic_block(x_nchw, w1, w2, bn1, bn2, *, k=3, eps=1e-5):
    def conv(x, w):
        Cout, Cin, _ = w.shape
        w_hwio = jnp.transpose(w.reshape(Cout, Cin, k, k), (2, 3, 1, 0))
        return lax.conv_general_dilated(
            x, w_hwio, window_strides=(1, 1), padding="SAME",
            dimension_numbers=("NHWC", "HWIO", "NHWC"))

    def bn(x, params):
        scale = params["gamma"] / jnp.sqrt(params["var"] + eps)
        bias = params["beta"] - params["mean"] * scale
        return x * scale[None, None, None, :] + bias[None, None, None, :]

    x = jnp.transpose(x_nchw, (0, 2, 3, 1)).astype(jnp.float32)
    out = jax.nn.relu(bn(conv(x, w1), bn1))
    out = bn(conv(out, w2), bn2)
    out = jax.nn.relu(out + x)
    return jnp.transpose(out, (0, 3, 1, 2))


# ----------------------------------------------------------------------------
if __name__ == "__main__":
    k = 3
    num_rings = (k + 1) // 2        # default num_rings for k=3 -> 2

    def make_params(keys, C):
        ring_w1 = jax.random.normal(keys[1], (C, C, num_rings), jnp.float32) * 0.3
        ring_w2 = jax.random.normal(keys[2], (C, C, num_rings), jnp.float32) * 0.3
        sig = jnp.full((num_rings,), 0.5, jnp.float32)
        w1 = build_gmr_kernel(ring_w1, sig, k)      # (Cout, Cin, k*k)
        w2 = build_gmr_kernel(ring_w2, sig, k)
        bn1 = dict(
            gamma=1.0 + 0.1 * jax.random.normal(keys[3], (C,), jnp.float32),
            beta=0.1 * jax.random.normal(keys[4], (C,), jnp.float32),
            mean=0.05 * jnp.arange(C, dtype=jnp.float32),
            var=1.0 + 0.1 * jnp.arange(C, dtype=jnp.float32),
        )
        bn2 = dict(
            gamma=1.0 + 0.1 * jax.random.normal(keys[5], (C,), jnp.float32),
            beta=0.1 * jax.random.normal(keys[6], (C,), jnp.float32),
            mean=-0.05 * jnp.arange(C, dtype=jnp.float32),
            var=1.0 + 0.05 * jnp.arange(C, dtype=jnp.float32),
        )
        return w1, w2, bn1, bn2

    # --- module-spec shapes: (N, C, H, W) = (2, 4, 16, 16), stride=1 ------------
    N, C, H, W = 2, 4, 16, 16
    keys = jax.random.split(jax.random.PRNGKey(0), 8)
    x = jax.random.normal(keys[0], (N, C, H, W), jnp.float32)
    w1, w2, bn1, bn2 = make_params(keys, C)

    ref = jax.block_until_ready(ref_basic_block(x, w1, w2, bn1, bn2, k=k))

    # f32 compute path (single band): tight tolerance.
    out_f32 = jax.block_until_ready(
        gmr_basic_block_nchw(x, w1, w2, bn1, bn2, k=k, compute_dtype=jnp.float32))
    np.testing.assert_allclose(np.asarray(out_f32), np.asarray(ref),
                               rtol=1e-4, atol=1e-4)

    # bf16 MXU-operand path (f32 accumulation), 2 unrolled bands: loose tolerance
    # reflecting the deliberate bf16 rounding of activations/weights.
    out_bf16 = jax.block_until_ready(
        gmr_basic_block_nchw(x, w1, w2, bn1, bn2, k=k,
                             compute_dtype=jnp.bfloat16, band_h=8))
    np.testing.assert_allclose(np.asarray(out_bf16), np.asarray(ref),
                               rtol=5e-2, atol=1.5e-1)

    # --- C=64 smoke test (ResNet-stage channel count): exercises the NHWC-native
    #     entry point, the rolled multi-band fori_loop (band_h=4 -> 4 bands) and
    #     the K=64 MXU path.  f32 compute for a tight check. ---------------------
    N2, C2, H2, W2 = 2, 64, 16, 16
    keys2 = jax.random.split(jax.random.PRNGKey(1), 8)
    x2 = jax.random.normal(keys2[0], (N2, H2, W2, C2), jnp.float32)   # NHWC
    w1b, w2b, bn1b, bn2b = make_params(keys2, C2)
    ref2 = jax.block_until_ready(
        ref_basic_block(jnp.transpose(x2, (0, 3, 1, 2)), w1b, w2b, bn1b, bn2b, k=k))
    out2 = jax.block_until_ready(
        gmr_basic_block_nhwc(x2, w1b, w2b, bn1b, bn2b, k=k,
                             compute_dtype=jnp.float32, band_h=4))
    np.testing.assert_allclose(np.asarray(jnp.transpose(out2, (0, 3, 1, 2))),
                               np.asarray(ref2), rtol=2e-3, atol=2e-3)

    print("KERNEL_OK")
</pallas_src>

<mosaic_0001>
module attributes {stable_mosaic.version = 11 : i64} {
  func.func @_gmr_block_kernel(%arg0: i32, %arg1: memref<1x16x16x4xf32, #tpu.memory_space<vmem>>, %arg2: memref<9x4x4xf32, #tpu.memory_space<vmem>>, %arg3: memref<9x4x4xf32, #tpu.memory_space<vmem>>, %arg4: memref<1x4xf32, #tpu.memory_space<vmem>>, %arg5: memref<1x4xf32, #tpu.memory_space<vmem>>, %arg6: memref<1x16x16x4xf32, #tpu.memory_space<vmem>>, %arg7: memref<1x18x18x4xf32, #tpu.memory_space<vmem>>, %arg8: memref<1x18x18x4xf32, #tpu.memory_space<vmem>>) attributes {dimension_semantics = [#tpu.dimension_semantics<parallel>], iteration_bounds = array<i64: 2>, scalar_prefetch = 0 : i64, scratch_operands = 2 : i64, tpu.core_type = #tpu.core_type<tc>, window_params = [{transform_indices = @transform_0, window_bounds = array<i64: 1, 16, 16, 4>}, {pipeline_mode = #tpu.pipeline_mode<synchronous>, transform_indices = @transform_1, window_bounds = array<i64: 9, 4, 4>}, {pipeline_mode = #tpu.pipeline_mode<synchronous>, transform_indices = @transform_2, window_bounds = array<i64: 9, 4, 4>}, {pipeline_mode = #tpu.pipeline_mode<synchronous>, transform_indices = @transform_3, window_bounds = array<i64: 1, 4>}, {pipeline_mode = #tpu.pipeline_mode<synchronous>, transform_indices = @transform_4, window_bounds = array<i64: 1, 4>}, {transform_indices = @transform_5, window_bounds = array<i64: 1, 16, 16, 4>}]} {
    %cst = arith.constant 0.000000e+00 : f32
    %0 = vector.broadcast %cst : f32 to vector<1x1x18x4xf32>
    %c0 = arith.constant 0 : index
    %c0_0 = arith.constant 0 : index
    %c0_1 = arith.constant 0 : index
    %c0_2 = arith.constant 0 : index
    %1 = vector.load %arg7[%c0, %c0_0, %c0_1, %c0_2] : memref<1x18x18x4xf32, #tpu.memory_space<vmem>>, vector<1x1x18x4xf32>
    tpu.vector_store %arg7[%c0, %c0_0, %c0_1, %c0_2], %0 {strides = array<i32>} : memref<1x18x18x4xf32, #tpu.memory_space<vmem>>, vector<1x1x18x4xf32>,
    %cst_3 = arith.constant 0.000000e+00 : f32
    %2 = vector.broadcast %cst_3 : f32 to vector<1x1x18x4xf32>
    %c0_4 = arith.constant 0 : index
    %c17 = arith.constant 17 : index
    %c0_5 = arith.constant 0 : index
    %c0_6 = arith.constant 0 : index
    %3 = vector.load %arg7[%c0_4, %c17, %c0_5, %c0_6] : memref<1x18x18x4xf32, #tpu.memory_space<vmem>>, vector<1x1x18x4xf32>
    tpu.vector_store %arg7[%c0_4, %c17, %c0_5, %c0_6], %2 {strides = array<i32>} : memref<1x18x18x4xf32, #tpu.memory_space<vmem>>, vector<1x1x18x4xf32>,
    %cst_7 = arith.constant 0.000000e+00 : f32
    %4 = vector.broadcast %cst_7 : f32 to vector<1x18x1x4xf32>
    %c0_8 = arith.constant 0 : index
    %c0_9 = arith.constant 0 : index
    %c0_10 = arith.constant 0 : index
    %c0_11 = arith.constant 0 : index
    %5 = vector.load %arg7[%c0_8, %c0_9, %c0_10, %c0_11] : memref<1x18x18x4xf32, #tpu.memory_space<vmem>>, vector<1x18x1x4xf32>
    tpu.vector_store %arg7[%c0_8, %c0_9, %c0_10, %c0_11], %4 {strides = array<i32>} : memref<1x18x18x4xf32, #tpu.memory_space<vmem>>, vector<1x18x1x4xf32>,
    %cst_12 = arith.constant 0.000000e+00 : f32
    %6 = vector.broadcast %cst_12 : f32 to vector<1x18x1x4xf32>
    %c0_13 = arith.constant 0 : index
    %c0_14 = arith.constant 0 : index
    %c17_15 = arith.constant 17 : index
    %c0_16 = arith.constant 0 : index
    %7 = vector.load %arg7[%c0_13, %c0_14, %c17_15, %c0_16] : memref<1x18x18x4xf32, #tpu.memory_space<vmem>>, vector<1x18x1x4xf32>
    tpu.vector_store %arg7[%c0_13, %c0_14, %c17_15, %c0_16], %6 {strides = array<i32>} : memref<1x18x18x4xf32, #tpu.memory_space<vmem>>, vector<1x18x1x4xf32>,
    %cst_17 = arith.constant 0.000000e+00 : f32
    %8 = vector.broadcast %cst_17 : f32 to vector<1x1x18x4xf32>
    %c0_18 = arith.constant 0 : index
    %c0_19 = arith.constant 0 : index
    %c0_20 = arith.constant 0 : index
    %c0_21 = arith.constant 0 : index
    %9 = vector.load %arg8[%c0_18, %c0_19, %c0_20, %c0_21] : memref<1x18x18x4xf32, #tpu.memory_space<vmem>>, vector<1x1x18x4xf32>
    tpu.vector_store %arg8[%c0_18, %c0_19, %c0_20, %c0_21], %8 {strides = array<i32>} : memref<1x18x18x4xf32, #tpu.memory_space<vmem>>, vector<1x1x18x4xf32>,
    %cst_22 = arith.constant 0.000000e+00 : f32
    %10 = vector.broadcast %cst_22 : f32 to vector<1x1x18x4xf32>
    %c0_23 = arith.constant 0 : index
    %c17_24 = arith.constant 17 : index
    %c0_25 = arith.constant 0 : index
    %c0_26 = arith.constant 0 : index
    %11 = vector.load %arg8[%c0_23, %c17_24, %c0_25, %c0_26] : memref<1x18x18x4xf32, #tpu.memory_space<vmem>>, vector<1x1x18x4xf32>
    tpu.vector_store %arg8[%c0_23, %c17_24, %c0_25, %c0_26], %10 {strides = array<i32>} : memref<1x18x18x4xf32, #tpu.memory_space<vmem>>, vector<1x1x18x4xf32>,
    %cst_27 = arith.constant 0.000000e+00 : f32
    %12 = vector.broadcast %cst_27 : f32 to vector<1x18x1x4xf32>
    %c0_28 = arith.constant 0 : index
    %c0_29 = arith.constant 0 : index
    %c0_30 = arith.constant 0 : index
    %c0_31 = arith.constant 0 : index
    %13 = vector.load %arg8[%c0_28, %c0_29, %c0_30, %c0_31] : memref<1x18x18x4xf32, #tpu.memory_space<vmem>>, vector<1x18x1x4xf32>
    tpu.vector_store %arg8[%c0_28, %c0_29, %c0_30, %c0_31], %12 {strides = array<i32>} : memref<1x18x18x4xf32, #tpu.memory_space<vmem>>, vector<1x18x1x4xf32>,
    %cst_32 = arith.constant 0.000000e+00 : f32
    %14 = vector.broadcast %cst_32 : f32 to vector<1x18x1x4xf32>
    %c0_33 = arith.constant 0 : index
    %c0_34 = arith.constant 0 : index
    %c17_35 = arith.constant 17 : index
    %c0_36 = arith.constant 0 : index
    %15 = vector.load %arg8[%c0_33, %c0_34, %c17_35, %c0_36] : memref<1x18x18x4xf32, #tpu.memory_space<vmem>>, vector<1x18x1x4xf32>
    tpu.vector_store %arg8[%c0_33, %c0_34, %c17_35, %c0_36], %14 {strides = array<i32>} : memref<1x18x18x4xf32, #tpu.memory_space<vmem>>, vector<1x18x1x4xf32>,
    %c0_37 = arith.constant 0 : index
    %c0_38 = arith.constant 0 : index
    %c0_39 = arith.constant 0 : index
    %c0_40 = arith.constant 0 : index
    %16 = vector.load %arg1[%c0_37, %c0_38, %c0_39, %c0_40] : memref<1x16x16x4xf32, #tpu.memory_space<vmem>>, vector<1x16x16x4xf32>
    %c0_41 = arith.constant 0 : index
    %c1 = arith.constant 1 : index
    %c1_42 = arith.constant 1 : index
    %c0_43 = arith.constant 0 : index
    %17 = vector.load %arg7[%c0_41, %c1, %c1_42, %c0_43] : memref<1x18x18x4xf32, #tpu.memory_space<vmem>>, vector<1x16x16x4xf32>
    tpu.vector_store %arg7[%c0_41, %c1, %c1_42, %c0_43], %16 {strides = array<i32>} : memref<1x18x18x4xf32, #tpu.memory_space<vmem>>, vector<1x16x16x4xf32>,
    %c0_i32 = arith.constant 0 : i32
    %c16_i32 = arith.constant 16 : i32
    %18 = arith.muli %c0_i32, %c16_i32 : i32
    %19 = tpu.assume_multiple %18, 16 : i32
    %cst_44 = arith.constant 0.000000e+00 : f32
    %20 = vector.broadcast %cst_44 : f32 to vector<256x4xf32>
    %c0_i32_45 = arith.constant 0 : i32
    %21 = arith.addi %19, %c0_i32_45 : i32
    %c0_46 = arith.constant 0 : index
    %22 = arith.index_cast %21 : i32 to index
    %c0_47 = arith.constant 0 : index
    %c0_48 = arith.constant 0 : index
    %23 = vector.load %arg7[%c0_46, %22, %c0_47, %c0_48] : memref<1x18x18x4xf32, #tpu.memory_space<vmem>>, vector<1x16x16x4xf32>
    %24 = vector.shape_cast %23 : vector<1x16x16x4xf32> to vector<256x4xf32>
    %c0_49 = arith.constant 0 : index
    %c0_50 = arith.constant 0 : index
    %c0_51 = arith.constant 0 : index
    %25 = vector.load %arg2[%c0_49, %c0_50, %c0_51] : memref<9x4x4xf32, #tpu.memory_space<vmem>>, vector<1x4x4xf32>
    %26 = vector.shape_cast %25 : vector<1x4x4xf32> to vector<4x4xf32>
    %cst_52 = arith.constant dense<0.000000e+00> : vector<256x4xf32>
    %27 = tpu.matmul %24, %26, %cst_52 {dimension_numbers = #tpu.dot_dimension_numbers<[1], [0], [0], [1], [0, 0, 1, 1], [], []>} : vector<256x4xf32>, vector<4x4xf32>, vector<256x4xf32> -> vector<256x4xf32>
    %28 = arith.addf %20, %27 : vector<256x4xf32>
    %c0_i32_53 = arith.constant 0 : i32
    %29 = arith.addi %19, %c0_i32_53 : i32
    %c0_54 = arith.constant 0 : index
    %30 = arith.index_cast %29 : i32 to index
    %c1_55 = arith.constant 1 : index
    %c0_56 = arith.constant 0 : index
    %31 = vector.load %arg7[%c0_54, %30, %c1_55, %c0_56] : memref<1x18x18x4xf32, #tpu.memory_space<vmem>>, vector<1x16x16x4xf32>
    %32 = vector.shape_cast %31 : vector<1x16x16x4xf32> to vector<256x4xf32>
    %c1_57 = arith.constant 1 : index
    %c0_58 = arith.constant 0 : index
    %c0_59 = arith.constant 0 : index
    %33 = vector.load %arg2[%c1_57, %c0_58, %c0_59] : memref<9x4x4xf32, #tpu.memory_space<vmem>>, vector<1x4x4xf32>
    %34 = vector.shape_cast %33 : vector<1x4x4xf32> to vector<4x4xf32>
    %cst_60 = arith.constant dense<0.000000e+00> : vector<256x4xf32>
    %35 = tpu.matmul %32, %34, %cst_60 {dimension_numbers = #tpu.dot_dimension_numbers<[1], [0], [0], [1], [0, 0, 1, 1], [], []>} : vector<256x4xf32>, vector<4x4xf32>, vector<256x4xf32> -> vector<256x4xf32>
    %36 = arith.addf %28, %35 : vector<256x4xf32>
    %c0_i32_61 = arith.constant 0 : i32
    %37 = arith.addi %19, %c0_i32_61 : i32
    %c0_62 = arith.constant 0 : index
    %38 = arith.index_cast %37 : i32 to index
    %c2 = arith.constant 2 : index
    %c0_63 = arith.constant 0 : index
    %39 = vector.load %arg7[%c0_62, %38, %c2, %c0_63] : memref<1x18x18x4xf32, #tpu.memory_space<vmem>>, vector<1x16x16x4xf32>
    %40 = vector.shape_cast %39 : vector<1x16x16x4xf32> to vector<256x4xf32>
    %c2_64 = arith.constant 2 : index
    %c0_65 = arith.constant 0 : index
    %c0_66 = arith.constant 0 : index
    %41 = vector.load %arg2[%c2_64, %c0_65, %c0_66] : memref<9x4x4xf32, #tpu.memory_space<vmem>>, vector<1x4x4xf32>
    %42 = vector.shape_cast %41 : vector<1x4x4xf32> to vector<4x4xf32>
    %cst_67 = arith.constant dense<0.000000e+00> : vector<256x4xf32>
    %43 = tpu.matmul %40, %42, %cst_67 {dimension_numbers = #tpu.dot_dimension_numbers<[1], [0], [0], [1], [0, 0, 1, 1], [], []>} : vector<256x4xf32>, vector<4x4xf32>, vector<256x4xf32> -> vector<256x4xf32>
    %44 = arith.addf %36, %43 : vector<256x4xf32>
    %c1_i32 = arith.constant 1 : i32
    %45 = arith.addi %19, %c1_i32 : i32
    %c0_68 = arith.constant 0 : index
    %46 = arith.index_cast %45 : i32 to index
    %c0_69 = arith.constant 0 : index
    %c0_70 = arith.constant 0 : index
    %47 = vector.load %arg7[%c0_68, %46, %c0_69, %c0_70] : memref<1x18x18x4xf32, #tpu.memory_space<vmem>>, vector<1x16x16x4xf32>
    %48 = vector.shape_cast %47 : vector<1x16x16x4xf32> to vector<256x4xf32>
    %c3 = arith.constant 3 : index
    %c0_71 = arith.constant 0 : index
    %c0_72 = arith.constant 0 : index
    %49 = vector.load %arg2[%c3, %c0_71, %c0_72] : memref<9x4x4xf32, #tpu.memory_space<vmem>>, vector<1x4x4xf32>
    %50 = vector.shape_cast %49 : vector<1x4x4xf32> to vector<4x4xf32>
    %cst_73 = arith.constant dense<0.000000e+00> : vector<256x4xf32>
    %51 = tpu.matmul %48, %50, %cst_73 {dimension_numbers = #tpu.dot_dimension_numbers<[1], [0], [0], [1], [0, 0, 1, 1], [], []>} : vector<256x4xf32>, vector<4x4xf32>, vector<256x4xf32> -> vector<256x4xf32>
    %52 = arith.addf %44, %51 : vector<256x4xf32>
    %c1_i32_74 = arith.constant 1 : i32
    %53 = arith.addi %19, %c1_i32_74 : i32
    %c0_75 = arith.constant 0 : index
    %54 = arith.index_cast %53 : i32 to index
    %c1_76 = arith.constant 1 : index
    %c0_77 = arith.constant 0 : index
    %55 = vector.load %arg7[%c0_75, %54, %c1_76, %c0_77] : memref<1x18x18x4xf32, #tpu.memory_space<vmem>>, vector<1x16x16x4xf32>
    %56 = vector.shape_cast %55 : vector<1x16x16x4xf32> to vector<256x4xf32>
    %c4 = arith.constant 4 : index
    %c0_78 = arith.constant 0 : index
    %c0_79 = arith.constant 0 : index
    %57 = vector.load %arg2[%c4, %c0_78, %c0_79] : memref<9x4x4xf32, #tpu.memory_space<vmem>>, vector<1x4x4xf32>
    %58 = vector.shape_cast %57 : vector<1x4x4xf32> to vector<4x4xf32>
    %cst_80 = arith.constant dense<0.000000e+00> : vector<256x4xf32>
    %59 = tpu.matmul %56, %58, %cst_80 {dimension_numbers = #tpu.dot_dimension_numbers<[1], [0], [0], [1], [0, 0, 1, 1], [], []>} : vector<256x4xf32>, vector<4x4xf32>, vector<256x4xf32> -> vector<256x4xf32>
    %60 = arith.addf %52, %59 : vector<256x4xf32>
    %c1_i32_81 = arith.constant 1 : i32
    %61 = arith.addi %19, %c1_i32_81 : i32
    %c0_82 = arith.constant 0 : index
    %62 = arith.index_cast %61 : i32 to index
    %c2_83 = arith.constant 2 : index
    %c0_84 = arith.constant 0 : index
    %63 = vector.load %arg7[%c0_82, %62, %c2_83, %c0_84] : memref<1x18x18x4xf32, #tpu.memory_space<vmem>>, vector<1x16x16x4xf32>
    %64 = vector.shape_cast %63 : vector<1x16x16x4xf32> to vector<256x4xf32>
    %c5 = arith.constant 5 : index
    %c0_85 = arith.constant 0 : index
    %c0_86 = arith.constant 0 : index
    %65 = vector.load %arg2[%c5, %c0_85, %c0_86] : memref<9x4x4xf32, #tpu.memory_space<vmem>>, vector<1x4x4xf32>
    %66 = vector.shape_cast %65 : vector<1x4x4xf32> to vector<4x4xf32>
    %cst_87 = arith.constant dense<0.000000e+00> : vector<256x4xf32>
    %67 = tpu.matmul %64, %66, %cst_87 {dimension_numbers = #tpu.dot_dimension_numbers<[1], [0], [0], [1], [0, 0, 1, 1], [], []>} : vector<256x4xf32>, vector<4x4xf32>, vector<256x4xf32> -> vector<256x4xf32>
    %68 = arith.addf %60, %67 : vector<256x4xf32>
    %c2_i32 = arith.constant 2 : i32
    %69 = arith.addi %19, %c2_i32 : i32
    %c0_88 = arith.constant 0 : index
    %70 = arith.index_cast %69 : i32 to index
    %c0_89 = arith.constant 0 : index
    %c0_90 = arith.constant 0 : index
    %71 = vector.load %arg7[%c0_88, %70, %c0_89, %c0_90] : memref<1x18x18x4xf32, #tpu.memory_space<vmem>>, vector<1x16x16x4xf32>
    %72 = vector.shape_cast %71 : vector<1x16x16x4xf32> to vector<256x4xf32>
    %c6 = arith.constant 6 : index
    %c0_91 = arith.constant 0 : index
    %c0_92 = arith.constant 0 : index
    %73 = vector.load %arg2[%c6, %c0_91, %c0_92] : memref<9x4x4xf32, #tpu.memory_space<vmem>>, vector<1x4x4xf32>
    %74 = vector.shape_cast %73 : vector<1x4x4xf32> to vector<4x4xf32>
    %cst_93 = arith.constant dense<0.000000e+00> : vector<256x4xf32>
    %75 = tpu.matmul %72, %74, %cst_93 {dimension_numbers = #tpu.dot_dimension_numbers<[1], [0], [0], [1], [0, 0, 1, 1], [], []>} : vector<256x4xf32>, vector<4x4xf32>, vector<256x4xf32> -> vector<256x4xf32>
    %76 = arith.addf %68, %75 : vector<256x4xf32>
    %c2_i32_94 = arith.constant 2 : i32
    %77 = arith.addi %19, %c2_i32_94 : i32
    %c0_95 = arith.constant 0 : index
    %78 = arith.index_cast %77 : i32 to index
    %c1_96 = arith.constant 1 : index
    %c0_97 = arith.constant 0 : index
    %79 = vector.load %arg7[%c0_95, %78, %c1_96, %c0_97] : memref<1x18x18x4xf32, #tpu.memory_space<vmem>>, vector<1x16x16x4xf32>
    %80 = vector.shape_cast %79 : vector<1x16x16x4xf32> to vector<256x4xf32>
    %c7 = arith.constant 7 : index
    %c0_98 = arith.constant 0 : index
    %c0_99 = arith.constant 0 : index
    %81 = vector.load %arg2[%c7, %c0_98, %c0_99] : memref<9x4x4xf32, #tpu.memory_space<vmem>>, vector<1x4x4xf32>
    %82 = vector.shape_cast %81 : vector<1x4x4xf32> to vector<4x4xf32>
    %cst_100 = arith.constant dense<0.000000e+00> : vector<256x4xf32>
    %83 = tpu.matmul %80, %82, %cst_100 {dimension_numbers = #tpu.dot_dimension_numbers<[1], [0], [0], [1], [0, 0, 1, 1], [], []>} : vector<256x4xf32>, vector<4x4xf32>, vector<256x4xf32> -> vector<256x4xf32>
    %84 = arith.addf %76, %83 : vector<256x4xf32>
    %c2_i32_101 = arith.constant 2 : i32
    %85 = arith.addi %19, %c2_i32_101 : i32
    %c0_102 = arith.constant 0 : index
    %86 = arith.index_cast %85 : i32 to index
    %c2_103 = arith.constant 2 : index
    %c0_104 = arith.constant 0 : index
    %87 = vector.load %arg7[%c0_102, %86, %c2_103, %c0_104] : memref<1x18x18x4xf32, #tpu.memory_space<vmem>>, vector<1x16x16x4xf32>
    %88 = vector.shape_cast %87 : vector<1x16x16x4xf32> to vector<256x4xf32>
    %c8 = arith.constant 8 : index
    %c0_105 = arith.constant 0 : index
    %c0_106 = arith.constant 0 : index
    %89 = vector.load %arg2[%c8, %c0_105, %c0_106] : memref<9x4x4xf32, #tpu.memory_space<vmem>>, vector<1x4x4xf32>
    %90 = vector.shape_cast %89 : vector<1x4x4xf32> to vector<4x4xf32>
    %cst_107 = arith.constant dense<0.000000e+00> : vector<256x4xf32>
    %91 = tpu.matmul %88, %90, %cst_107 {dimension_numbers = #tpu.dot_dimension_numbers<[1], [0], [0], [1], [0, 0, 1, 1], [], []>} : vector<256x4xf32>, vector<4x4xf32>, vector<256x4xf32> -> vector<256x4xf32>
    %92 = arith.addf %84, %91 : vector<256x4xf32>
    %c0_108 = arith.constant 0 : index
    %c0_109 = arith.constant 0 : index
    %93 = vector.load %arg4[%c0_108, %c0_109] : memref<1x4xf32, #tpu.memory_space<vmem>>, vector<1x4xf32>
    %94 = vector.broadcast %93 : vector<1x4xf32> to vector<256x4xf32>
    %95 = arith.addf %92, %94 : vector<256x4xf32>
    %cst_110 = arith.constant 0.000000e+00 : f32
    %96 = vector.broadcast %cst_110 : f32 to vector<256x4xf32>
    %97 = arith.maximumf %95, %96 : vector<256x4xf32>
    %98 = vector.shape_cast %97 : vector<256x4xf32> to vector<1x16x16x4xf32>
    %c1_i32_111 = arith.constant 1 : i32
    %99 = arith.addi %c1_i32_111, %19 : i32
    %c0_112 = arith.constant 0 : index
    %100 = arith.index_cast %99 : i32 to index
    %c1_113 = arith.constant 1 : index
    %c0_114 = arith.constant 0 : index
    %101 = vector.load %arg8[%c0_112, %100, %c1_113, %c0_114] : memref<1x18x18x4xf32, #tpu.memory_space<vmem>>, vector<1x16x16x4xf32>
    tpu.vector_store %arg8[%c0_112, %100, %c1_113, %c0_114], %98 {strides = array<i32>} : memref<1x18x18x4xf32, #tpu.memory_space<vmem>>, vector<1x16x16x4xf32>,
    %c1_i32_115 = arith.constant 1 : i32
    %c0_i32_116 = arith.constant 0 : i32
    %c16_i32_117 = arith.constant 16 : i32
    %102 = arith.muli %c0_i32_116, %c16_i32_117 : i32
    %103 = tpu.assume_multiple %102, 16 : i32
    %cst_118 = arith.constant 0.000000e+00 : f32
    %104 = vector.broadcast %cst_118 : f32 to vector<256x4xf32>
    %c0_i32_119 = arith.constant 0 : i32
    %105 = arith.addi %103, %c0_i32_119 : i32
    %c0_120 = arith.constant 0 : index
    %106 = arith.index_cast %105 : i32 to index
    %c0_121 = arith.constant 0 : index
    %c0_122 = arith.constant 0 : index
    %107 = vector.load %arg8[%c0_120, %106, %c0_121, %c0_122] : memref<1x18x18x4xf32, #tpu.memory_space<vmem>>, vector<1x16x16x4xf32>
    %108 = vector.shape_cast %107 : vector<1x16x16x4xf32> to vector<256x4xf32>
    %c0_123 = arith.constant 0 : index
    %c0_124 = arith.constant 0 : index
    %c0_125 = arith.constant 0 : index
    %109 = vector.load %arg3[%c0_123, %c0_124, %c0_125] : memref<9x4x4xf32, #tpu.memory_space<vmem>>, vector<1x4x4xf32>
    %110 = vector.shape_cast %109 : vector<1x4x4xf32> to vector<4x4xf32>
    %cst_126 = arith.constant dense<0.000000e+00> : vector<256x4xf32>
    %111 = tpu.matmul %108, %110, %cst_126 {dimension_numbers = #tpu.dot_dimension_numbers<[1], [0], [0], [1], [0, 0, 1, 1], [], []>} : vector<256x4xf32>, vector<4x4xf32>, vector<256x4xf32> -> vector<256x4xf32>
    %112 = arith.addf %104, %111 : vector<256x4xf32>
    %c0_i32_127 = arith.constant 0 : i32
    %113 = arith.addi %103, %c0_i32_127 : i32
    %c0_128 = arith.constant 0 : index
    %114 = arith.index_cast %113 : i32 to index
    %c1_129 = arith.constant 1 : index
    %c0_130 = arith.constant 0 : index
    %115 = vector.load %arg8[%c0_128, %114, %c1_129, %c0_130] : memref<1x18x18x4xf32, #tpu.memory_space<vmem>>, vector<1x16x16x4xf32>
    %116 = vector.shape_cast %115 : vector<1x16x16x4xf32> to vector<256x4xf32>
    %c1_131 = arith.constant 1 : index
    %c0_132 = arith.constant 0 : index
    %c0_133 = arith.constant 0 : index
    %117 = vector.load %arg3[%c1_131, %c0_132, %c0_133] : memref<9x4x4xf32, #tpu.memory_space<vmem>>, vector<1x4x4xf32>
    %118 = vector.shape_cast %117 : vector<1x4x4xf32> to vector<4x4xf32>
    %cst_134 = arith.constant dense<0.000000e+00> : vector<256x4xf32>
    %119 = tpu.matmul %116, %118, %cst_134 {dimension_numbers = #tpu.dot_dimension_numbers<[1], [0], [0], [1], [0, 0, 1, 1], [], []>} : vector<256x4xf32>, vector<4x4xf32>, vector<256x4xf32> -> vector<256x4xf32>
    %120 = arith.addf %112, %119 : vector<256x4xf32>
    %c0_i32_135 = arith.constant 0 : i32
    %121 = arith.addi %103, %c0_i32_135 : i32
    %c0_136 = arith.constant 0 : index
    %122 = arith.index_cast %121 : i32 to index
    %c2_137 = arith.constant 2 : index
    %c0_138 = arith.constant 0 : index
    %123 = vector.load %arg8[%c0_136, %122, %c2_137, %c0_138] : memref<1x18x18x4xf32, #tpu.memory_space<vmem>>, vector<1x16x16x4xf32>
    %124 = vector.shape_cast %123 : vector<1x16x16x4xf32> to vector<256x4xf32>
    %c2_139 = arith.constant 2 : index
    %c0_140 = arith.constant 0 : index
    %c0_141 = arith.constant 0 : index
    %125 = vector.load %arg3[%c2_139, %c0_140, %c0_141] : memref<9x4x4xf32, #tpu.memory_space<vmem>>, vector<1x4x4xf32>
    %126 = vector.shape_cast %125 : vector<1x4x4xf32> to vector<4x4xf32>
    %cst_142 = arith.constant dense<0.000000e+00> : vector<256x4xf32>
    %127 = tpu.matmul %124, %126, %cst_142 {dimension_numbers = #tpu.dot_dimension_numbers<[1], [0], [0], [1], [0, 0, 1, 1], [], []>} : vector<256x4xf32>, vector<4x4xf32>, vector<256x4xf32> -> vector<256x4xf32>
    %128 = arith.addf %120, %127 : vector<256x4xf32>
    %c1_i32_143 = arith.constant 1 : i32
    %129 = arith.addi %103, %c1_i32_143 : i32
    %c0_144 = arith.constant 0 : index
    %130 = arith.index_cast %129 : i32 to index
    %c0_145 = arith.constant 0 : index
    %c0_146 = arith.constant 0 : index
    %131 = vector.load %arg8[%c0_144, %130, %c0_145, %c0_146] : memref<1x18x18x4xf32, #tpu.memory_space<vmem>>, vector<1x16x16x4xf32>
    %132 = vector.shape_cast %131 : vector<1x16x16x4xf32> to vector<256x4xf32>
    %c3_147 = arith.constant 3 : index
    %c0_148 = arith.constant 0 : index
    %c0_149 = arith.constant 0 : index
    %133 = vector.load %arg3[%c3_147, %c0_148, %c0_149] : memref<9x4x4xf32, #tpu.memory_space<vmem>>, vector<1x4x4xf32>
    %134 = vector.shape_cast %133 : vector<1x4x4xf32> to vector<4x4xf32>
    %cst_150 = arith.constant dense<0.000000e+00> : vector<256x4xf32>
    %135 = tpu.matmul %132, %134, %cst_150 {dimension_numbers = #tpu.dot_dimension_numbers<[1], [0], [0], [1], [0, 0, 1, 1], [], []>} : vector<256x4xf32>, vector<4x4xf32>, vector<256x4xf32> -> vector<256x4xf32>
    %136 = arith.addf %128, %135 : vector<256x4xf32>
    %c1_i32_151 = arith.constant 1 : i32
    %137 = arith.addi %103, %c1_i32_151 : i32
    %c0_152 = arith.constant 0 : index
    %138 = arith.index_cast %137 : i32 to index
    %c1_153 = arith.constant 1 : index
    %c0_154 = arith.constant 0 : index
    %139 = vector.load %arg8[%c0_152, %138, %c1_153, %c0_154] : memref<1x18x18x4xf32, #tpu.memory_space<vmem>>, vector<1x16x16x4xf32>
    %140 = vector.shape_cast %139 : vector<1x16x16x4xf32> to vector<256x4xf32>
    %c4_155 = arith.constant 4 : index
    %c0_156 = arith.constant 0 : index
    %c0_157 = arith.constant 0 : index
    %141 = vector.load %arg3[%c4_155, %c0_156, %c0_157] : memref<9x4x4xf32, #tpu.memory_space<vmem>>, vector<1x4x4xf32>
    %142 = vector.shape_cast %141 : vector<1x4x4xf32> to vector<4x4xf32>
    %cst_158 = arith.constant dense<0.000000e+00> : vector<256x4xf32>
    %143 = tpu.matmul %140, %142, %cst_158 {dimension_numbers = #tpu.dot_dimension_numbers<[1], [0], [0], [1], [0, 0, 1, 1], [], []>} : vector<256x4xf32>, vector<4x4xf32>, vector<256x4xf32> -> vector<256x4xf32>
    %144 = arith.addf %136, %143 : vector<256x4xf32>
    %c1_i32_159 = arith.constant 1 : i32
    %145 = arith.addi %103, %c1_i32_159 : i32
    %c0_160 = arith.constant 0 : index
    %146 = arith.index_cast %145 : i32 to index
    %c2_161 = arith.constant 2 : index
    %c0_162 = arith.constant 0 : index
    %147 = vector.load %arg8[%c0_160, %146, %c2_161, %c0_162] : memref<1x18x18x4xf32, #tpu.memory_space<vmem>>, vector<1x16x16x4xf32>
    %148 = vector.shape_cast %147 : vector<1x16x16x4xf32> to vector<256x4xf32>
    %c5_163 = arith.constant 5 : index
    %c0_164 = arith.constant 0 : index
    %c0_165 = arith.constant 0 : index
    %149 = vector.load %arg3[%c5_163, %c0_164, %c0_165] : memref<9x4x4xf32, #tpu.memory_space<vmem>>, vector<1x4x4xf32>
    %150 = vector.shape_cast %149 : vector<1x4x4xf32> to vector<4x4xf32>
    %cst_166 = arith.constant dense<0.000000e+00> : vector<256x4xf32>
    %151 = tpu.matmul %148, %150, %cst_166 {dimension_numbers = #tpu.dot_dimension_numbers<[1], [0], [0], [1], [0, 0, 1, 1], [], []>} : vector<256x4xf32>, vector<4x4xf32>, vector<256x4xf32> -> vector<256x4xf32>
    %152 = arith.addf %144, %151 : vector<256x4xf32>
    %c2_i32_167 = arith.constant 2 : i32
    %153 = arith.addi %103, %c2_i32_167 : i32
    %c0_168 = arith.constant 0 : index
    %154 = arith.index_cast %153 : i32 to index
    %c0_169 = arith.constant 0 : index
    %c0_170 = arith.constant 0 : index
    %155 = vector.load %arg8[%c0_168, %154, %c0_169, %c0_170] : memref<1x18x18x4xf32, #tpu.memory_space<vmem>>, vector<1x16x16x4xf32>
    %156 = vector.shape_cast %155 : vector<1x16x16x4xf32> to vector<256x4xf32>
    %c6_171 = arith.constant 6 : index
    %c0_172 = arith.constant 0 : index
    %c0_173 = arith.constant 0 : index
    %157 = vector.load %arg3[%c6_171, %c0_172, %c0_173] : memref<9x4x4xf32, #tpu.memory_space<vmem>>, vector<1x4x4xf32>
    %158 = vector.shape_cast %157 : vector<1x4x4xf32> to vector<4x4xf32>
    %cst_174 = arith.constant dense<0.000000e+00> : vector<256x4xf32>
    %159 = tpu.matmul %156, %158, %cst_174 {dimension_numbers = #tpu.dot_dimension_numbers<[1], [0], [0], [1], [0, 0, 1, 1], [], []>} : vector<256x4xf32>, vector<4x4xf32>, vector<256x4xf32> -> vector<256x4xf32>
    %160 = arith.addf %152, %159 : vector<256x4xf32>
    %c2_i32_175 = arith.constant 2 : i32
    %161 = arith.addi %103, %c2_i32_175 : i32
    %c0_176 = arith.constant 0 : index
    %162 = arith.index_cast %161 : i32 to index
    %c1_177 = arith.constant 1 : index
    %c0_178 = arith.constant 0 : index
    %163 = vector.load %arg8[%c0_176, %162, %c1_177, %c0_178] : memref<1x18x18x4xf32, #tpu.memory_space<vmem>>, vector<1x16x16x4xf32>
    %164 = vector.shape_cast %163 : vector<1x16x16x4xf32> to vector<256x4xf32>
    %c7_179 = arith.constant 7 : index
    %c0_180 = arith.constant 0 : index
    %c0_181 = arith.constant 0 : index
    %165 = vector.load %arg3[%c7_179, %c0_180, %c0_181] : memref<9x4x4xf32, #tpu.memory_space<vmem>>, vector<1x4x4xf32>
    %166 = vector.shape_cast %165 : vector<1x4x4xf32> to vector<4x4xf32>
    %cst_182 = arith.constant dense<0.000000e+00> : vector<256x4xf32>
    %167 = tpu.matmul %164, %166, %cst_182 {dimension_numbers = #tpu.dot_dimension_numbers<[1], [0], [0], [1], [0, 0, 1, 1], [], []>} : vector<256x4xf32>, vector<4x4xf32>, vector<256x4xf32> -> vector<256x4xf32>
    %168 = arith.addf %160, %167 : vector<256x4xf32>
    %c2_i32_183 = arith.constant 2 : i32
    %169 = arith.addi %103, %c2_i32_183 : i32
    %c0_184 = arith.constant 0 : index
    %170 = arith.index_cast %169 : i32 to index
    %c2_185 = arith.constant 2 : index
    %c0_186 = arith.constant 0 : index
    %171 = vector.load %arg8[%c0_184, %170, %c2_185, %c0_186] : memref<1x18x18x4xf32, #tpu.memory_space<vmem>>, vector<1x16x16x4xf32>
    %172 = vector.shape_cast %171 : vector<1x16x16x4xf32> to vector<256x4xf32>
    %c8_187 = arith.constant 8 : index
    %c0_188 = arith.constant 0 : index
    %c0_189 = arith.constant 0 : index
    %173 = vector.load %arg3[%c8_187, %c0_188, %c0_189] : memref<9x4x4xf32, #tpu.memory_space<vmem>>, vector<1x4x4xf32>
    %174 = vector.shape_cast %173 : vector<1x4x4xf32> to vector<4x4xf32>
    %cst_190 = arith.constant dense<0.000000e+00> : vector<256x4xf32>
    %175 = tpu.matmul %172, %174, %cst_190 {dimension_numbers = #tpu.dot_dimension_numbers<[1], [0], [0], [1], [0, 0, 1, 1], [], []>} : vector<256x4xf32>, vector<4x4xf32>, vector<256x4xf32> -> vector<256x4xf32>
    %176 = arith.addf %168, %175 : vector<256x4xf32>
    %c0_191 = arith.constant 0 : index
    %177 = arith.index_cast %103 : i32 to index
    %c0_192 = arith.constant 0 : index
    %c0_193 = arith.constant 0 : index
    %178 = vector.load %arg1[%c0_191, %177, %c0_192, %c0_193] : memref<1x16x16x4xf32, #tpu.memory_space<vmem>>, vector<1x16x16x4xf32>
    %c0_194 = arith.constant 0 : index
    %c0_195 = arith.constant 0 : index
    %179 = vector.load %arg5[%c0_194, %c0_195] : memref<1x4xf32, #tpu.memory_space<vmem>>, vector<1x4xf32>
    %180 = vector.broadcast %179 : vector<1x4xf32> to vector<256x4xf32>
    %181 = arith.addf %176, %180 : vector<256x4xf32>
    %182 = vector.shape_cast %178 : vector<1x16x16x4xf32> to vector<256x4xf32>
    %183 = arith.addf %181, %182 : vector<256x4xf32>
    %cst_196 = arith.constant 0.000000e+00 : f32
    %184 = vector.broadcast %cst_196 : f32 to vector<256x4xf32>
    %185 = arith.maximumf %183, %184 : vector<256x4xf32>
    %186 = vector.shape_cast %185 : vector<256x4xf32> to vector<1x16x16x4xf32>
    %c0_197 = arith.constant 0 : index
    %187 = arith.index_cast %103 : i32 to index
    %c0_198 = arith.constant 0 : index
    %c0_199 = arith.constant 0 : index
    %188 = vector.load %arg6[%c0_197, %187, %c0_198, %c0_199] : memref<1x16x16x4xf32, #tpu.memory_space<vmem>>, vector<1x16x16x4xf32>
    tpu.vector_store %arg6[%c0_197, %187, %c0_198, %c0_199], %186 {strides = array<i32>} : memref<1x16x16x4xf32, #tpu.memory_space<vmem>>, vector<1x16x16x4xf32>,
    %c1_i32_200 = arith.constant 1 : i32
    return
  }
  func.func @transform_0(%arg0: i32) -> (i32, i32, i32, i32) {
    %c0_i32 = arith.constant 0 : i32
    %c0_i32_0 = arith.constant 0 : i32
    %c0_i32_1 = arith.constant 0 : i32
    %c0_i32_2 = arith.constant 0 : i32
    return %arg0, %c0_i32, %c0_i32_0, %c0_i32_1 : i32, i32, i32, i32
  }
  func.func @transform_1(%arg0: i32) -> (i32, i32, i32) {
    %c0_i32 = arith.constant 0 : i32
    %c0_i32_0 = arith.constant 0 : i32
    %c0_i32_1 = arith.constant 0 : i32
    %c0_i32_2 = arith.constant 0 : i32
    return %c0_i32, %c0_i32_0, %c0_i32_1 : i32, i32, i32
  }
  func.func @transform_2(%arg0: i32) -> (i32, i32, i32) {
    %c0_i32 = arith.constant 0 : i32
    %c0_i32_0 = arith.constant 0 : i32
    %c0_i32_1 = arith.constant 0 : i32
    %c0_i32_2 = arith.constant 0 : i32
    return %c0_i32, %c0_i32_0, %c0_i32_1 : i32, i32, i32
  }
  func.func @transform_3(%arg0: i32) -> (i32, i32) {
    %c0_i32 = arith.constant 0 : i32
    %c0_i32_0 = arith.constant 0 : i32
    %c0_i32_1 = arith.constant 0 : i32
    return %c0_i32, %c0_i32_0 : i32, i32
  }
  func.func @transform_4(%arg0: i32) -> (i32, i32) {
    %c0_i32 = arith.constant 0 : i32
    %c0_i32_0 = arith.constant 0 : i32
    %c0_i32_1 = arith.constant 0 : i32
    return %c0_i32, %c0_i32_0 : i32, i32
  }
  func.func @transform_5(%arg0: i32) -> (i32, i32, i32, i32) {
    %c0_i32 = arith.constant 0 : i32
    %c0_i32_0 = arith.constant 0 : i32
    %c0_i32_1 = arith.constant 0 : i32
    %c0_i32_2 = arith.constant 0 : i32
    return %arg0, %c0_i32, %c0_i32_0, %c0_i32_1 : i32, i32, i32, i32
  }
}

</mosaic_0001>

<llo_original>
// kernel: tpu_custom_call.1
$region0: #{tpu_custom_call.1}
  #allocation0 [shape = 'u32[]', space=smem, size = 0x4, offset = 0x4, fixed_abs, tag = 'smem constant byte address 0x4 - core index']
  #allocation1 [shape = 'u32[72,128]{1,0:T(1,128)}', space=vmem, size = 0x9000, scoped, tag = 'internal scratch']
  #allocation2 [shape = 'f32[1,18,18,4]{3,2,1,0:T(8,128)}', space=vmem, size = 0x36000, scoped, tag = 'scratch operand']
  #allocation3 [shape = 'f32[1,18,18,4]{3,2,1,0:T(8,128)}', space=vmem, size = 0x36000, scoped, tag = 'scratch operand']
  %s0 = inlined_call_operand.vmem [shape: f32[2,16,16,4], index: 0, kind: input, shape index: {}]
  %s1 = inlined_call_operand.vmem [shape: f32[9,4,4], index: 1, kind: input, shape index: {}]
  %s2 = inlined_call_operand.vmem [shape: f32[9,4,4], index: 2, kind: input, shape index: {}]
  %s3 = inlined_call_operand.vmem [shape: f32[1,4], index: 3, kind: input, shape index: {}]
  %s4 = inlined_call_operand.vmem [shape: f32[1,4], index: 4, kind: input, shape index: {}]
  %s5 = inlined_call_operand.vmem [shape: f32[2,16,16,4], index: 5, kind: output, shape index: {}]
  %s6 = sld [smem:[#allocation0]]
  $region53: #{tpu_custom_call.1} parent=0
    _
  %s8 = ssub.s32 1, %s6
  %s9 = scalar_select 0, %s8, %s6
  loop: start=0, step=1, limit=4
  $region2: #{tpu_custom_call.1} parent=0 // loop_pre_header
    _
  $region3: #{tpu_custom_call.1} parent=0 // loop_header
    %s11 = sphi 0, %s15
    %p12 = scmp.ge.s32.totalorder %s11, 4
    %s21 = sphi 0, %s23
    %s24 = sphi 0, %s21
    %s25 = sphi 0, %s24
    %s41 = sphi 0, %s25
    %s45 = sphi 0, %s45
    %s47 = sphi 0, %s45
    %s48 = sphi 0, %s47
    %s62 = sphi 0, %s48
    %s66 = sphi 0, %s66
    %s68 = sphi 0, %s66
    %s69 = sphi 0, %s68
    %s83 = sphi 0, %s69
    %s87 = sphi 0, %s87
    %s89 = sphi 0, %s87
    %s90 = sphi 0, %s89
    %s104 = sphi 0, %s90
    %s108 = sphi 0, %s108
    %s110 = sphi 0, %s108
    %s111 = sphi 0, %s110
    %s125 = sphi 0, %s111
    %s131 = sphi 0, %s133
    %s134 = sphi 0, %s131
    %s135 = sphi 0, %s134
    %s151 = sphi 0, %s135
  $region4: #{tpu_custom_call.1} parent=0 // loop_header_branch
    %14 = sbr.rel (%p12) target = $region8
  $region5: #{tpu_custom_call.1} parent=0 // loop_body
    %s16 = ssub.s32 %s11, 1
    %s17 = ssub.s32 %s11, 2
    %s18 = sadd.s32 %s11, 1
    %s19 = ssub.s32 %s11, %s18
    %p20 = scmp.eq.s32.totalorder %s19, 0
    %s22 = sadd.s32 %s21, 1
    %s23 = scalar_select %p20, %s21, %s22
    %p26 = pneg %p20
    %p27 = scmp.eq.s32.totalorder %s11, 1
    %p28 = por %p26, %p27
    %p29 = scmp.ne.s32.totalorder %s21, %s24
    %p30 = scmp.eq.s32.totalorder %s11, 0
    %p31 = por %p29, %p30
    %p32 = scmp.ne.s32.totalorder %s21, %s24
    %p33 = scmp.eq.s32.totalorder %s16, 1
    %p34 = por %p32, %p33
    %p35 = scmp.ne.s32.totalorder %s24, %s25
    %p36 = scmp.eq.s32.totalorder %s16, 0
    %p37 = por %p35, %p36
    %p38 = scmp.ne.s32.totalorder %s24, %s25
    %p39 = scmp.eq.s32.totalorder %s17, 1
    %p40 = por %p38, %p39
    %p42 = scmp.ne.s32.totalorder %s25, %s41
    %p43 = scmp.eq.s32.totalorder %s17, 0
    %p44 = por %p42, %p43
    %s46 = sadd.s32 %s45, 1
    %p49 = scmp.eq.s32.totalorder %s11, 1
    %p50 = scmp.ne.s32.totalorder %s45, %s47
    %p51 = scmp.eq.s32.totalorder %s11, 0
    %p52 = por %p50, %p51
    %p53 = scmp.ne.s32.totalorder %s45, %s47
    %p54 = scmp.eq.s32.totalorder %s16, 1
    %p55 = por %p53, %p54
    %p56 = scmp.ne.s32.totalorder %s47, %s48
    %p57 = scmp.eq.s32.totalorder %s16, 0
    %p58 = por %p56, %p57
    %p59 = scmp.ne.s32.totalorder %s47, %s48
    %p60 = scmp.eq.s32.totalorder %s17, 1
    %p61 = por %p59, %p60
    %p63 = scmp.ne.s32.totalorder %s48, %s62
    %p64 = scmp.eq.s32.totalorder %s17, 0
    %p65 = por %p63, %p64
    %s67 = sadd.s32 %s66, 1
    %p70 = scmp.eq.s32.totalorder %s11, 1
    %p71 = scmp.ne.s32.totalorder %s66, %s68
    %p72 = scmp.eq.s32.totalorder %s11, 0
    %p73 = por %p71, %p72
    %p74 = scmp.ne.s32.totalorder %s66, %s68
    %p75 = scmp.eq.s32.totalorder %s16, 1
    %p76 = por %p74, %p75
    %p77 = scmp.ne.s32.totalorder %s68, %s69
    %p78 = scmp.eq.s32.totalorder %s16, 0
    %p79 = por %p77, %p78
    %p80 = scmp.ne.s32.totalorder %s68, %s69
    %p81 = scmp.eq.s32.totalorder %s17, 1
    %p82 = por %p80, %p81
    %p84 = scmp.ne.s32.totalorder %s69, %s83
    %p85 = scmp.eq.s32.totalorder %s17, 0
    %p86 = por %p84, %p85
    %s88 = sadd.s32 %s87, 1
    %p91 = scmp.eq.s32.totalorder %s11, 1
    %p92 = scmp.ne.s32.totalorder %s87, %s89
    %p93 = scmp.eq.s32.totalorder %s11, 0
    %p94 = por %p92, %p93
    %p95 = scmp.ne.s32.totalorder %s87, %s89
    %p96 = scmp.eq.s32.totalorder %s16, 1
    %p97 = por %p95, %p96
    %p98 = scmp.ne.s32.totalorder %s89, %s90
    %p99 = scmp.eq.s32.totalorder %s16, 0
    %p100 = por %p98, %p99
    %p101 = scmp.ne.s32.totalorder %s89, %s90
    %p102 = scmp.eq.s32.totalorder %s17, 1
    %p103 = por %p101, %p102
    %p105 = scmp.ne.s32.totalorder %s90, %s104
    %p106 = scmp.eq.s32.totalorder %s17, 0
    %p107 = por %p105, %p106
    %s109 = sadd.s32 %s108, 1
    %p112 = scmp.eq.s32.totalorder %s11, 1
    %p113 = scmp.ne.s32.totalorder %s108, %s110
    %p114 = scmp.eq.s32.totalorder %s11, 0
    %p115 = por %p113, %p114
    %p116 = scmp.ne.s32.totalorder %s108, %s110
    %p117 = scmp.eq.s32.totalorder %s16, 1
    %p118 = por %p116, %p117
    %p119 = scmp.ne.s32.totalorder %s110, %s111
    %p120 = scmp.eq.s32.totalorder %s16, 0
    %p121 = por %p119, %p120
    %p122 = scmp.ne.s32.totalorder %s110, %s111
    %p123 = scmp.eq.s32.totalorder %s17, 1
    %p124 = por %p122, %p123
    %p126 = scmp.ne.s32.totalorder %s111, %s125
    %p127 = scmp.eq.s32.totalorder %s17, 0
    %p128 = por %p126, %p127
    %s129 = ssub.s32 %s11, %s18
    %p130 = scmp.eq.s32.totalorder %s129, 0
    %s132 = sadd.s32 %s131, 1
    %s133 = scalar_select %p130, %s131, %s132
    %p136 = pneg %p130
    %p137 = scmp.eq.s32.totalorder %s11, 1
    %p138 = por %p136, %p137
    %p139 = scmp.ne.s32.totalorder %s131, %s134
    %p140 = scmp.eq.s32.totalorder %s11, 0
    %p141 = por %p139, %p140
    %p142 = scmp.ne.s32.totalorder %s131, %s134
    %p143 = scmp.eq.s32.totalorder %s16, 1
    %p144 = por %p142, %p143
    %p145 = scmp.ne.s32.totalorder %s134, %s135
    %p146 = scmp.eq.s32.totalorder %s16, 0
    %p147 = por %p145, %p146
    %p148 = scmp.ne.s32.totalorder %s134, %s135
    %p149 = scmp.eq.s32.totalorder %s17, 1
    %p150 = por %p148, %p149
    %p152 = scmp.ne.s32.totalorder %s135, %s151
    %p153 = scmp.eq.s32.totalorder %s17, 0
    %p154 = por %p152, %p153
    %p155 = scmp.le.s32.totalorder 1, %s11
    %p156 = scmp.lt.s32.totalorder %s11, 3
    %p157 = pnand %p155, %p156
    %p158 = pneg %p157
    // Predicated region
    $region9: #{tpu_custom_call.1} parent=5 // pred_check
      _
    $region10: #{tpu_custom_call.1} parent=5 // pred_check_branch
      %160 = sbr.rel (%p157) target = $region12
    $region11: #{tpu_custom_call.1} parent=5 // pred_region
      %s161 = ssub.s32 %s11, 1
      // Predicated region
      $region13: #{tpu_custom_call.1} parent=11 // pred_check
        %p162 = pneg %p58
      $region14: #{tpu_custom_call.1} parent=11 // pred_check_branch
        %164 = sbr.rel (%p162) target = $region16
      $region15: #{tpu_custom_call.1} parent=11 // pred_region
        _
      $region16: #{tpu_custom_call.1} parent=11 // pred_fallthru
        _
      // Predicated region
      $region17: #{tpu_custom_call.1} parent=11 // pred_check
        %p165 = pneg %p79
      $region18: #{tpu_custom_call.1} parent=11 // pred_check_branch
        %167 = sbr.rel (%p165) target = $region20
      $region19: #{tpu_custom_call.1} parent=11 // pred_region
        _
      $region20: #{tpu_custom_call.1} parent=11 // pred_fallthru
        _
      // Predicated region
      $region21: #{tpu_custom_call.1} parent=11 // pred_check
        %p168 = pneg %p100
      $region22: #{tpu_custom_call.1} parent=11 // pred_check_branch
        %170 = sbr.rel (%p168) target = $region24
      $region23: #{tpu_custom_call.1} parent=11 // pred_region
        _
      $region24: #{tpu_custom_call.1} parent=11 // pred_fallthru
        _
      // Predicated region
      $region25: #{tpu_custom_call.1} parent=11 // pred_check
        %p171 = pneg %p121
      $region26: #{tpu_custom_call.1} parent=11 // pred_check_branch
        %173 = sbr.rel (%p171) target = $region28
      $region27: #{tpu_custom_call.1} parent=11 // pred_region
        _
      $region28: #{tpu_custom_call.1} parent=11 // pred_fallthru
        _
    $region12: #{tpu_custom_call.1} parent=5 // pred_fallthru
      _
    %p174 = scmp.lt.s32.totalorder %s11, 2
    // Predicated region
    $region29: #{tpu_custom_call.1} parent=5 // pred_check
      %p175 = pneg %p174
    $region30: #{tpu_custom_call.1} parent=5 // pred_check_branch
      %177 = sbr.rel (%p175) target = $region32
    $region31: #{tpu_custom_call.1} parent=5 // pred_region
      // Predicated region
      $region33: #{tpu_custom_call.1} parent=31 // pred_check
        %p178 = pneg %p31
      $region34: #{tpu_custom_call.1} parent=31 // pred_check_branch
        %180 = sbr.rel (%p178) target = $region36
      $region35: #{tpu_custom_call.1} parent=31 // pred_region
        %p181 = scmp.lt.s32.totalorder %s11, 1
        %s182 = scalar_select %p181, %s11, 1
        %s183 = smul.addr %s182, 32
        %s184 = smul.addr %s183, 8
        %s185 = scalar_lea.vmem %s0, %s184
      $region36: #{tpu_custom_call.1} parent=31 // pred_fallthru
        _
    $region32: #{tpu_custom_call.1} parent=5 // pred_fallthru
      _
    %p186 = scmp.le.s32.totalorder 1, %s11
    %p187 = scmp.lt.s32.totalorder %s11, 3
    %p188 = pnand %p186, %p187
    %p189 = pneg %p188
    // Predicated region
    $region37: #{tpu_custom_call.1} parent=5 // pred_check
      _
    $region38: #{tpu_custom_call.1} parent=5 // pred_check_branch
      %191 = sbr.rel (%p188) target = $region40
    $region39: #{tpu_custom_call.1} parent=5 // pred_region
      %s192 = ssub.s32 %s11, 1
      %p193 = scmp.lt.s32.totalorder %s16, 1
      %s194 = scalar_select %p193, %s16, 1
      %s195 = smul.addr %s194, 32
      %s196 = smul.addr %s195, 8
      %s197 = scalar_lea.vmem %s0, %s196
      %p198 = pneg %p37
      %p199 = pneg %p34
      %p200 = pneg %p58
      %p201 = pneg %p55
      %p202 = pneg %p79
      %p203 = pneg %p76
      %p204 = pneg %p100
      %p205 = pneg %p97
      %p206 = pneg %p121
      %p207 = pneg %p118
      %p208 = pneg %p147
      %p209 = pneg %p144
      %p210 = scmp.lt.s32.totalorder %s16, 1
      %s211 = scalar_select %p210, %s16, 1
      %s212 = smul.addr %s211, 32
      %s213 = smul.addr %s212, 8
      %s214 = scalar_lea.vmem %s5, %s213
      %p215 = scmp.lt.s32.totalorder %s16, 1
      %s216 = scalar_select %p215, %s16, 1
      %s217 = smul.addr %s216, 32
      %s218 = smul.addr %s217, 8
      %s219 = scalar_lea.vmem %s0, %s218
      %p220 = scmp.lt.s32.totalorder %s16, 1
      %s221 = scalar_select %p220, %s16, 1
      %s222 = smul.addr %s221, 32
      %s223 = smul.addr %s222, 8
      %s224 = scalar_lea.vmem %s5, %s223
      %vm225 = vcmask 31744
      %226 = vst.msk [vmem:[#allocation2] sm:$0xff] %vm225, 0.0
      %227 = vst.msk [vmem:[#allocation2 + $0x8] sm:$0xff] %vm225, 0.0
      %vm228 = vcmask 25600
      %229 = vst.msk [vmem:[#allocation2 + $0x10] sm:$0x3] %vm228, 0.0
      %s230 = scalar_lea.vmem [#allocation2], 408
      %231 = vst.msk [vmem:[%s230] sm:$0xff] %vm225, 0.0
      %232 = vst.msk [vmem:[%s230 + $0x8] sm:$0xff] %vm225, 0.0
      %233 = vst.msk [vmem:[%s230 + $0x10] sm:$0x3] %vm228, 0.0
      %vm234 = vcmask 24576
      %235 = vst.msk [vmem:[#allocation2] sm:$0x1] %vm234, 0.0
      %236 = vst.msk [vmem:[#allocation2 + $0x18] sm:$0x1] %vm234, 0.0
      %237 = vst.msk [vmem:[#allocation2 + $0x30] sm:$0x1] %vm234, 0.0
      %238 = vst.msk [vmem:[#allocation2 + $0x48] sm:$0x1] %vm234, 0.0
      %239 = vst.msk [vmem:[#allocation2 + $0x60] sm:$0x1] %vm234, 0.0
      %240 = vst.msk [vmem:[#allocation2 + $0x78] sm:$0x1] %vm234, 0.0
      %241 = vst.msk [vmem:[#allocation2 + $0x90] sm:$0x1] %vm234, 0.0
      %242 = vst.msk [vmem:[#allocation2 + $0xa8] sm:$0x1] %vm234, 0.0
      %243 = vst.msk [vmem:[#allocation2 + $0xc0] sm:$0x1] %vm234, 0.0
      %244 = vst.msk [vmem:[#allocation2 + $0xd8] sm:$0x1] %vm234, 0.0
      %245 = vst.msk [vmem:[#allocation2 + $0xf0] sm:$0x1] %vm234, 0.0
      %246 = vst.msk [vmem:[#allocation2 + $0x108] sm:$0x1] %vm234, 0.0
      %247 = vst.msk [vmem:[#allocation2 + $0x120] sm:$0x1] %vm234, 0.0
      %248 = vst.msk [vmem:[#allocation2 + $0x138] sm:$0x1] %vm234, 0.0
      %249 = vst.msk [vmem:[#allocation2 + $0x150] sm:$0x1] %vm234, 0.0
      %250 = vst.msk [vmem:[#allocation2 + $0x168] sm:$0x1] %vm234, 0.0
      %251 = vst.msk [vmem:[#allocation2 + $0x180] sm:$0x1] %vm234, 0.0
      %252 = vst.msk [vmem:[#allocation2 + $0x198] sm:$0x1] %vm234, 0.0
      %253 = vst.msk [vmem:[#allocation2 + $0x11] sm:$0x1] %vm234, 0.0
      %254 = vst.msk [vmem:[#allocation2 + $0x29] sm:$0x1] %vm234, 0.0
      %255 = vst.msk [vmem:[#allocation2 + $0x41] sm:$0x1] %vm234, 0.0
      %256 = vst.msk [vmem:[#allocation2 + $0x59] sm:$0x1] %vm234, 0.0
      %257 = vst.msk [vmem:[#allocation2 + $0x71] sm:$0x1] %vm234, 0.0
      %258 = vst.msk [vmem:[#allocation2 + $0x89] sm:$0x1] %vm234, 0.0
      %259 = vst.msk [vmem:[#allocation2 + $0xa1] sm:$0x1] %vm234, 0.0
      %260 = vst.msk [vmem:[#allocation2 + $0xb9] sm:$0x1] %vm234, 0.0
      %261 = vst.msk [vmem:[#allocation2 + $0xd1] sm:$0x1] %vm234, 0.0
      %262 = vst.msk [vmem:[#allocation2 + $0xe9] sm:$0x1] %vm234, 0.0
      %263 = vst.msk [vmem:[#allocation2 + $0x101] sm:$0x1] %vm234, 0.0
      %264 = vst.msk [vmem:[#allocation2 + $0x119] sm:$0x1] %vm234, 0.0
      %265 = vst.msk [vmem:[#allocation2 + $0x131] sm:$0x1] %vm234, 0.0
      %266 = vst.msk [vmem:[#allocation2 + $0x149] sm:$0x1] %vm234, 0.0
      %267 = vst.msk [vmem:[#allocation2 + $0x161] sm:$0x1] %vm234, 0.0
      %268 = vst.msk [vmem:[#allocation2 + $0x179] sm:$0x1] %vm234, 0.0
      %269 = vst.msk [vmem:[#allocation2 + $0x191] sm:$0x1] %vm234, 0.0
      %270 = vst.msk [vmem:[#allocation2 + $0x1a9] sm:$0x1] %vm234, 0.0
      %271 = vst.msk [vmem:[#allocation3] sm:$0xff] %vm225, 0.0
      %272 = vst.msk [vmem:[#allocation3 + $0x8] sm:$0xff] %vm225, 0.0
      %273 = vst.msk [vmem:[#allocation3 + $0x10] sm:$0x3] %vm228, 0.0
      %s274 = scalar_lea.vmem [#allocation3], 408
      %275 = vst.msk [vmem:[%s274] sm:$0xff] %vm225, 0.0
      %276 = vst.msk [vmem:[%s274 + $0x8] sm:$0xff] %vm225, 0.0
      %277 = vst.msk [vmem:[%s274 + $0x10] sm:$0x3] %vm228, 0.0
      %278 = vst.msk [vmem:[#allocation3] sm:$0x1] %vm234, 0.0
      %279 = vst.msk [vmem:[#allocation3 + $0x18] sm:$0x1] %vm234, 0.0
      %280 = vst.msk [vmem:[#allocation3 + $0x30] sm:$0x1] %vm234, 0.0
      %281 = vst.msk [vmem:[#allocation3 + $0x48] sm:$0x1] %vm234, 0.0
      %282 = vst.msk [vmem:[#allocation3 + $0x60] sm:$0x1] %vm234, 0.0
      %283 = vst.msk [vmem:[#allocation3 + $0x78] sm:$0x1] %vm234, 0.0
      %284 = vst.msk [vmem:[#allocation3 + $0x90] sm:$0x1] %vm234, 0.0
      %285 = vst.msk [vmem:[#allocation3 + $0xa8] sm:$0x1] %vm234, 0.0
      %286 = vst.msk [vmem:[#allocation3 + $0xc0] sm:$0x1] %vm234, 0.0
      %287 = vst.msk [vmem:[#allocation3 + $0xd8] sm:$0x1] %vm234, 0.0
      %288 = vst.msk [vmem:[#allocation3 + $0xf0] sm:$0x1] %vm234, 0.0
      %289 = vst.msk [vmem:[#allocation3 + $0x108] sm:$0x1] %vm234, 0.0
      %290 = vst.msk [vmem:[#allocation3 + $0x120] sm:$0x1] %vm234, 0.0
      %291 = vst.msk [vmem:[#allocation3 + $0x138] sm:$0x1] %vm234, 0.0
      %292 = vst.msk [vmem:[#allocation3 + $0x150] sm:$0x1] %vm234, 0.0
      %293 = vst.msk [vmem:[#allocation3 + $0x168] sm:$0x1] %vm234, 0.0
      %294 = vst.msk [vmem:[#allocation3 + $0x180] sm:$0x1] %vm234, 0.0
      %295 = vst.msk [vmem:[#allocation3 + $0x198] sm:$0x1] %vm234, 0.0
      %296 = vst.msk [vmem:[#allocation3 + $0x11] sm:$0x1] %vm234, 0.0
      %297 = vst.msk [vmem:[#allocation3 + $0x29] sm:$0x1] %vm234, 0.0
      %298 = vst.msk [vmem:[#allocation3 + $0x41] sm:$0x1] %vm234, 0.0
      %299 = vst.msk [vmem:[#allocation3 + $0x59] sm:$0x1] %vm234, 0.0
      %300 = vst.msk [vmem:[#allocation3 + $0x71] sm:$0x1] %vm234, 0.0
      %301 = vst.msk [vmem:[#allocation3 + $0x89] sm:$0x1] %vm234, 0.0
      %302 = vst.msk [vmem:[#allocation3 + $0xa1] sm:$0x1] %vm234, 0.0
      %303 = vst.msk [vmem:[#allocation3 + $0xb9] sm:$0x1] %vm234, 0.0
      %304 = vst.msk [vmem:[#allocation3 + $0xd1] sm:$0x1] %vm234, 0.0
      %305 = vst.msk [vmem:[#allocation3 + $0xe9] sm:$0x1] %vm234, 0.0
      %306 = vst.msk [vmem:[#allocation3 + $0x101] sm:$0x1] %vm234, 0.0
      %307 = vst.msk [vmem:[#allocation3 + $0x119] sm:$0x1] %vm234, 0.0
      %308 = vst.msk [vmem:[#allocation3 + $0x131] sm:$0x1] %vm234, 0.0
      %309 = vst.msk [vmem:[#allocation3 + $0x149] sm:$0x1] %vm234, 0.0
      %310 = vst.msk [vmem:[#allocation3 + $0x161] sm:$0x1] %vm234, 0.0
      %311 = vst.msk [vmem:[#allocation3 + $0x179] sm:$0x1] %vm234, 0.0
      %312 = vst.msk [vmem:[#allocation3 + $0x191] sm:$0x1] %vm234, 0.0
      %313 = vst.msk [vmem:[#allocation3 + $0x1a9] sm:$0x1] %vm234, 0.0
      %v314 = vld [vmem:[%s219] sm:$0xff]
      %v315 = vld [vmem:[%s219 + $0x8] sm:$0xff]
      %v316 = vld [vmem:[%s219 + $0x10] sm:$0xff]
      %v317 = vld [vmem:[%s219 + $0x18] sm:$0xff]
      %v318 = vld [vmem:[%s219 + $0x20] sm:$0xff]
      %v319 = vld [vmem:[%s219 + $0x28] sm:$0xff]
      %v320 = vld [vmem:[%s219 + $0x30] sm:$0xff]
      %v321 = vld [vmem:[%s219 + $0x38] sm:$0xff]
      %v322 = vld [vmem:[%s219 + $0x40] sm:$0xff]
      %v323 = vld [vmem:[%s219 + $0x48] sm:$0xff]
      %v324 = vld [vmem:[%s219 + $0x50] sm:$0xff]
      %v325 = vld [vmem:[%s219 + $0x58] sm:$0xff]
      %v326 = vld [vmem:[%s219 + $0x60] sm:$0xff]
      %v327 = vld [vmem:[%s219 + $0x68] sm:$0xff]
      %v328 = vld [vmem:[%s219 + $0x70] sm:$0xff]
      %v329 = vld [vmem:[%s219 + $0x78] sm:$0xff]
      %v330 = vld [vmem:[%s219 + $0x80] sm:$0xff]
      %v331 = vld [vmem:[%s219 + $0x88] sm:$0xff]
      %v332 = vld [vmem:[%s219 + $0x90] sm:$0xff]
      %v333 = vld [vmem:[%s219 + $0x98] sm:$0xff]
      %v334 = vld [vmem:[%s219 + $0xa0] sm:$0xff]
      %v335 = vld [vmem:[%s219 + $0xa8] sm:$0xff]
      %v336 = vld [vmem:[%s219 + $0xb0] sm:$0xff]
      %v337 = vld [vmem:[%s219 + $0xb8] sm:$0xff]
      %v338 = vld [vmem:[%s219 + $0xc0] sm:$0xff]
      %v339 = vld [vmem:[%s219 + $0xc8] sm:$0xff]
      %v340 = vld [vmem:[%s219 + $0xd0] sm:$0xff]
      %v341 = vld [vmem:[%s219 + $0xd8] sm:$0xff]
      %v342 = vld [vmem:[%s219 + $0xe0] sm:$0xff]
      %v343 = vld [vmem:[%s219 + $0xe8] sm:$0xff]
      %v344 = vld [vmem:[%s219 + $0xf0] sm:$0xff]
      %v345 = vld [vmem:[%s219 + $0xf8] sm:$0xff]
      %s346 = scalar_lea.vmem [#allocation2], 24
      %347 = vst.msk [vmem:[%s346 + $0x1] sm:$0xff] %vm225, %v314
      %348 = vst.msk [vmem:[%s346 + $0x9] sm:$0xff] %vm225, %v315
      %349 = vst.msk [vmem:[%s346 + $0x19] sm:$0xff] %vm225, %v316
      %350 = vst.msk [vmem:[%s346 + $0x21] sm:$0xff] %vm225, %v317
      %351 = vst.msk [vmem:[%s346 + $0x31] sm:$0xff] %vm225, %v318
      %352 = vst.msk [vmem:[%s346 + $0x39] sm:$0xff] %vm225, %v319
      %353 = vst.msk [vmem:[%s346 + $0x49] sm:$0xff] %vm225, %v320
      %354 = vst.msk [vmem:[%s346 + $0x51] sm:$0xff] %vm225, %v321
      %355 = vst.msk [vmem:[%s346 + $0x61] sm:$0xff] %vm225, %v322
      %356 = vst.msk [vmem:[%s346 + $0x69] sm:$0xff] %vm225, %v323
      %357 = vst.msk [vmem:[%s346 + $0x79] sm:$0xff] %vm225, %v324
      %358 = vst.msk [vmem:[%s346 + $0x81] sm:$0xff] %vm225, %v325
      %359 = vst.msk [vmem:[%s346 + $0x91] sm:$0xff] %vm225, %v326
      %360 = vst.msk [vmem:[%s346 + $0x99] sm:$0xff] %vm225, %v327
      %361 = vst.msk [vmem:[%s346 + $0xa9] sm:$0xff] %vm225, %v328
      %362 = vst.msk [vmem:[%s346 + $0xb1] sm:$0xff] %vm225, %v329
      %363 = vst.msk [vmem:[%s346 + $0xc1] sm:$0xff] %vm225, %v330
      %364 = vst.msk [vmem:[%s346 + $0xc9] sm:$0xff] %vm225, %v331
      %365 = vst.msk [vmem:[%s346 + $0xd9] sm:$0xff] %vm225, %v332
      %366 = vst.msk [vmem:[%s346 + $0xe1] sm:$0xff] %vm225, %v333
      %367 = vst.msk [vmem:[%s346 + $0xf1] sm:$0xff] %vm225, %v334
      %368 = vst.msk [vmem:[%s346 + $0xf9] sm:$0xff] %vm225, %v335
      %369 = vst.msk [vmem:[%s346 + $0x109] sm:$0xff] %vm225, %v336
      %370 = vst.msk [vmem:[%s346 + $0x111] sm:$0xff] %vm225, %v337
      %371 = vst.msk [vmem:[%s346 + $0x121] sm:$0xff] %vm225, %v338
      %372 = vst.msk [vmem:[%s346 + $0x129] sm:$0xff] %vm225, %v339
      %373 = vst.msk [vmem:[%s346 + $0x139] sm:$0xff] %vm225, %v340
      %374 = vst.msk [vmem:[%s346 + $0x141] sm:$0xff] %vm225, %v341
      %375 = vst.msk [vmem:[%s346 + $0x151] sm:$0xff] %vm225, %v342
      %376 = vst.msk [vmem:[%s346 + $0x159] sm:$0xff] %vm225, %v343
      %377 = vst.msk [vmem:[%s346 + $0x169] sm:$0xff] %vm225, %v344
      %378 = vst.msk [vmem:[%s346 + $0x171] sm:$0xff] %vm225, %v345
      %s379 = smul.u32 0, 24
      %s380 = scalar_lea.vmem [#allocation2], %s379
      %v381 = vld [vmem:[%s380] sm:$0xff]
      %v382 = vld [vmem:[%s380 + $0x8] sm:$0xff]
      %v383 = vld [vmem:[%s380 + $0x18] sm:$0xff]
      %v384 = vld [vmem:[%s380 + $0x20] sm:$0xff]
      %v385 = vld [vmem:[%s380 + $0x30] sm:$0xff]
      %v386 = vld [vmem:[%s380 + $0x38] sm:$0xff]
      %v387 = vld [vmem:[%s380 + $0x48] sm:$0xff]
      %v388 = vld [vmem:[%s380 + $0x50] sm:$0xff]
      %v389 = vld [vmem:[%s380 + $0x60] sm:$0xff]
      %v390 = vld [vmem:[%s380 + $0x68] sm:$0xff]
      %v391 = vld [vmem:[%s380 + $0x78] sm:$0xff]
      %v392 = vld [vmem:[%s380 + $0x80] sm:$0xff]
      %v393 = vld [vmem:[%s380 + $0x90] sm:$0xff]
      %v394 = vld [vmem:[%s380 + $0x98] sm:$0xff]
      %v395 = vld [vmem:[%s380 + $0xa8] sm:$0xff]
      %v396 = vld [vmem:[%s380 + $0xb0] sm:$0xff]
      %v397 = vld [vmem:[%s380 + $0xc0] sm:$0xff]
      %v398 = vld [vmem:[%s380 + $0xc8] sm:$0xff]
      %v399 = vld [vmem:[%s380 + $0xd8] sm:$0xff]
      %v400 = vld [vmem:[%s380 + $0xe0] sm:$0xff]
      %v401 = vld [vmem:[%s380 + $0xf0] sm:$0xff]
      %v402 = vld [vmem:[%s380 + $0xf8] sm:$0xff]
      %v403 = vld [vmem:[%s380 + $0x108] sm:$0xff]
      %v404 = vld [vmem:[%s380 + $0x110] sm:$0xff]
      %v405 = vld [vmem:[%s380 + $0x120] sm:$0xff]
      %v406 = vld [vmem:[%s380 + $0x128] sm:$0xff]
      %v407 = vld [vmem:[%s380 + $0x138] sm:$0xff]
      %v408 = vld [vmem:[%s380 + $0x140] sm:$0xff]
      %v409 = vld [vmem:[%s380 + $0x150] sm:$0xff]
      %v410 = vld [vmem:[%s380 + $0x158] sm:$0xff]
      %v411 = vld [vmem:[%s380 + $0x168] sm:$0xff]
      %v412 = vld [vmem:[%s380 + $0x170] sm:$0xff]
      %v413 = vld [vmem:[%s1] sm:$0xf]
      %v414 = vld [vmem:[%s380 + $0x1] sm:$0xff]
      %v415 = vld [vmem:[%s380 + $0x9] sm:$0xff]
      %v416 = vld [vmem:[%s380 + $0x19] sm:$0xff]
      %v417 = vld [vmem:[%s380 + $0x21] sm:$0xff]
      %v418 = vld [vmem:[%s380 + $0x31] sm:$0xff]
      %v419 = vld [vmem:[%s380 + $0x39] sm:$0xff]
      %v420 = vld [vmem:[%s380 + $0x49] sm:$0xff]
      %v421 = vld [vmem:[%s380 + $0x51] sm:$0xff]
      %v422 = vld [vmem:[%s380 + $0x61] sm:$0xff]
      %v423 = vld [vmem:[%s380 + $0x69] sm:$0xff]
      %v424 = vld [vmem:[%s380 + $0x79] sm:$0xff]
      %v425 = vld [vmem:[%s380 + $0x81] sm:$0xff]
      %v426 = vld [vmem:[%s380 + $0x91] sm:$0xff]
      %v427 = vld [vmem:[%s380 + $0x99] sm:$0xff]
      %v428 = vld [vmem:[%s380 + $0xa9] sm:$0xff]
      %v429 = vld [vmem:[%s380 + $0xb1] sm:$0xff]
      %v430 = vld [vmem:[%s380 + $0xc1] sm:$0xff]
      %v431 = vld [vmem:[%s380 + $0xc9] sm:$0xff]
      %v432 = vld [vmem:[%s380 + $0xd9] sm:$0xff]
      %v433 = vld [vmem:[%s380 + $0xe1] sm:$0xff]
      %v434 = vld [vmem:[%s380 + $0xf1] sm:$0xff]
      %v435 = vld [vmem:[%s380 + $0xf9] sm:$0xff]
      %v436 = vld [vmem:[%s380 + $0x109] sm:$0xff]
      %v437 = vld [vmem:[%s380 + $0x111] sm:$0xff]
      %v438 = vld [vmem:[%s380 + $0x121] sm:$0xff]
      %v439 = vld [vmem:[%s380 + $0x129] sm:$0xff]
      %v440 = vld [vmem:[%s380 + $0x139] sm:$0xff]
      %v441 = vld [vmem:[%s380 + $0x141] sm:$0xff]
      %v442 = vld [vmem:[%s380 + $0x151] sm:$0xff]
      %v443 = vld [vmem:[%s380 + $0x159] sm:$0xff]
      %v444 = vld [vmem:[%s380 + $0x169] sm:$0xff]
      %v445 = vld [vmem:[%s380 + $0x171] sm:$0xff]
      %s446 = scalar_lea.vmem %s1, 4
      %v447 = vld [vmem:[%s446] sm:$0xf]
      %v449 = vsel %vm225, %v414, 0
      %v452 = vsel %vm225, %v415, 0
      %v455 = vsel %vm225, %v416, 0
      %v458 = vsel %vm225, %v417, 0
      %v461 = vsel %vm225, %v418, 0
      %v464 = vsel %vm225, %v419, 0
      %v467 = vsel %vm225, %v420, 0
      %v470 = vsel %vm225, %v421, 0
      %v473 = vsel %vm225, %v422, 0
      %v476 = vsel %vm225, %v423, 0
      %v479 = vsel %vm225, %v424, 0
      %v482 = vsel %vm225, %v425, 0
      %v485 = vsel %vm225, %v426, 0
      %v488 = vsel %vm225, %v427, 0
      %v491 = vsel %vm225, %v428, 0
      %v494 = vsel %vm225, %v429, 0
      %v497 = vsel %vm225, %v430, 0
      %v500 = vsel %vm225, %v431, 0
      %v503 = vsel %vm225, %v432, 0
      %v506 = vsel %vm225, %v433, 0
      %v509 = vsel %vm225, %v434, 0
      %v512 = vsel %vm225, %v435, 0
      %v515 = vsel %vm225, %v436, 0
      %v518 = vsel %vm225, %v437, 0
      %v521 = vsel %vm225, %v438, 0
      %v524 = vsel %vm225, %v439, 0
      %v527 = vsel %vm225, %v440, 0
      %v530 = vsel %vm225, %v441, 0
      %v533 = vsel %vm225, %v442, 0
      %v536 = vsel %vm225, %v443, 0
      %v539 = vsel %vm225, %v444, 0
      %v542 = vsel %vm225, %v445, 0
      %vm544 = vcmask 1043456
      %v546 = vsel %vm544, %v447, 0
      %548 = vmatpush.msra.mxu0 0.0
      %549 = vmatpush.msra.mxu0 0.0
      %550 = vmatpush.msra.mxu0 0.0
      %551 = vmatpush.msra.mxu0 0.0
      %552 = vmatpush.msra.mxu0 0.0
      %553 = vmatpush.msra.mxu0 0.0
      %554 = vmatpush.msra.mxu0 0.0
      %555 = vmatpush.msra.mxu0 0.0
      %556 = vmatpush.msra.mxu0 0.0
      %557 = vmatpush.msra.mxu0 0.0
      %558 = vmatpush.msra.mxu0 0.0
      %559 = vmatpush.msra.mxu0 0.0
      %560 = vmatpush.msra.mxu0 0.0
      %561 = vmatpush.msra.mxu0 0.0
      %562 = vmatpush.msra.mxu0 0.0
      %563 = vmatpush.msra.mxu0 %v546
      %564 = vmatmul.f32.gmra.mxu0 %v449
      %v565 = vpop.f32.mrf.mxu0
      %v566 = vadd.f32 0.0, %v565
      %567 = vmatmul.f32.gmra.mxu0 %v452
      %v568 = vpop.f32.mrf.mxu0
      %v569 = vadd.f32 0.0, %v568
      %570 = vmatmul.f32.gmra.mxu0 %v455
      %v571 = vpop.f32.mrf.mxu0
      %v572 = vadd.f32 0.0, %v571
      %573 = vmatmul.f32.gmra.mxu0 %v458
      %v574 = vpop.f32.mrf.mxu0
      %v575 = vadd.f32 0.0, %v574
      %576 = vmatmul.f32.gmra.mxu0 %v461
      %v577 = vpop.f32.mrf.mxu0
      %v578 = vadd.f32 0.0, %v577
      %579 = vmatmul.f32.gmra.mxu0 %v464
      %v580 = vpop.f32.mrf.mxu0
      %v581 = vadd.f32 0.0, %v580
      %582 = vmatmul.f32.gmra.mxu0 %v467
      %v583 = vpop.f32.mrf.mxu0
      %v584 = vadd.f32 0.0, %v583
      %585 = vmatmul.f32.gmra.mxu0 %v470
      %v586 = vpop.f32.mrf.mxu0
      %v587 = vadd.f32 0.0, %v586
      %588 = vmatmul.f32.gmra.mxu0 %v473
      %v589 = vpop.f32.mrf.mxu0
      %v590 = vadd.f32 0.0, %v589
      %591 = vmatmul.f32.gmra.mxu0 %v476
      %v592 = vpop.f32.mrf.mxu0
      %v593 = vadd.f32 0.0, %v592
      %594 = vmatmul.f32.gmra.mxu0 %v479
      %v595 = vpop.f32.mrf.mxu0
      %v596 = vadd.f32 0.0, %v595
      %597 = vmatmul.f32.gmra.mxu0 %v482
      %v598 = vpop.f32.mrf.mxu0
      %v599 = vadd.f32 0.0, %v598
      %600 = vmatmul.f32.gmra.mxu0 %v485
      %v601 = vpop.f32.mrf.mxu0
      %v602 = vadd.f32 0.0, %v601
      %603 = vmatmul.f32.gmra.mxu0 %v488
      %v604 = vpop.f32.mrf.mxu0
      %v605 = vadd.f32 0.0, %v604
      %606 = vmatmul.f32.gmra.mxu0 %v491
      %v607 = vpop.f32.mrf.mxu0
      %v608 = vadd.f32 0.0, %v607
      %609 = vmatmul.f32.gmra.mxu0 %v494
      %v610 = vpop.f32.mrf.mxu0
      %v611 = vadd.f32 0.0, %v610
      %612 = vmatmul.f32.gmra.mxu0 %v497
      %v613 = vpop.f32.mrf.mxu0
      %v614 = vadd.f32 0.0, %v613
      %615 = vmatmul.f32.gmra.mxu0 %v500
      %v616 = vpop.f32.mrf.mxu0
      %v617 = vadd.f32 0.0, %v616
      %618 = vmatmul.f32.gmra.mxu0 %v503
      %v619 = vpop.f32.mrf.mxu0
      %v620 = vadd.f32 0.0, %v619
      %621 = vmatmul.f32.gmra.mxu0 %v506
      %v622 = vpop.f32.mrf.mxu0
      %v623 = vadd.f32 0.0, %v622
      %624 = vmatmul.f32.gmra.mxu0 %v509
      %v625 = vpop.f32.mrf.mxu0
      %v626 = vadd.f32 0.0, %v625
      %627 = vmatmul.f32.gmra.mxu0 %v512
      %v628 = vpop.f32.mrf.mxu0
      %v629 = vadd.f32 0.0, %v628
      %630 = vmatmul.f32.gmra.mxu0 %v515
      %v631 = vpop.f32.mrf.mxu0
      %v632 = vadd.f32 0.0, %v631
      %633 = vmatmul.f32.gmra.mxu0 %v518
      %v634 = vpop.f32.mrf.mxu0
      %v635 = vadd.f32 0.0, %v634
      %636 = vmatmul.f32.gmra.mxu0 %v521
      %v637 = vpop.f32.mrf.mxu0
      %v638 = vadd.f32 0.0, %v637
      %639 = vmatmul.f32.gmra.mxu0 %v524
      %v640 = vpop.f32.mrf.mxu0
      %v641 = vadd.f32 0.0, %v640
      %642 = vmatmul.f32.gmra.mxu0 %v527
      %v643 = vpop.f32.mrf.mxu0
      %v644 = vadd.f32 0.0, %v643
      %645 = vmatmul.f32.gmra.mxu0 %v530
      %v646 = vpop.f32.mrf.mxu0
      %v647 = vadd.f32 0.0, %v646
      %648 = vmatmul.f32.gmra.mxu0 %v533
      %v649 = vpop.f32.mrf.mxu0
      %v650 = vadd.f32 0.0, %v649
      %651 = vmatmul.f32.gmra.mxu0 %v536
      %v652 = vpop.f32.mrf.mxu0
      %v653 = vadd.f32 0.0, %v652
      %654 = vmatmul.f32.gmra.mxu0 %v539
      %v655 = vpop.f32.mrf.mxu0
      %v656 = vadd.f32 0.0, %v655
      %657 = vmatmul.f32.gmra.mxu0 %v542
      %v658 = vpop.f32.mrf.mxu0
      %v659 = vadd.f32 0.0, %v658
      %660 = vdwg.mxu0
      %v662 = vsel %vm225, %v381, 0
      %v665 = vsel %vm225, %v382, 0
      %v668 = vsel %vm225, %v383, 0
      %v671 = vsel %vm225, %v384, 0
      %v674 = vsel %vm225, %v385, 0
      %v677 = vsel %vm225, %v386, 0
      %v680 = vsel %vm225, %v387, 0
      %v683 = vsel %vm225, %v388, 0
      %v686 = vsel %vm225, %v389, 0
      %v689 = vsel %vm225, %v390, 0
      %v692 = vsel %vm225, %v391, 0
      %v695 = vsel %vm225, %v392, 0
      %v698 = vsel %vm225, %v393, 0
      %v701 = vsel %vm225, %v394, 0
      %v704 = vsel %vm225, %v395, 0
      %v707 = vsel %vm225, %v396, 0
      %v710 = vsel %vm225, %v397, 0
      %v713 = vsel %vm225, %v398, 0
      %v716 = vsel %vm225, %v399, 0
      %v719 = vsel %vm225, %v400, 0
      %v722 = vsel %vm225, %v401, 0
      %v725 = vsel %vm225, %v402, 0
      %v728 = vsel %vm225, %v403, 0
      %v731 = vsel %vm225, %v404, 0
      %v734 = vsel %vm225, %v405, 0
      %v737 = vsel %vm225, %v406, 0
      %v740 = vsel %vm225, %v407, 0
      %v743 = vsel %vm225, %v408, 0
      %v746 = vsel %vm225, %v409, 0
      %v749 = vsel %vm225, %v410, 0
      %v752 = vsel %vm225, %v411, 0
      %v755 = vsel %vm225, %v412, 0
      %v758 = vsel %vm544, %v413, 0
      %760 = vmatpush.msra.mxu0 0.0
      %761 = vmatpush.msra.mxu0 0.0
      %762 = vmatpush.msra.mxu0 0.0
      %763 = vmatpush.msra.mxu0 0.0
      %764 = vmatpush.msra.mxu0 0.0
      %765 = vmatpush.msra.mxu0 0.0
      %766 = vmatpush.msra.mxu0 0.0
      %767 = vmatpush.msra.mxu0 0.0
      %768 = vmatpush.msra.mxu0 0.0
      %769 = vmatpush.msra.mxu0 0.0
      %770 = vmatpush.msra.mxu0 0.0
      %771 = vmatpush.msra.mxu0 0.0
      %772 = vmatpush.msra.mxu0 0.0
      %773 = vmatpush.msra.mxu0 0.0
      %774 = vmatpush.msra.mxu0 0.0
      %775 = vmatpush.msra.mxu0 %v758
      %776 = vmatmul.f32.gmra.mxu0 %v662
      %v777 = vpop.f32.mrf.mxu0
      %v778 = vadd.f32 %v566, %v777
      %779 = vmatmul.f32.gmra.mxu0 %v665
      %v780 = vpop.f32.mrf.mxu0
      %v781 = vadd.f32 %v569, %v780
      %782 = vmatmul.f32.gmra.mxu0 %v668
      %v783 = vpop.f32.mrf.mxu0
      %v784 = vadd.f32 %v572, %v783
      %785 = vmatmul.f32.gmra.mxu0 %v671
      %v786 = vpop.f32.mrf.mxu0
      %v787 = vadd.f32 %v575, %v786
      %788 = vmatmul.f32.gmra.mxu0 %v674
      %v789 = vpop.f32.mrf.mxu0
      %v790 = vadd.f32 %v578, %v789
      %791 = vmatmul.f32.gmra.mxu0 %v677
      %v792 = vpop.f32.mrf.mxu0
      %v793 = vadd.f32 %v581, %v792
      %794 = vmatmul.f32.gmra.mxu0 %v680
      %v795 = vpop.f32.mrf.mxu0
      %v796 = vadd.f32 %v584, %v795
      %797 = vmatmul.f32.gmra.mxu0 %v683
      %v798 = vpop.f32.mrf.mxu0
      %v799 = vadd.f32 %v587, %v798
      %800 = vmatmul.f32.gmra.mxu0 %v686
      %v801 = vpop.f32.mrf.mxu0
      %v802 = vadd.f32 %v590, %v801
      %803 = vmatmul.f32.gmra.mxu0 %v689
      %v804 = vpop.f32.mrf.mxu0
      %v805 = vadd.f32 %v593, %v804
      %806 = vmatmul.f32.gmra.mxu0 %v692
      %v807 = vpop.f32.mrf.mxu0
      %v808 = vadd.f32 %v596, %v807
      %809 = vmatmul.f32.gmra.mxu0 %v695
      %v810 = vpop.f32.mrf.mxu0
      %v811 = vadd.f32 %v599, %v810
      %812 = vmatmul.f32.gmra.mxu0 %v698
      %v813 = vpop.f32.mrf.mxu0
      %v814 = vadd.f32 %v602, %v813
      %815 = vmatmul.f32.gmra.mxu0 %v701
      %v816 = vpop.f32.mrf.mxu0
      %v817 = vadd.f32 %v605, %v816
      %818 = vmatmul.f32.gmra.mxu0 %v704
      %v819 = vpop.f32.mrf.mxu0
      %v820 = vadd.f32 %v608, %v819
      %821 = vmatmul.f32.gmra.mxu0 %v707
      %v822 = vpop.f32.mrf.mxu0
      %v823 = vadd.f32 %v611, %v822
      %824 = vmatmul.f32.gmra.mxu0 %v710
      %v825 = vpop.f32.mrf.mxu0
      %v826 = vadd.f32 %v614, %v825
      %827 = vmatmul.f32.gmra.mxu0 %v713
      %v828 = vpop.f32.mrf.mxu0
      %v829 = vadd.f32 %v617, %v828
      %830 = vmatmul.f32.gmra.mxu0 %v716
      %v831 = vpop.f32.mrf.mxu0
      %v832 = vadd.f32 %v620, %v831
      %833 = vmatmul.f32.gmra.mxu0 %v719
      %v834 = vpop.f32.mrf.mxu0
      %v835 = vadd.f32 %v623, %v834
      %836 = vmatmul.f32.gmra.mxu0 %v722
      %v837 = vpop.f32.mrf.mxu0
      %v838 = vadd.f32 %v626, %v837
      %839 = vmatmul.f32.gmra.mxu0 %v725
      %v840 = vpop.f32.mrf.mxu0
      %v841 = vadd.f32 %v629, %v840
      %842 = vmatmul.f32.gmra.mxu0 %v728
      %v843 = vpop.f32.mrf.mxu0
      %v844 = vadd.f32 %v632, %v843
      %845 = vmatmul.f32.gmra.mxu0 %v731
      %v846 = vpop.f32.mrf.mxu0
      %v847 = vadd.f32 %v635, %v846
      %848 = vmatmul.f32.gmra.mxu0 %v734
      %v849 = vpop.f32.mrf.mxu0
      %v850 = vadd.f32 %v638, %v849
      %851 = vmatmul.f32.gmra.mxu0 %v737
      %v852 = vpop.f32.mrf.mxu0
      %v853 = vadd.f32 %v641, %v852
      %854 = vmatmul.f32.gmra.mxu0 %v740
      %v855 = vpop.f32.mrf.mxu0
      %v856 = vadd.f32 %v644, %v855
      %857 = vmatmul.f32.gmra.mxu0 %v743
      %v858 = vpop.f32.mrf.mxu0
      %v859 = vadd.f32 %v647, %v858
      %860 = vmatmul.f32.gmra.mxu0 %v746
      %v861 = vpop.f32.mrf.mxu0
      %v862 = vadd.f32 %v650, %v861
      %863 = vmatmul.f32.gmra.mxu0 %v749
      %v864 = vpop.f32.mrf.mxu0
      %v865 = vadd.f32 %v653, %v864
      %866 = vmatmul.f32.gmra.mxu0 %v752
      %v867 = vpop.f32.mrf.mxu0
      %v868 = vadd.f32 %v656, %v867
      %869 = vmatmul.f32.gmra.mxu0 %v755
      %v870 = vpop.f32.mrf.mxu0
      %v871 = vadd.f32 %v659, %v870
      %872 = vdwg.mxu0
      %v873 = vld [vmem:[%s380 + $0x2] sm:$0xff]
      %v874 = vld [vmem:[%s380 + $0xa] sm:$0xff]
      %v875 = vld [vmem:[%s380 + $0x1a] sm:$0xff]
      %v876 = vld [vmem:[%s380 + $0x22] sm:$0xff]
      %v877 = vld [vmem:[%s380 + $0x32] sm:$0xff]
      %v878 = vld [vmem:[%s380 + $0x3a] sm:$0xff]
      %v879 = vld [vmem:[%s380 + $0x4a] sm:$0xff]
      %v880 = vld [vmem:[%s380 + $0x52] sm:$0xff]
      %v881 = vld [vmem:[%s380 + $0x62] sm:$0xff]
      %v882 = vld [vmem:[%s380 + $0x6a] sm:$0xff]
      %v883 = vld [vmem:[%s380 + $0x7a] sm:$0xff]
      %v884 = vld [vmem:[%s380 + $0x82] sm:$0xff]
      %v885 = vld [vmem:[%s380 + $0x92] sm:$0xff]
      %v886 = vld [vmem:[%s380 + $0x9a] sm:$0xff]
      %v887 = vld [vmem:[%s380 + $0xaa] sm:$0xff]
      %v888 = vld [vmem:[%s380 + $0xb2] sm:$0xff]
      %v889 = vld [vmem:[%s380 + $0xc2] sm:$0xff]
      %v890 = vld [vmem:[%s380 + $0xca] sm:$0xff]
      %v891 = vld [vmem:[%s380 + $0xda] sm:$0xff]
      %v892 = vld [vmem:[%s380 + $0xe2] sm:$0xff]
      %v893 = vld [vmem:[%s380 + $0xf2] sm:$0xff]
      %v894 = vld [vmem:[%s380 + $0xfa] sm:$0xff]
      %v895 = vld [vmem:[%s380 + $0x10a] sm:$0xff]
      %v896 = vld [vmem:[%s380 + $0x112] sm:$0xff]
      %v897 = vld [vmem:[%s380 + $0x122] sm:$0xff]
      %v898 = vld [vmem:[%s380 + $0x12a] sm:$0xff]
      %v899 = vld [vmem:[%s380 + $0x13a] sm:$0xff]
      %v900 = vld [vmem:[%s380 + $0x142] sm:$0xff]
      %v901 = vld [vmem:[%s380 + $0x152] sm:$0xff]
      %v902 = vld [vmem:[%s380 + $0x15a] sm:$0xff]
      %v903 = vld [vmem:[%s380 + $0x16a] sm:$0xff]
      %v904 = vld [vmem:[%s380 + $0x172] sm:$0xff]
      %s905 = scalar_lea.vmem %s1, 8
      %v906 = vld [vmem:[%s905] sm:$0xf]
      %v908 = vsel %vm225, %v873, 0
      %v911 = vsel %vm225, %v874, 0
      %v914 = vsel %vm225, %v875, 0
      %v917 = vsel %vm225, %v876, 0
      %v920 = vsel %vm225, %v877, 0
      %v923 = vsel %vm225, %v878, 0
      %v926 = vsel %vm225, %v879, 0
      %v929 = vsel %vm225, %v880, 0
      %v932 = vsel %vm225, %v881, 0
      %v935 = vsel %vm225, %v882, 0
      %v938 = vsel %vm225, %v883, 0
      %v941 = vsel %vm225, %v884, 0
      %v944 = vsel %vm225, %v885, 0
      %v947 = vsel %vm225, %v886, 0
      %v950 = vsel %vm225, %v887, 0
      %v953 = vsel %vm225, %v888, 0
      %v956 = vsel %vm225, %v889, 0
      %v959 = vsel %vm225, %v890, 0
      %v962 = vsel %vm225, %v891, 0
      %v965 = vsel %vm225, %v892, 0
      %v968 = vsel %vm225, %v893, 0
      %v971 = vsel %vm225, %v894, 0
      %v974 = vsel %vm225, %v895, 0
      %v977 = vsel %vm225, %v896, 0
      %v980 = vsel %vm225, %v897, 0
      %v983 = vsel %vm225, %v898, 0
      %v986 = vsel %vm225, %v899, 0
      %v989 = vsel %vm225, %v900, 0
      %v992 = vsel %vm225, %v901, 0
      %v995 = vsel %vm225, %v902, 0
      %v998 = vsel %vm225, %v903, 0
      %v1001 = vsel %vm225, %v904, 0
      %v1004 = vsel %vm544, %v906, 0
      %1006 = vmatpush.msra.mxu0 0.0
      %1007 = vmatpush.msra.mxu0 0.0
      %1008 = vmatpush.msra.mxu0 0.0
      %1009 = vmatpush.msra.mxu0 0.0
      %1010 = vmatpush.msra.mxu0 0.0
      %1011 = vmatpush.msra.mxu0 0.0
      %1012 = vmatpush.msra.mxu0 0.0
      %1013 = vmatpush.msra.mxu0 0.0
      %1014 = vmatpush.msra.mxu0 0.0
      %1015 = vmatpush.msra.mxu0 0.0
      %1016 = vmatpush.msra.mxu0 0.0
      %1017 = vmatpush.msra.mxu0 0.0
      %1018 = vmatpush.msra.mxu0 0.0
      %1019 = vmatpush.msra.mxu0 0.0
      %1020 = vmatpush.msra.mxu0 0.0
      %1021 = vmatpush.msra.mxu0 %v1004
      %1022 = vmatmul.f32.gmra.mxu0 %v908
      %v1023 = vpop.f32.mrf.mxu0
      %v1024 = vadd.f32 0.0, %v1023
      %1025 = vmatmul.f32.gmra.mxu0 %v911
      %v1026 = vpop.f32.mrf.mxu0
      %v1027 = vadd.f32 0.0, %v1026
      %1028 = vmatmul.f32.gmra.mxu0 %v914
      %v1029 = vpop.f32.mrf.mxu0
      %v1030 = vadd.f32 0.0, %v1029
      %1031 = vmatmul.f32.gmra.mxu0 %v917
      %v1032 = vpop.f32.mrf.mxu0
      %v1033 = vadd.f32 0.0, %v1032
      %1034 = vmatmul.f32.gmra.mxu0 %v920
      %v1035 = vpop.f32.mrf.mxu0
      %v1036 = vadd.f32 0.0, %v1035
      %1037 = vmatmul.f32.gmra.mxu0 %v923
      %v1038 = vpop.f32.mrf.mxu0
      %v1039 = vadd.f32 0.0, %v1038
      %1040 = vmatmul.f32.gmra.mxu0 %v926
      %v1041 = vpop.f32.mrf.mxu0
      %v1042 = vadd.f32 0.0, %v1041
      %1043 = vmatmul.f32.gmra.mxu0 %v929
      %v1044 = vpop.f32.mrf.mxu0
      %v1045 = vadd.f32 0.0, %v1044
      %1046 = vmatmul.f32.gmra.mxu0 %v932
      %v1047 = vpop.f32.mrf.mxu0
      %v1048 = vadd.f32 0.0, %v1047
      %1049 = vmatmul.f32.gmra.mxu0 %v935
      %v1050 = vpop.f32.mrf.mxu0
      %v1051 = vadd.f32 0.0, %v1050
      %1052 = vmatmul.f32.gmra.mxu0 %v938
      %v1053 = vpop.f32.mrf.mxu0
      %v1054 = vadd.f32 0.0, %v1053
      %1055 = vmatmul.f32.gmra.mxu0 %v941
      %v1056 = vpop.f32.mrf.mxu0
      %v1057 = vadd.f32 0.0, %v1056
      %1058 = vmatmul.f32.gmra.mxu0 %v944
      %v1059 = vpop.f32.mrf.mxu0
      %v1060 = vadd.f32 0.0, %v1059
      %1061 = vmatmul.f32.gmra.mxu0 %v947
      %v1062 = vpop.f32.mrf.mxu0
      %v1063 = vadd.f32 0.0, %v1062
      %1064 = vmatmul.f32.gmra.mxu0 %v950
      %v1065 = vpop.f32.mrf.mxu0
      %v1066 = vadd.f32 0.0, %v1065
      %1067 = vmatmul.f32.gmra.mxu0 %v953
      %v1068 = vpop.f32.mrf.mxu0
      %v1069 = vadd.f32 0.0, %v1068
      %1070 = vmatmul.f32.gmra.mxu0 %v956
      %v1071 = vpop.f32.mrf.mxu0
      %v1072 = vadd.f32 0.0, %v1071
      %1073 = vmatmul.f32.gmra.mxu0 %v959
      %v1074 = vpop.f32.mrf.mxu0
      %v1075 = vadd.f32 0.0, %v1074
      %1076 = vmatmul.f32.gmra.mxu0 %v962
      %v1077 = vpop.f32.mrf.mxu0
      %v1078 = vadd.f32 0.0, %v1077
      %1079 = vmatmul.f32.gmra.mxu0 %v965
      %v1080 = vpop.f32.mrf.mxu0
      %v1081 = vadd.f32 0.0, %v1080
      %1082 = vmatmul.f32.gmra.mxu0 %v968
      %v1083 = vpop.f32.mrf.mxu0
      %v1084 = vadd.f32 0.0, %v1083
      %1085 = vmatmul.f32.gmra.mxu0 %v971
      %v1086 = vpop.f32.mrf.mxu0
      %v1087 = vadd.f32 0.0, %v1086
      %1088 = vmatmul.f32.gmra.mxu0 %v974
      %v1089 = vpop.f32.mrf.mxu0
      %v1090 = vadd.f32 0.0, %v1089
      %1091 = vmatmul.f32.gmra.mxu0 %v977
      %v1092 = vpop.f32.mrf.mxu0
      %v1093 = vadd.f32 0.0, %v1092
      %1094 = vmatmul.f32.gmra.mxu0 %v980
      %v1095 = vpop.f32.mrf.mxu0
      %v1096 = vadd.f32 0.0, %v1095
      %1097 = vmatmul.f32.gmra.mxu0 %v983
      %v1098 = vpop.f32.mrf.mxu0
      %v1099 = vadd.f32 0.0, %v1098
      %1100 = vmatmul.f32.gmra.mxu0 %v986
      %v1101 = vpop.f32.mrf.mxu0
      %v1102 = vadd.f32 0.0, %v1101
      %1103 = vmatmul.f32.gmra.mxu0 %v989
      %v1104 = vpop.f32.mrf.mxu0
      %v1105 = vadd.f32 0.0, %v1104
      %1106 = vmatmul.f32.gmra.mxu0 %v992
      %v1107 = vpop.f32.mrf.mxu0
      %v1108 = vadd.f32 0.0, %v1107
      %1109 = vmatmul.f32.gmra.mxu0 %v995
      %v1110 = vpop.f32.mrf.mxu0
      %v1111 = vadd.f32 0.0, %v1110
      %1112 = vmatmul.f32.gmra.mxu0 %v998
      %v1113 = vpop.f32.mrf.mxu0
      %v1114 = vadd.f32 0.0, %v1113
      %1115 = vmatmul.f32.gmra.mxu0 %v1001
      %v1116 = vpop.f32.mrf.mxu0
      %v1117 = vadd.f32 0.0, %v1116
      %1118 = vdwg.mxu0
      %v1119 = vadd.f32 %v778, %v1024
      %v1120 = vadd.f32 %v781, %v1027
      %v1121 = vadd.f32 %v784, %v1030
      %v1122 = vadd.f32 %v787, %v1033
      %v1123 = vadd.f32 %v790, %v1036
      %v1124 = vadd.f32 %v793, %v1039
      %v1125 = vadd.f32 %v796, %v1042
      %v1126 = vadd.f32 %v799, %v1045
      %v1127 = vadd.f32 %v802, %v1048
      %v1128 = vadd.f32 %v805, %v1051
      %v1129 = vadd.f32 %v808, %v1054
      %v1130 = vadd.f32 %v811, %v1057
      %v1131 = vadd.f32 %v814, %v1060
      %v1132 = vadd.f32 %v817, %v1063
      %v1133 = vadd.f32 %v820, %v1066
      %v1134 = vadd.f32 %v823, %v1069
      %v1135 = vadd.f32 %v826, %v1072
      %v1136 = vadd.f32 %v829, %v1075
      %v1137 = vadd.f32 %v832, %v1078
      %v1138 = vadd.f32 %v835, %v1081
      %v1139 = vadd.f32 %v838, %v1084
      %v1140 = vadd.f32 %v841, %v1087
      %v1141 = vadd.f32 %v844, %v1090
      %v1142 = vadd.f32 %v847, %v1093
      %v1143 = vadd.f32 %v850, %v1096
      %v1144 = vadd.f32 %v853, %v1099
      %v1145 = vadd.f32 %v856, %v1102
      %v1146 = vadd.f32 %v859, %v1105
      %v1147 = vadd.f32 %v862, %v1108
      %v1148 = vadd.f32 %v865, %v1111
      %v1149 = vadd.f32 %v868, %v1114
      %v1150 = vadd.f32 %v871, %v1117
      %s1151 = sadd.s32 0, 1
      %s1152 = smul.u32 %s1151, 24
      %s1153 = scalar_lea.vmem [#allocation2], %s1152
      %v1154 = vld [vmem:[%s1153] sm:$0xff]
      %v1155 = vld [vmem:[%s1153 + $0x8] sm:$0xff]
      %v1156 = vld [vmem:[%s1153 + $0x18] sm:$0xff]
      %v1157 = vld [vmem:[%s1153 + $0x20] sm:$0xff]
      %v1158 = vld [vmem:[%s1153 + $0x30] sm:$0xff]
      %v1159 = vld [vmem:[%s1153 + $0x38] sm:$0xff]
      %v1160 = vld [vmem:[%s1153 + $0x48] sm:$0xff]
      %v1161 = vld [vmem:[%s1153 + $0x50] sm:$0xff]
      %v1162 = vld [vmem:[%s1153 + $0x60] sm:$0xff]
      %v1163 = vld [vmem:[%s1153 + $0x68] sm:$0xff]
      %v1164 = vld [vmem:[%s1153 + $0x78] sm:$0xff]
      %v1165 = vld [vmem:[%s1153 + $0x80] sm:$0xff]
      %v1166 = vld [vmem:[%s1153 + $0x90] sm:$0xff]
      %v1167 = vld [vmem:[%s1153 + $0x98] sm:$0xff]
      %v1168 = vld [vmem:[%s1153 + $0xa8] sm:$0xff]
      %v1169 = vld [vmem:[%s1153 + $0xb0] sm:$0xff]
      %v1170 = vld [vmem:[%s1153 + $0xc0] sm:$0xff]
      %v1171 = vld [vmem:[%s1153 + $0xc8] sm:$0xff]
      %v1172 = vld [vmem:[%s1153 + $0xd8] sm:$0xff]
      %v1173 = vld [vmem:[%s1153 + $0xe0] sm:$0xff]
      %v1174 = vld [vmem:[%s1153 + $0xf0] sm:$0xff]
      %v1175 = vld [vmem:[%s1153 + $0xf8] sm:$0xff]
      %v1176 = vld [vmem:[%s1153 + $0x108] sm:$0xff]
      %v1177 = vld [vmem:[%s1153 + $0x110] sm:$0xff]
      %v1178 = vld [vmem:[%s1153 + $0x120] sm:$0xff]
      %v1179 = vld [vmem:[%s1153 + $0x128] sm:$0xff]
      %v1180 = vld [vmem:[%s1153 + $0x138] sm:$0xff]
      %v1181 = vld [vmem:[%s1153 + $0x140] sm:$0xff]
      %v1182 = vld [vmem:[%s1153 + $0x150] sm:$0xff]
      %v1183 = vld [vmem:[%s1153 + $0x158] sm:$0xff]
      %v1184 = vld [vmem:[%s1153 + $0x168] sm:$0xff]
      %v1185 = vld [vmem:[%s1153 + $0x170] sm:$0xff]
      %s1186 = scalar_lea.vmem %s1, 12
      %v1187 = vld [vmem:[%s1186] sm:$0xf]
      %v1189 = vsel %vm225, %v1154, 0
      %v1192 = vsel %vm225, %v1155, 0
      %v1195 = vsel %vm225, %v1156, 0
      %v1198 = vsel %vm225, %v1157, 0
      %v1201 = vsel %vm225, %v1158, 0
      %v1204 = vsel %vm225, %v1159, 0
      %v1207 = vsel %vm225, %v1160, 0
      %v1210 = vsel %vm225, %v1161, 0
      %v1213 = vsel %vm225, %v1162, 0
      %v1216 = vsel %vm225, %v1163, 0
      %v1219 = vsel %vm225, %v1164, 0
      %v1222 = vsel %vm225, %v1165, 0
      %v1225 = vsel %vm225, %v1166, 0
      %v1228 = vsel %vm225, %v1167, 0
      %v1231 = vsel %vm225, %v1168, 0
      %v1234 = vsel %vm225, %v1169, 0
      %v1237 = vsel %vm225, %v1170, 0
      %v1240 = vsel %vm225, %v1171, 0
      %v1243 = vsel %vm225, %v1172, 0
      %v1246 = vsel %vm225, %v1173, 0
      %v1249 = vsel %vm225, %v1174, 0
      %v1252 = vsel %vm225, %v1175, 0
      %v1255 = vsel %vm225, %v1176, 0
      %v1258 = vsel %vm225, %v1177, 0
      %v1261 = vsel %vm225, %v1178, 0
      %v1264 = vsel %vm225, %v1179, 0
      %v1267 = vsel %vm225, %v1180, 0
      %v1270 = vsel %vm225, %v1181, 0
      %v1273 = vsel %vm225, %v1182, 0
      %v1276 = vsel %vm225, %v1183, 0
      %v1279 = vsel %vm225, %v1184, 0
      %v1282 = vsel %vm225, %v1185, 0
      %v1285 = vsel %vm544, %v1187, 0
      %1287 = vmatpush.msra.mxu0 0.0
      %1288 = vmatpush.msra.mxu0 0.0
      %1289 = vmatpush.msra.mxu0 0.0
      %1290 = vmatpush.msra.mxu0 0.0
      %1291 = vmatpush.msra.mxu0 0.0
      %1292 = vmatpush.msra.mxu0 0.0
      %1293 = vmatpush.msra.mxu0 0.0
      %1294 = vmatpush.msra.mxu0 0.0
      %1295 = vmatpush.msra.mxu0 0.0
      %1296 = vmatpush.msra.mxu0 0.0
      %1297 = vmatpush.msra.mxu0 0.0
      %1298 = vmatpush.msra.mxu0 0.0
      %1299 = vmatpush.msra.mxu0 0.0
      %1300 = vmatpush.msra.mxu0 0.0
      %1301 = vmatpush.msra.mxu0 0.0
      %1302 = vmatpush.msra.mxu0 %v1285
      %1303 = vmatmul.f32.gmra.mxu0 %v1189
      %v1304 = vpop.f32.mrf.mxu0
      %v1305 = vadd.f32 0.0, %v1304
      %1306 = vmatmul.f32.gmra.mxu0 %v1192
      %v1307 = vpop.f32.mrf.mxu0
      %v1308 = vadd.f32 0.0, %v1307
      %1309 = vmatmul.f32.gmra.mxu0 %v1195
      %v1310 = vpop.f32.mrf.mxu0
      %v1311 = vadd.f32 0.0, %v1310
      %1312 = vmatmul.f32.gmra.mxu0 %v1198
      %v1313 = vpop.f32.mrf.mxu0
      %v1314 = vadd.f32 0.0, %v1313
      %1315 = vmatmul.f32.gmra.mxu0 %v1201
      %v1316 = vpop.f32.mrf.mxu0
      %v1317 = vadd.f32 0.0, %v1316
      %1318 = vmatmul.f32.gmra.mxu0 %v1204
      %v1319 = vpop.f32.mrf.mxu0
      %v1320 = vadd.f32 0.0, %v1319
      %1321 = vmatmul.f32.gmra.mxu0 %v1207
      %v1322 = vpop.f32.mrf.mxu0
      %v1323 = vadd.f32 0.0, %v1322
      %1324 = vmatmul.f32.gmra.mxu0 %v1210
      %v1325 = vpop.f32.mrf.mxu0
      %v1326 = vadd.f32 0.0, %v1325
      %1327 = vmatmul.f32.gmra.mxu0 %v1213
      %v1328 = vpop.f32.mrf.mxu0
      %v1329 = vadd.f32 0.0, %v1328
      %1330 = vmatmul.f32.gmra.mxu0 %v1216
      %v1331 = vpop.f32.mrf.mxu0
      %v1332 = vadd.f32 0.0, %v1331
      %1333 = vmatmul.f32.gmra.mxu0 %v1219
      %v1334 = vpop.f32.mrf.mxu0
      %v1335 = vadd.f32 0.0, %v1334
      %1336 = vmatmul.f32.gmra.mxu0 %v1222
      %v1337 = vpop.f32.mrf.mxu0
      %v1338 = vadd.f32 0.0, %v1337
      %1339 = vmatmul.f32.gmra.mxu0 %v1225
      %v1340 = vpop.f32.mrf.mxu0
      %v1341 = vadd.f32 0.0, %v1340
      %1342 = vmatmul.f32.gmra.mxu0 %v1228
      %v1343 = vpop.f32.mrf.mxu0
      %v1344 = vadd.f32 0.0, %v1343
      %1345 = vmatmul.f32.gmra.mxu0 %v1231
      %v1346 = vpop.f32.mrf.mxu0
      %v1347 = vadd.f32 0.0, %v1346
      %1348 = vmatmul.f32.gmra.mxu0 %v1234
      %v1349 = vpop.f32.mrf.mxu0
      %v1350 = vadd.f32 0.0, %v1349
      %1351 = vmatmul.f32.gmra.mxu0 %v1237
      %v1352 = vpop.f32.mrf.mxu0
      %v1353 = vadd.f32 0.0, %v1352
      %1354 = vmatmul.f32.gmra.mxu0 %v1240
      %v1355 = vpop.f32.mrf.mxu0
      %v1356 = vadd.f32 0.0, %v1355
      %1357 = vmatmul.f32.gmra.mxu0 %v1243
      %v1358 = vpop.f32.mrf.mxu0
      %v1359 = vadd.f32 0.0, %v1358
      %1360 = vmatmul.f32.gmra.mxu0 %v1246
      %v1361 = vpop.f32.mrf.mxu0
      %v1362 = vadd.f32 0.0, %v1361
      %1363 = vmatmul.f32.gmra.mxu0 %v1249
      %v1364 = vpop.f32.mrf.mxu0
      %v1365 = vadd.f32 0.0, %v1364
      %1366 = vmatmul.f32.gmra.mxu0 %v1252
      %v1367 = vpop.f32.mrf.mxu0
      %v1368 = vadd.f32 0.0, %v1367
      %1369 = vmatmul.f32.gmra.mxu0 %v1255
      %v1370 = vpop.f32.mrf.mxu0
      %v1371 = vadd.f32 0.0, %v1370
      %1372 = vmatmul.f32.gmra.mxu0 %v1258
      %v1373 = vpop.f32.mrf.mxu0
      %v1374 = vadd.f32 0.0, %v1373
      %1375 = vmatmul.f32.gmra.mxu0 %v1261
      %v1376 = vpop.f32.mrf.mxu0
      %v1377 = vadd.f32 0.0, %v1376
      %1378 = vmatmul.f32.gmra.mxu0 %v1264
      %v1379 = vpop.f32.mrf.mxu0
      %v1380 = vadd.f32 0.0, %v1379
      %1381 = vmatmul.f32.gmra.mxu0 %v1267
      %v1382 = vpop.f32.mrf.mxu0
      %v1383 = vadd.f32 0.0, %v1382
      %1384 = vmatmul.f32.gmra.mxu0 %v1270
      %v1385 = vpop.f32.mrf.mxu0
      %v1386 = vadd.f32 0.0, %v1385
      %1387 = vmatmul.f32.gmra.mxu0 %v1273
      %v1388 = vpop.f32.mrf.mxu0
      %v1389 = vadd.f32 0.0, %v1388
      %1390 = vmatmul.f32.gmra.mxu0 %v1276
      %v1391 = vpop.f32.mrf.mxu0
      %v1392 = vadd.f32 0.0, %v1391
      %1393 = vmatmul.f32.gmra.mxu0 %v1279
      %v1394 = vpop.f32.mrf.mxu0
      %v1395 = vadd.f32 0.0, %v1394
      %1396 = vmatmul.f32.gmra.mxu0 %v1282
      %v1397 = vpop.f32.mrf.mxu0
      %v1398 = vadd.f32 0.0, %v1397
      %1399 = vdwg.mxu0
      %v1400 = vadd.f32 %v1119, %v1305
      %v1401 = vadd.f32 %v1120, %v1308
      %v1402 = vadd.f32 %v1121, %v1311
      %v1403 = vadd.f32 %v1122, %v1314
      %v1404 = vadd.f32 %v1123, %v1317
      %v1405 = vadd.f32 %v1124, %v1320
      %v1406 = vadd.f32 %v1125, %v1323
      %v1407 = vadd.f32 %v1126, %v1326
      %v1408 = vadd.f32 %v1127, %v1329
      %v1409 = vadd.f32 %v1128, %v1332
      %v1410 = vadd.f32 %v1129, %v1335
      %v1411 = vadd.f32 %v1130, %v1338
      %v1412 = vadd.f32 %v1131, %v1341
      %v1413 = vadd.f32 %v1132, %v1344
      %v1414 = vadd.f32 %v1133, %v1347
      %v1415 = vadd.f32 %v1134, %v1350
      %v1416 = vadd.f32 %v1135, %v1353
      %v1417 = vadd.f32 %v1136, %v1356
      %v1418 = vadd.f32 %v1137, %v1359
      %v1419 = vadd.f32 %v1138, %v1362
      %v1420 = vadd.f32 %v1139, %v1365
      %v1421 = vadd.f32 %v1140, %v1368
      %v1422 = vadd.f32 %v1141, %v1371
      %v1423 = vadd.f32 %v1142, %v1374
      %v1424 = vadd.f32 %v1143, %v1377
      %v1425 = vadd.f32 %v1144, %v1380
      %v1426 = vadd.f32 %v1145, %v1383
      %v1427 = vadd.f32 %v1146, %v1386
      %v1428 = vadd.f32 %v1147, %v1389
      %v1429 = vadd.f32 %v1148, %v1392
      %v1430 = vadd.f32 %v1149, %v1395
      %v1431 = vadd.f32 %v1150, %v1398
      %v1432 = vld [vmem:[%s1153 + $0x1] sm:$0xff]
      %v1433 = vld [vmem:[%s1153 + $0x9] sm:$0xff]
      %v1434 = vld [vmem:[%s1153 + $0x19] sm:$0xff]
      %v1435 = vld [vmem:[%s1153 + $0x21] sm:$0xff]
      %v1436 = vld [vmem:[%s1153 + $0x31] sm:$0xff]
      %v1437 = vld [vmem:[%s1153 + $0x39] sm:$0xff]
      %v1438 = vld [vmem:[%s1153 + $0x49] sm:$0xff]
      %v1439 = vld [vmem:[%s1153 + $0x51] sm:$0xff]
      %v1440 = vld [vmem:[%s1153 + $0x61] sm:$0xff]
      %v1441 = vld [vmem:[%s1153 + $0x69] sm:$0xff]
      %v1442 = vld [vmem:[%s1153 + $0x79] sm:$0xff]
      %v1443 = vld [vmem:[%s1153 + $0x81] sm:$0xff]
      %v1444 = vld [vmem:[%s1153 + $0x91] sm:$0xff]
      %v1445 = vld [vmem:[%s1153 + $0x99] sm:$0xff]
      %v1446 = vld [vmem:[%s1153 + $0xa9] sm:$0xff]
      %v1447 = vld [vmem:[%s1153 + $0xb1] sm:$0xff]
      %v1448 = vld [vmem:[%s1153 + $0xc1] sm:$0xff]
      %v1449 = vld [vmem:[%s1153 + $0xc9] sm:$0xff]
      %v1450 = vld [vmem:[%s1153 + $0xd9] sm:$0xff]
      %v1451 = vld [vmem:[%s1153 + $0xe1] sm:$0xff]
      %v1452 = vld [vmem:[%s1153 + $0xf1] sm:$0xff]
      %v1453 = vld [vmem:[%s1153 + $0xf9] sm:$0xff]
      %v1454 = vld [vmem:[%s1153 + $0x109] sm:$0xff]
      %v1455 = vld [vmem:[%s1153 + $0x111] sm:$0xff]
      %v1456 = vld [vmem:[%s1153 + $0x121] sm:$0xff]
      %v1457 = vld [vmem:[%s1153 + $0x129] sm:$0xff]
      %v1458 = vld [vmem:[%s1153 + $0x139] sm:$0xff]
      %v1459 = vld [vmem:[%s1153 + $0x141] sm:$0xff]
      %v1460 = vld [vmem:[%s1153 + $0x151] sm:$0xff]
      %v1461 = vld [vmem:[%s1153 + $0x159] sm:$0xff]
      %v1462 = vld [vmem:[%s1153 + $0x169] sm:$0xff]
      %v1463 = vld [vmem:[%s1153 + $0x171] sm:$0xff]
      %s1464 = scalar_lea.vmem %s1, 16
      %v1465 = vld [vmem:[%s1464] sm:$0xf]
      %v1467 = vsel %vm225, %v1432, 0
      %v1470 = vsel %vm225, %v1433, 0
      %v1473 = vsel %vm225, %v1434, 0
      %v1476 = vsel %vm225, %v1435, 0
      %v1479 = vsel %vm225, %v1436, 0
      %v1482 = vsel %vm225, %v1437, 0
      %v1485 = vsel %vm225, %v1438, 0
      %v1488 = vsel %vm225, %v1439, 0
      %v1491 = vsel %vm225, %v1440, 0
      %v1494 = vsel %vm225, %v1441, 0
      %v1497 = vsel %vm225, %v1442, 0
      %v1500 = vsel %vm225, %v1443, 0
      %v1503 = vsel %vm225, %v1444, 0
      %v1506 = vsel %vm225, %v1445, 0
      %v1509 = vsel %vm225, %v1446, 0
      %v1512 = vsel %vm225, %v1447, 0
      %v1515 = vsel %vm225, %v1448, 0
      %v1518 = vsel %vm225, %v1449, 0
      %v1521 = vsel %vm225, %v1450, 0
      %v1524 = vsel %vm225, %v1451, 0
      %v1527 = vsel %vm225, %v1452, 0
      %v1530 = vsel %vm225, %v1453, 0
      %v1533 = vsel %vm225, %v1454, 0
      %v1536 = vsel %vm225, %v1455, 0
      %v1539 = vsel %vm225, %v1456, 0
      %v1542 = vsel %vm225, %v1457, 0
      %v1545 = vsel %vm225, %v1458, 0
      %v1548 = vsel %vm225, %v1459, 0
      %v1551 = vsel %vm225, %v1460, 0
      %v1554 = vsel %vm225, %v1461, 0
      %v1557 = vsel %vm225, %v1462, 0
      %v1560 = vsel %vm225, %v1463, 0
      %v1563 = vsel %vm544, %v1465, 0
      %1565 = vmatpush.msra.mxu0 0.0
      %1566 = vmatpush.msra.mxu0 0.0
      %1567 = vmatpush.msra.mxu0 0.0
      %1568 = vmatpush.msra.mxu0 0.0
      %1569 = vmatpush.msra.mxu0 0.0
      %1570 = vmatpush.msra.mxu0 0.0
      %1571 = vmatpush.msra.mxu0 0.0
      %1572 = vmatpush.msra.mxu0 0.0
      %1573 = vmatpush.msra.mxu0 0.0
      %1574 = vmatpush.msra.mxu0 0.0
      %1575 = vmatpush.msra.mxu0 0.0
      %1576 = vmatpush.msra.mxu0 0.0
      %1577 = vmatpush.msra.mxu0 0.0
      %1578 = vmatpush.msra.mxu0 0.0
      %1579 = vmatpush.msra.mxu0 0.0
      %1580 = vmatpush.msra.mxu0 %v1563
      %1581 = vmatmul.f32.gmra.mxu0 %v1467
      %v1582 = vpop.f32.mrf.mxu0
      %v1583 = vadd.f32 0.0, %v1582
      %1584 = vmatmul.f32.gmra.mxu0 %v1470
      %v1585 = vpop.f32.mrf.mxu0
      %v1586 = vadd.f32 0.0, %v1585
      %1587 = vmatmul.f32.gmra.mxu0 %v1473
      %v1588 = vpop.f32.mrf.mxu0
      %v1589 = vadd.f32 0.0, %v1588
      %1590 = vmatmul.f32.gmra.mxu0 %v1476
      %v1591 = vpop.f32.mrf.mxu0
      %v1592 = vadd.f32 0.0, %v1591
      %1593 = vmatmul.f32.gmra.mxu0 %v1479
      %v1594 = vpop.f32.mrf.mxu0
      %v1595 = vadd.f32 0.0, %v1594
      %1596 = vmatmul.f32.gmra.mxu0 %v1482
      %v1597 = vpop.f32.mrf.mxu0
      %v1598 = vadd.f32 0.0, %v1597
      %1599 = vmatmul.f32.gmra.mxu0 %v1485
      %v1600 = vpop.f32.mrf.mxu0
      %v1601 = vadd.f32 0.0, %v1600
      %1602 = vmatmul.f32.gmra.mxu0 %v1488
      %v1603 = vpop.f32.mrf.mxu0
      %v1604 = vadd.f32 0.0, %v1603
      %1605 = vmatmul.f32.gmra.mxu0 %v1491
      %v1606 = vpop.f32.mrf.mxu0
      %v1607 = vadd.f32 0.0, %v1606
      %1608 = vmatmul.f32.gmra.mxu0 %v1494
      %v1609 = vpop.f32.mrf.mxu0
      %v1610 = vadd.f32 0.0, %v1609
      %1611 = vmatmul.f32.gmra.mxu0 %v1497
      %v1612 = vpop.f32.mrf.mxu0
      %v1613 = vadd.f32 0.0, %v1612
      %1614 = vmatmul.f32.gmra.mxu0 %v1500
      %v1615 = vpop.f32.mrf.mxu0
      %v1616 = vadd.f32 0.0, %v1615
      %1617 = vmatmul.f32.gmra.mxu0 %v1503
      %v1618 = vpop.f32.mrf.mxu0
      %v1619 = vadd.f32 0.0, %v1618
      %1620 = vmatmul.f32.gmra.mxu0 %v1506
      %v1621 = vpop.f32.mrf.mxu0
      %v1622 = vadd.f32 0.0, %v1621
      %1623 = vmatmul.f32.gmra.mxu0 %v1509
      %v1624 = vpop.f32.mrf.mxu0
      %v1625 = vadd.f32 0.0, %v1624
      %1626 = vmatmul.f32.gmra.mxu0 %v1512
      %v1627 = vpop.f32.mrf.mxu0
      %v1628 = vadd.f32 0.0, %v1627
      %1629 = vmatmul.f32.gmra.mxu0 %v1515
      %v1630 = vpop.f32.mrf.mxu0
      %v1631 = vadd.f32 0.0, %v1630
      %1632 = vmatmul.f32.gmra.mxu0 %v1518
      %v1633 = vpop.f32.mrf.mxu0
      %v1634 = vadd.f32 0.0, %v1633
      %1635 = vmatmul.f32.gmra.mxu0 %v1521
      %v1636 = vpop.f32.mrf.mxu0
      %v1637 = vadd.f32 0.0, %v1636
      %1638 = vmatmul.f32.gmra.mxu0 %v1524
      %v1639 = vpop.f32.mrf.mxu0
      %v1640 = vadd.f32 0.0, %v1639
      %1641 = vmatmul.f32.gmra.mxu0 %v1527
      %v1642 = vpop.f32.mrf.mxu0
      %v1643 = vadd.f32 0.0, %v1642
      %1644 = vmatmul.f32.gmra.mxu0 %v1530
      %v1645 = vpop.f32.mrf.mxu0
      %v1646 = vadd.f32 0.0, %v1645
      %1647 = vmatmul.f32.gmra.mxu0 %v1533
      %v1648 = vpop.f32.mrf.mxu0
      %v1649 = vadd.f32 0.0, %v1648
      %1650 = vmatmul.f32.gmra.mxu0 %v1536
      %v1651 = vpop.f32.mrf.mxu0
      %v1652 = vadd.f32 0.0, %v1651
      %1653 = vmatmul.f32.gmra.mxu0 %v1539
      %v1654 = vpop.f32.mrf.mxu0
      %v1655 = vadd.f32 0.0, %v1654
      %1656 = vmatmul.f32.gmra.mxu0 %v1542
      %v1657 = vpop.f32.mrf.mxu0
      %v1658 = vadd.f32 0.0, %v1657
      %1659 = vmatmul.f32.gmra.mxu0 %v1545
      %v1660 = vpop.f32.mrf.mxu0
      %v1661 = vadd.f32 0.0, %v1660
      %1662 = vmatmul.f32.gmra.mxu0 %v1548
      %v1663 = vpop.f32.mrf.mxu0
      %v1664 = vadd.f32 0.0, %v1663
      %1665 = vmatmul.f32.gmra.mxu0 %v1551
      %v1666 = vpop.f32.mrf.mxu0
      %v1667 = vadd.f32 0.0, %v1666
      %1668 = vmatmul.f32.gmra.mxu0 %v1554
      %v1669 = vpop.f32.mrf.mxu0
      %v1670 = vadd.f32 0.0, %v1669
      %1671 = vmatmul.f32.gmra.mxu0 %v1557
      %v1672 = vpop.f32.mrf.mxu0
      %v1673 = vadd.f32 0.0, %v1672
      %1674 = vmatmul.f32.gmra.mxu0 %v1560
      %v1675 = vpop.f32.mrf.mxu0
      %v1676 = vadd.f32 0.0, %v1675
      %1677 = vdwg.mxu0
      %v1678 = vadd.f32 %v1400, %v1583
      %v1679 = vadd.f32 %v1401, %v1586
      %v1680 = vadd.f32 %v1402, %v1589
      %v1681 = vadd.f32 %v1403, %v1592
      %v1682 = vadd.f32 %v1404, %v1595
      %v1683 = vadd.f32 %v1405, %v1598
      %v1684 = vadd.f32 %v1406, %v1601
      %v1685 = vadd.f32 %v1407, %v1604
      %v1686 = vadd.f32 %v1408, %v1607
      %v1687 = vadd.f32 %v1409, %v1610
      %v1688 = vadd.f32 %v1410, %v1613
      %v1689 = vadd.f32 %v1411, %v1616
      %v1690 = vadd.f32 %v1412, %v1619
      %v1691 = vadd.f32 %v1413, %v1622
      %v1692 = vadd.f32 %v1414, %v1625
      %v1693 = vadd.f32 %v1415, %v1628
      %v1694 = vadd.f32 %v1416, %v1631
      %v1695 = vadd.f32 %v1417, %v1634
      %v1696 = vadd.f32 %v1418, %v1637
      %v1697 = vadd.f32 %v1419, %v1640
      %v1698 = vadd.f32 %v1420, %v1643
      %v1699 = vadd.f32 %v1421, %v1646
      %v1700 = vadd.f32 %v1422, %v1649
      %v1701 = vadd.f32 %v1423, %v1652
      %v1702 = vadd.f32 %v1424, %v1655
      %v1703 = vadd.f32 %v1425, %v1658
      %v1704 = vadd.f32 %v1426, %v1661
      %v1705 = vadd.f32 %v1427, %v1664
      %v1706 = vadd.f32 %v1428, %v1667
      %v1707 = vadd.f32 %v1429, %v1670
      %v1708 = vadd.f32 %v1430, %v1673
      %v1709 = vadd.f32 %v1431, %v1676
      %v1710 = vld [vmem:[%s1153 + $0x2] sm:$0xff]
      %v1711 = vld [vmem:[%s1153 + $0xa] sm:$0xff]
      %v1712 = vld [vmem:[%s1153 + $0x1a] sm:$0xff]
      %v1713 = vld [vmem:[%s1153 + $0x22] sm:$0xff]
      %v1714 = vld [vmem:[%s1153 + $0x32] sm:$0xff]
      %v1715 = vld [vmem:[%s1153 + $0x3a] sm:$0xff]
      %v1716 = vld [vmem:[%s1153 + $0x4a] sm:$0xff]
      %v1717 = vld [vmem:[%s1153 + $0x52] sm:$0xff]
      %v1718 = vld [vmem:[%s1153 + $0x62] sm:$0xff]
      %v1719 = vld [vmem:[%s1153 + $0x6a] sm:$0xff]
      %v1720 = vld [vmem:[%s1153 + $0x7a] sm:$0xff]
      %v1721 = vld [vmem:[%s1153 + $0x82] sm:$0xff]
      %v1722 = vld [vmem:[%s1153 + $0x92] sm:$0xff]
      %v1723 = vld [vmem:[%s1153 + $0x9a] sm:$0xff]
      %v1724 = vld [vmem:[%s1153 + $0xaa] sm:$0xff]
      %v1725 = vld [vmem:[%s1153 + $0xb2] sm:$0xff]
      %v1726 = vld [vmem:[%s1153 + $0xc2] sm:$0xff]
      %v1727 = vld [vmem:[%s1153 + $0xca] sm:$0xff]
      %v1728 = vld [vmem:[%s1153 + $0xda] sm:$0xff]
      %v1729 = vld [vmem:[%s1153 + $0xe2] sm:$0xff]
      %v1730 = vld [vmem:[%s1153 + $0xf2] sm:$0xff]
      %v1731 = vld [vmem:[%s1153 + $0xfa] sm:$0xff]
      %v1732 = vld [vmem:[%s1153 + $0x10a] sm:$0xff]
      %v1733 = vld [vmem:[%s1153 + $0x112] sm:$0xff]
      %v1734 = vld [vmem:[%s1153 + $0x122] sm:$0xff]
      %v1735 = vld [vmem:[%s1153 + $0x12a] sm:$0xff]
      %v1736 = vld [vmem:[%s1153 + $0x13a] sm:$0xff]
      %v1737 = vld [vmem:[%s1153 + $0x142] sm:$0xff]
      %v1738 = vld [vmem:[%s1153 + $0x152] sm:$0xff]
      %v1739 = vld [vmem:[%s1153 + $0x15a] sm:$0xff]
      %v1740 = vld [vmem:[%s1153 + $0x16a] sm:$0xff]
      %v1741 = vld [vmem:[%s1153 + $0x172] sm:$0xff]
      %s1742 = scalar_lea.vmem %s1, 20
      %v1743 = vld [vmem:[%s1742] sm:$0xf]
      %v1745 = vsel %vm225, %v1710, 0
      %v1748 = vsel %vm225, %v1711, 0
      %v1751 = vsel %vm225, %v1712, 0
      %v1754 = vsel %vm225, %v1713, 0
      %v1757 = vsel %vm225, %v1714, 0
      %v1760 = vsel %vm225, %v1715, 0
      %v1763 = vsel %vm225, %v1716, 0
      %v1766 = vsel %vm225, %v1717, 0
      %v1769 = vsel %vm225, %v1718, 0
      %v1772 = vsel %vm225, %v1719, 0
      %v1775 = vsel %vm225, %v1720, 0
      %v1778 = vsel %vm225, %v1721, 0
      %v1781 = vsel %vm225, %v1722, 0
      %v1784 = vsel %vm225, %v1723, 0
      %v1787 = vsel %vm225, %v1724, 0
      %v1790 = vsel %vm225, %v1725, 0
      %v1793 = vsel %vm225, %v1726, 0
      %v1796 = vsel %vm225, %v1727, 0
      %v1799 = vsel %vm225, %v1728, 0
      %v1802 = vsel %vm225, %v1729, 0
      %v1805 = vsel %vm225, %v1730, 0
      %v1808 = vsel %vm225, %v1731, 0
      %v1811 = vsel %vm225, %v1732, 0
      %v1814 = vsel %vm225, %v1733, 0
      %v1817 = vsel %vm225, %v1734, 0
      %v1820 = vsel %vm225, %v1735, 0
      %v1823 = vsel %vm225, %v1736, 0
      %v1826 = vsel %vm225, %v1737, 0
      %v1829 = vsel %vm225, %v1738, 0
      %v1832 = vsel %vm225, %v1739, 0
      %v1835 = vsel %vm225, %v1740, 0
      %v1838 = vsel %vm225, %v1741, 0
      %v1841 = vsel %vm544, %v1743, 0
      %1843 = vmatpush.msra.mxu0 0.0
      %1844 = vmatpush.msra.mxu0 0.0
      %1845 = vmatpush.msra.mxu0 0.0
      %1846 = vmatpush.msra.mxu0 0.0
      %1847 = vmatpush.msra.mxu0 0.0
      %1848 = vmatpush.msra.mxu0 0.0
      %1849 = vmatpush.msra.mxu0 0.0
      %1850 = vmatpush.msra.mxu0 0.0
      %1851 = vmatpush.msra.mxu0 0.0
      %1852 = vmatpush.msra.mxu0 0.0
      %1853 = vmatpush.msra.mxu0 0.0
      %1854 = vmatpush.msra.mxu0 0.0
      %1855 = vmatpush.msra.mxu0 0.0
      %1856 = vmatpush.msra.mxu0 0.0
      %1857 = vmatpush.msra.mxu0 0.0
      %1858 = vmatpush.msra.mxu0 %v1841
      %1859 = vmatmul.f32.gmra.mxu0 %v1745
      %v1860 = vpop.f32.mrf.mxu0
      %v1861 = vadd.f32 0.0, %v1860
      %1862 = vmatmul.f32.gmra.mxu0 %v1748
      %v1863 = vpop.f32.mrf.mxu0
      %v1864 = vadd.f32 0.0, %v1863
      %1865 = vmatmul.f32.gmra.mxu0 %v1751
      %v1866 = vpop.f32.mrf.mxu0
      %v1867 = vadd.f32 0.0, %v1866
      %1868 = vmatmul.f32.gmra.mxu0 %v1754
      %v1869 = vpop.f32.mrf.mxu0
      %v1870 = vadd.f32 0.0, %v1869
      %1871 = vmatmul.f32.gmra.mxu0 %v1757
      %v1872 = vpop.f32.mrf.mxu0
      %v1873 = vadd.f32 0.0, %v1872
      %1874 = vmatmul.f32.gmra.mxu0 %v1760
      %v1875 = vpop.f32.mrf.mxu0
      %v1876 = vadd.f32 0.0, %v1875
      %1877 = vmatmul.f32.gmra.mxu0 %v1763
      %v1878 = vpop.f32.mrf.mxu0
      %v1879 = vadd.f32 0.0, %v1878
      %1880 = vmatmul.f32.gmra.mxu0 %v1766
      %v1881 = vpop.f32.mrf.mxu0
      %v1882 = vadd.f32 0.0, %v1881
      %1883 = vmatmul.f32.gmra.mxu0 %v1769
      %v1884 = vpop.f32.mrf.mxu0
      %v1885 = vadd.f32 0.0, %v1884
      %1886 = vmatmul.f32.gmra.mxu0 %v1772
      %v1887 = vpop.f32.mrf.mxu0
      %v1888 = vadd.f32 0.0, %v1887
      %1889 = vmatmul.f32.gmra.mxu0 %v1775
      %v1890 = vpop.f32.mrf.mxu0
      %v1891 = vadd.f32 0.0, %v1890
      %1892 = vmatmul.f32.gmra.mxu0 %v1778
      %v1893 = vpop.f32.mrf.mxu0
      %v1894 = vadd.f32 0.0, %v1893
      %1895 = vmatmul.f32.gmra.mxu0 %v1781
      %v1896 = vpop.f32.mrf.mxu0
      %v1897 = vadd.f32 0.0, %v1896
      %1898 = vmatmul.f32.gmra.mxu0 %v1784
      %v1899 = vpop.f32.mrf.mxu0
      %v1900 = vadd.f32 0.0, %v1899
      %1901 = vmatmul.f32.gmra.mxu0 %v1787
      %v1902 = vpop.f32.mrf.mxu0
      %v1903 = vadd.f32 0.0, %v1902
      %1904 = vmatmul.f32.gmra.mxu0 %v1790
      %v1905 = vpop.f32.mrf.mxu0
      %v1906 = vadd.f32 0.0, %v1905
      %1907 = vmatmul.f32.gmra.mxu0 %v1793
      %v1908 = vpop.f32.mrf.mxu0
      %v1909 = vadd.f32 0.0, %v1908
      %1910 = vmatmul.f32.gmra.mxu0 %v1796
      %v1911 = vpop.f32.mrf.mxu0
      %v1912 = vadd.f32 0.0, %v1911
      %1913 = vmatmul.f32.gmra.mxu0 %v1799
      %v1914 = vpop.f32.mrf.mxu0
      %v1915 = vadd.f32 0.0, %v1914
      %1916 = vmatmul.f32.gmra.mxu0 %v1802
      %v1917 = vpop.f32.mrf.mxu0
      %v1918 = vadd.f32 0.0, %v1917
      %1919 = vmatmul.f32.gmra.mxu0 %v1805
      %v1920 = vpop.f32.mrf.mxu0
      %v1921 = vadd.f32 0.0, %v1920
      %1922 = vmatmul.f32.gmra.mxu0 %v1808
      %v1923 = vpop.f32.mrf.mxu0
      %v1924 = vadd.f32 0.0, %v1923
      %1925 = vmatmul.f32.gmra.mxu0 %v1811
      %v1926 = vpop.f32.mrf.mxu0
      %v1927 = vadd.f32 0.0, %v1926
      %1928 = vmatmul.f32.gmra.mxu0 %v1814
      %v1929 = vpop.f32.mrf.mxu0
      %v1930 = vadd.f32 0.0, %v1929
      %1931 = vmatmul.f32.gmra.mxu0 %v1817
      %v1932 = vpop.f32.mrf.mxu0
      %v1933 = vadd.f32 0.0, %v1932
      %1934 = vmatmul.f32.gmra.mxu0 %v1820
      %v1935 = vpop.f32.mrf.mxu0
      %v1936 = vadd.f32 0.0, %v1935
      %1937 = vmatmul.f32.gmra.mxu0 %v1823
      %v1938 = vpop.f32.mrf.mxu0
      %v1939 = vadd.f32 0.0, %v1938
      %1940 = vmatmul.f32.gmra.mxu0 %v1826
      %v1941 = vpop.f32.mrf.mxu0
      %v1942 = vadd.f32 0.0, %v1941
      %1943 = vmatmul.f32.gmra.mxu0 %v1829
      %v1944 = vpop.f32.mrf.mxu0
      %v1945 = vadd.f32 0.0, %v1944
      %1946 = vmatmul.f32.gmra.mxu0 %v1832
      %v1947 = vpop.f32.mrf.mxu0
      %v1948 = vadd.f32 0.0, %v1947
      %1949 = vmatmul.f32.gmra.mxu0 %v1835
      %v1950 = vpop.f32.mrf.mxu0
      %v1951 = vadd.f32 0.0, %v1950
      %1952 = vmatmul.f32.gmra.mxu0 %v1838
      %v1953 = vpop.f32.mrf.mxu0
      %v1954 = vadd.f32 0.0, %v1953
      %1955 = vdwg.mxu0
      %v1956 = vadd.f32 %v1678, %v1861
      %v1957 = vadd.f32 %v1679, %v1864
      %v1958 = vadd.f32 %v1680, %v1867
      %v1959 = vadd.f32 %v1681, %v1870
      %v1960 = vadd.f32 %v1682, %v1873
      %v1961 = vadd.f32 %v1683, %v1876
      %v1962 = vadd.f32 %v1684, %v1879
      %v1963 = vadd.f32 %v1685, %v1882
      %v1964 = vadd.f32 %v1686, %v1885
      %v1965 = vadd.f32 %v1687, %v1888
      %v1966 = vadd.f32 %v1688, %v1891
      %v1967 = vadd.f32 %v1689, %v1894
      %v1968 = vadd.f32 %v1690, %v1897
      %v1969 = vadd.f32 %v1691, %v1900
      %v1970 = vadd.f32 %v1692, %v1903
      %v1971 = vadd.f32 %v1693, %v1906
      %v1972 = vadd.f32 %v1694, %v1909
      %v1973 = vadd.f32 %v1695, %v1912
      %v1974 = vadd.f32 %v1696, %v1915
      %v1975 = vadd.f32 %v1697, %v1918
      %v1976 = vadd.f32 %v1698, %v1921
      %v1977 = vadd.f32 %v1699, %v1924
      %v1978 = vadd.f32 %v1700, %v1927
      %v1979 = vadd.f32 %v1701, %v1930
      %v1980 = vadd.f32 %v1702, %v1933
      %v1981 = vadd.f32 %v1703, %v1936
      %v1982 = vadd.f32 %v1704, %v1939
      %v1983 = vadd.f32 %v1705, %v1942
      %v1984 = vadd.f32 %v1706, %v1945
      %v1985 = vadd.f32 %v1707, %v1948
      %v1986 = vadd.f32 %v1708, %v1951
      %v1987 = vadd.f32 %v1709, %v1954
      %s1988 = sadd.s32 0, 2
      %s1989 = smul.u32 %s1988, 24
      %s1990 = scalar_lea.vmem [#allocation2], %s1989
      %v1991 = vld [vmem:[%s1990] sm:$0xff]
      %v1992 = vld [vmem:[%s1990 + $0x8] sm:$0xff]
      %v1993 = vld [vmem:[%s1990 + $0x18] sm:$0xff]
      %v1994 = vld [vmem:[%s1990 + $0x20] sm:$0xff]
      %v1995 = vld [vmem:[%s1990 + $0x30] sm:$0xff]
      %v1996 = vld [vmem:[%s1990 + $0x38] sm:$0xff]
      %v1997 = vld [vmem:[%s1990 + $0x48] sm:$0xff]
      %v1998 = vld [vmem:[%s1990 + $0x50] sm:$0xff]
      %v1999 = vld [vmem:[%s1990 + $0x60] sm:$0xff]
      %v2000 = vld [vmem:[%s1990 + $0x68] sm:$0xff]
      %v2001 = vld [vmem:[%s1990 + $0x78] sm:$0xff]
      %v2002 = vld [vmem:[%s1990 + $0x80] sm:$0xff]
      %v2003 = vld [vmem:[%s1990 + $0x90] sm:$0xff]
      %v2004 = vld [vmem:[%s1990 + $0x98] sm:$0xff]
      %v2005 = vld [vmem:[%s1990 + $0xa8] sm:$0xff]
      %v2006 = vld [vmem:[%s1990 + $0xb0] sm:$0xff]
      %v2007 = vld [vmem:[%s1990 + $0xc0] sm:$0xff]
      %v2008 = vld [vmem:[%s1990 + $0xc8] sm:$0xff]
      %v2009 = vld [vmem:[%s1990 + $0xd8] sm:$0xff]
      %v2010 = vld [vmem:[%s1990 + $0xe0] sm:$0xff]
      %v2011 = vld [vmem:[%s1990 + $0xf0] sm:$0xff]
      %v2012 = vld [vmem:[%s1990 + $0xf8] sm:$0xff]
      %v2013 = vld [vmem:[%s1990 + $0x108] sm:$0xff]
      %v2014 = vld [vmem:[%s1990 + $0x110] sm:$0xff]
      %v2015 = vld [vmem:[%s1990 + $0x120] sm:$0xff]
      %v2016 = vld [vmem:[%s1990 + $0x128] sm:$0xff]
      %v2017 = vld [vmem:[%s1990 + $0x138] sm:$0xff]
      %v2018 = vld [vmem:[%s1990 + $0x140] sm:$0xff]
      %v2019 = vld [vmem:[%s1990 + $0x150] sm:$0xff]
      %v2020 = vld [vmem:[%s1990 + $0x158] sm:$0xff]
      %v2021 = vld [vmem:[%s1990 + $0x168] sm:$0xff]
      %v2022 = vld [vmem:[%s1990 + $0x170] sm:$0xff]
      %s2023 = scalar_lea.vmem %s1, 24
      %v2024 = vld [vmem:[%s2023] sm:$0xf]
      %v2026 = vsel %vm225, %v1991, 0
      %v2029 = vsel %vm225, %v1992, 0
      %v2032 = vsel %vm225, %v1993, 0
      %v2035 = vsel %vm225, %v1994, 0
      %v2038 = vsel %vm225, %v1995, 0
      %v2041 = vsel %vm225, %v1996, 0
      %v2044 = vsel %vm225, %v1997, 0
      %v2047 = vsel %vm225, %v1998, 0
      %v2050 = vsel %vm225, %v1999, 0
      %v2053 = vsel %vm225, %v2000, 0
      %v2056 = vsel %vm225, %v2001, 0
      %v2059 = vsel %vm225, %v2002, 0
      %v2062 = vsel %vm225, %v2003, 0
      %v2065 = vsel %vm225, %v2004, 0
      %v2068 = vsel %vm225, %v2005, 0
      %v2071 = vsel %vm225, %v2006, 0
      %v2074 = vsel %vm225, %v2007, 0
      %v2077 = vsel %vm225, %v2008, 0
      %v2080 = vsel %vm225, %v2009, 0
      %v2083 = vsel %vm225, %v2010, 0
      %v2086 = vsel %vm225, %v2011, 0
      %v2089 = vsel %vm225, %v2012, 0
      %v2092 = vsel %vm225, %v2013, 0
      %v2095 = vsel %vm225, %v2014, 0
      %v2098 = vsel %vm225, %v2015, 0
      %v2101 = vsel %vm225, %v2016, 0
      %v2104 = vsel %vm225, %v2017, 0
      %v2107 = vsel %vm225, %v2018, 0
      %v2110 = vsel %vm225, %v2019, 0
      %v2113 = vsel %vm225, %v2020, 0
      %v2116 = vsel %vm225, %v2021, 0
      %v2119 = vsel %vm225, %v2022, 0
      %v2122 = vsel %vm544, %v2024, 0
      %2124 = vmatpush.msra.mxu0 0.0
      %2125 = vmatpush.msra.mxu0 0.0
      %2126 = vmatpush.msra.mxu0 0.0
      %2127 = vmatpush.msra.mxu0 0.0
      %2128 = vmatpush.msra.mxu0 0.0
      %2129 = vmatpush.msra.mxu0 0.0
      %2130 = vmatpush.msra.mxu0 0.0
      %2131 = vmatpush.msra.mxu0 0.0
      %2132 = vmatpush.msra.mxu0 0.0
      %2133 = vmatpush.msra.mxu0 0.0
      %2134 = vmatpush.msra.mxu0 0.0
      %2135 = vmatpush.msra.mxu0 0.0
      %2136 = vmatpush.msra.mxu0 0.0
      %2137 = vmatpush.msra.mxu0 0.0
      %2138 = vmatpush.msra.mxu0 0.0
      %2139 = vmatpush.msra.mxu0 %v2122
      %2140 = vmatmul.f32.gmra.mxu0 %v2026
      %v2141 = vpop.f32.mrf.mxu0
      %v2142 = vadd.f32 0.0, %v2141
      %2143 = vmatmul.f32.gmra.mxu0 %v2029
      %v2144 = vpop.f32.mrf.mxu0
      %v2145 = vadd.f32 0.0, %v2144
      %2146 = vmatmul.f32.gmra.mxu0 %v2032
      %v2147 = vpop.f32.mrf.mxu0
      %v2148 = vadd.f32 0.0, %v2147
      %2149 = vmatmul.f32.gmra.mxu0 %v2035
      %v2150 = vpop.f32.mrf.mxu0
      %v2151 = vadd.f32 0.0, %v2150
      %2152 = vmatmul.f32.gmra.mxu0 %v2038
      %v2153 = vpop.f32.mrf.mxu0
      %v2154 = vadd.f32 0.0, %v2153
      %2155 = vmatmul.f32.gmra.mxu0 %v2041
      %v2156 = vpop.f32.mrf.mxu0
      %v2157 = vadd.f32 0.0, %v2156
      %2158 = vmatmul.f32.gmra.mxu0 %v2044
      %v2159 = vpop.f32.mrf.mxu0
      %v2160 = vadd.f32 0.0, %v2159
      %2161 = vmatmul.f32.gmra.mxu0 %v2047
      %v2162 = vpop.f32.mrf.mxu0
      %v2163 = vadd.f32 0.0, %v2162
      %2164 = vmatmul.f32.gmra.mxu0 %v2050
      %v2165 = vpop.f32.mrf.mxu0
      %v2166 = vadd.f32 0.0, %v2165
      %2167 = vmatmul.f32.gmra.mxu0 %v2053
      %v2168 = vpop.f32.mrf.mxu0
      %v2169 = vadd.f32 0.0, %v2168
      %2170 = vmatmul.f32.gmra.mxu0 %v2056
      %v2171 = vpop.f32.mrf.mxu0
      %v2172 = vadd.f32 0.0, %v2171
      %2173 = vmatmul.f32.gmra.mxu0 %v2059
      %v2174 = vpop.f32.mrf.mxu0
      %v2175 = vadd.f32 0.0, %v2174
      %2176 = vmatmul.f32.gmra.mxu0 %v2062
      %v2177 = vpop.f32.mrf.mxu0
      %v2178 = vadd.f32 0.0, %v2177
      %2179 = vmatmul.f32.gmra.mxu0 %v2065
      %v2180 = vpop.f32.mrf.mxu0
      %v2181 = vadd.f32 0.0, %v2180
      %2182 = vmatmul.f32.gmra.mxu0 %v2068
      %v2183 = vpop.f32.mrf.mxu0
      %v2184 = vadd.f32 0.0, %v2183
      %2185 = vmatmul.f32.gmra.mxu0 %v2071
      %v2186 = vpop.f32.mrf.mxu0
      %v2187 = vadd.f32 0.0, %v2186
      %2188 = vmatmul.f32.gmra.mxu0 %v2074
      %v2189 = vpop.f32.mrf.mxu0
      %v2190 = vadd.f32 0.0, %v2189
      %2191 = vmatmul.f32.gmra.mxu0 %v2077
      %v2192 = vpop.f32.mrf.mxu0
      %v2193 = vadd.f32 0.0, %v2192
      %2194 = vmatmul.f32.gmra.mxu0 %v2080
      %v2195 = vpop.f32.mrf.mxu0
      %v2196 = vadd.f32 0.0, %v2195
      %2197 = vmatmul.f32.gmra.mxu0 %v2083
      %v2198 = vpop.f32.mrf.mxu0
      %v2199 = vadd.f32 0.0, %v2198
      %2200 = vmatmul.f32.gmra.mxu0 %v2086
      %v2201 = vpop.f32.mrf.mxu0
      %v2202 = vadd.f32 0.0, %v2201
      %2203 = vmatmul.f32.gmra.mxu0 %v2089
      %v2204 = vpop.f32.mrf.mxu0
      %v2205 = vadd.f32 0.0, %v2204
      %2206 = vmatmul.f32.gmra.mxu0 %v2092
      %v2207 = vpop.f32.mrf.mxu0
      %v2208 = vadd.f32 0.0, %v2207
      %2209 = vmatmul.f32.gmra.mxu0 %v2095
      %v2210 = vpop.f32.mrf.mxu0
      %v2211 = vadd.f32 0.0, %v2210
      %2212 = vmatmul.f32.gmra.mxu0 %v2098
      %v2213 = vpop.f32.mrf.mxu0
      %v2214 = vadd.f32 0.0, %v2213
      %2215 = vmatmul.f32.gmra.mxu0 %v2101
      %v2216 = vpop.f32.mrf.mxu0
      %v2217 = vadd.f32 0.0, %v2216
      %2218 = vmatmul.f32.gmra.mxu0 %v2104
      %v2219 = vpop.f32.mrf.mxu0
      %v2220 = vadd.f32 0.0, %v2219
      %2221 = vmatmul.f32.gmra.mxu0 %v2107
      %v2222 = vpop.f32.mrf.mxu0
      %v2223 = vadd.f32 0.0, %v2222
      %2224 = vmatmul.f32.gmra.mxu0 %v2110
      %v2225 = vpop.f32.mrf.mxu0
      %v2226 = vadd.f32 0.0, %v2225
      %2227 = vmatmul.f32.gmra.mxu0 %v2113
      %v2228 = vpop.f32.mrf.mxu0
      %v2229 = vadd.f32 0.0, %v2228
      %2230 = vmatmul.f32.gmra.mxu0 %v2116
      %v2231 = vpop.f32.mrf.mxu0
      %v2232 = vadd.f32 0.0, %v2231
      %2233 = vmatmul.f32.gmra.mxu0 %v2119
      %v2234 = vpop.f32.mrf.mxu0
      %v2235 = vadd.f32 0.0, %v2234
      %2236 = vdwg.mxu0
      %v2237 = vadd.f32 %v1956, %v2142
      %v2238 = vadd.f32 %v1957, %v2145
      %v2239 = vadd.f32 %v1958, %v2148
      %v2240 = vadd.f32 %v1959, %v2151
      %v2241 = vadd.f32 %v1960, %v2154
      %v2242 = vadd.f32 %v1961, %v2157
      %v2243 = vadd.f32 %v1962, %v2160
      %v2244 = vadd.f32 %v1963, %v2163
      %v2245 = vadd.f32 %v1964, %v2166
      %v2246 = vadd.f32 %v1965, %v2169
      %v2247 = vadd.f32 %v1966, %v2172
      %v2248 = vadd.f32 %v1967, %v2175
      %v2249 = vadd.f32 %v1968, %v2178
      %v2250 = vadd.f32 %v1969, %v2181
      %v2251 = vadd.f32 %v1970, %v2184
      %v2252 = vadd.f32 %v1971, %v2187
      %v2253 = vadd.f32 %v1972, %v2190
      %v2254 = vadd.f32 %v1973, %v2193
      %v2255 = vadd.f32 %v1974, %v2196
      %v2256 = vadd.f32 %v1975, %v2199
      %v2257 = vadd.f32 %v1976, %v2202
      %v2258 = vadd.f32 %v1977, %v2205
      %v2259 = vadd.f32 %v1978, %v2208
      %v2260 = vadd.f32 %v1979, %v2211
      %v2261 = vadd.f32 %v1980, %v2214
      %v2262 = vadd.f32 %v1981, %v2217
      %v2263 = vadd.f32 %v1982, %v2220
      %v2264 = vadd.f32 %v1983, %v2223
      %v2265 = vadd.f32 %v1984, %v2226
      %v2266 = vadd.f32 %v1985, %v2229
      %v2267 = vadd.f32 %v1986, %v2232
      %v2268 = vadd.f32 %v1987, %v2235
      %v2269 = vld [vmem:[%s1990 + $0x1] sm:$0xff]
      %v2270 = vld [vmem:[%s1990 + $0x9] sm:$0xff]
      %v2271 = vld [vmem:[%s1990 + $0x19] sm:$0xff]
      %v2272 = vld [vmem:[%s1990 + $0x21] sm:$0xff]
      %v2273 = vld [vmem:[%s1990 + $0x31] sm:$0xff]
      %v2274 = vld [vmem:[%s1990 + $0x39] sm:$0xff]
      %v2275 = vld [vmem:[%s1990 + $0x49] sm:$0xff]
      %v2276 = vld [vmem:[%s1990 + $0x51] sm:$0xff]
      %v2277 = vld [vmem:[%s1990 + $0x61] sm:$0xff]
      %v2278 = vld [vmem:[%s1990 + $0x69] sm:$0xff]
      %v2279 = vld [vmem:[%s1990 + $0x79] sm:$0xff]
      %v2280 = vld [vmem:[%s1990 + $0x81] sm:$0xff]
      %v2281 = vld [vmem:[%s1990 + $0x91] sm:$0xff]
      %v2282 = vld [vmem:[%s1990 + $0x99] sm:$0xff]
      %v2283 = vld [vmem:[%s1990 + $0xa9] sm:$0xff]
      %v2284 = vld [vmem:[%s1990 + $0xb1] sm:$0xff]
      %v2285 = vld [vmem:[%s1990 + $0xc1] sm:$0xff]
      %v2286 = vld [vmem:[%s1990 + $0xc9] sm:$0xff]
      %v2287 = vld [vmem:[%s1990 + $0xd9] sm:$0xff]
      %v2288 = vld [vmem:[%s1990 + $0xe1] sm:$0xff]
      %v2289 = vld [vmem:[%s1990 + $0xf1] sm:$0xff]
      %v2290 = vld [vmem:[%s1990 + $0xf9] sm:$0xff]
      %v2291 = vld [vmem:[%s1990 + $0x109] sm:$0xff]
      %v2292 = vld [vmem:[%s1990 + $0x111] sm:$0xff]
      %v2293 = vld [vmem:[%s1990 + $0x121] sm:$0xff]
      %v2294 = vld [vmem:[%s1990 + $0x129] sm:$0xff]
      %v2295 = vld [vmem:[%s1990 + $0x139] sm:$0xff]
      %v2296 = vld [vmem:[%s1990 + $0x141] sm:$0xff]
      %v2297 = vld [vmem:[%s1990 + $0x151] sm:$0xff]
      %v2298 = vld [vmem:[%s1990 + $0x159] sm:$0xff]
      %v2299 = vld [vmem:[%s1990 + $0x169] sm:$0xff]
      %v2300 = vld [vmem:[%s1990 + $0x171] sm:$0xff]
      %s2301 = scalar_lea.vmem %s1, 28
      %v2302 = vld [vmem:[%s2301] sm:$0xf]
      %v2304 = vsel %vm225, %v2269, 0
      %v2307 = vsel %vm225, %v2270, 0
      %v2310 = vsel %vm225, %v2271, 0
      %v2313 = vsel %vm225, %v2272, 0
      %v2316 = vsel %vm225, %v2273, 0
      %v2319 = vsel %vm225, %v2274, 0
      %v2322 = vsel %vm225, %v2275, 0
      %v2325 = vsel %vm225, %v2276, 0
      %v2328 = vsel %vm225, %v2277, 0
      %v2331 = vsel %vm225, %v2278, 0
      %v2334 = vsel %vm225, %v2279, 0
      %v2337 = vsel %vm225, %v2280, 0
      %v2340 = vsel %vm225, %v2281, 0
      %v2343 = vsel %vm225, %v2282, 0
      %v2346 = vsel %vm225, %v2283, 0
      %v2349 = vsel %vm225, %v2284, 0
      %v2352 = vsel %vm225, %v2285, 0
      %v2355 = vsel %vm225, %v2286, 0
      %v2358 = vsel %vm225, %v2287, 0
      %v2361 = vsel %vm225, %v2288, 0
      %v2364 = vsel %vm225, %v2289, 0
      %v2367 = vsel %vm225, %v2290, 0
      %v2370 = vsel %vm225, %v2291, 0
      %v2373 = vsel %vm225, %v2292, 0
      %v2376 = vsel %vm225, %v2293, 0
      %v2379 = vsel %vm225, %v2294, 0
      %v2382 = vsel %vm225, %v2295, 0
      %v2385 = vsel %vm225, %v2296, 0
      %v2388 = vsel %vm225, %v2297, 0
      %v2391 = vsel %vm225, %v2298, 0
      %v2394 = vsel %vm225, %v2299, 0
      %v2397 = vsel %vm225, %v2300, 0
      %v2400 = vsel %vm544, %v2302, 0
      %2402 = vmatpush.msra.mxu0 0.0
      %2403 = vmatpush.msra.mxu0 0.0
      %2404 = vmatpush.msra.mxu0 0.0
      %2405 = vmatpush.msra.mxu0 0.0
      %2406 = vmatpush.msra.mxu0 0.0
      %2407 = vmatpush.msra.mxu0 0.0
      %2408 = vmatpush.msra.mxu0 0.0
      %2409 = vmatpush.msra.mxu0 0.0
      %2410 = vmatpush.msra.mxu0 0.0
      %2411 = vmatpush.msra.mxu0 0.0
      %2412 = vmatpush.msra.mxu0 0.0
      %2413 = vmatpush.msra.mxu0 0.0
      %2414 = vmatpush.msra.mxu0 0.0
      %2415 = vmatpush.msra.mxu0 0.0
      %2416 = vmatpush.msra.mxu0 0.0
      %2417 = vmatpush.msra.mxu0 %v2400
      %2418 = vmatmul.f32.gmra.mxu0 %v2304
      %v2419 = vpop.f32.mrf.mxu0
      %v2420 = vadd.f32 0.0, %v2419
      %2421 = vmatmul.f32.gmra.mxu0 %v2307
      %v2422 = vpop.f32.mrf.mxu0
      %v2423 = vadd.f32 0.0, %v2422
      %2424 = vmatmul.f32.gmra.mxu0 %v2310
      %v2425 = vpop.f32.mrf.mxu0
      %v2426 = vadd.f32 0.0, %v2425
      %2427 = vmatmul.f32.gmra.mxu0 %v2313
      %v2428 = vpop.f32.mrf.mxu0
      %v2429 = vadd.f32 0.0, %v2428
      %2430 = vmatmul.f32.gmra.mxu0 %v2316
      %v2431 = vpop.f32.mrf.mxu0
      %v2432 = vadd.f32 0.0, %v2431
      %2433 = vmatmul.f32.gmra.mxu0 %v2319
      %v2434 = vpop.f32.mrf.mxu0
      %v2435 = vadd.f32 0.0, %v2434
      %2436 = vmatmul.f32.gmra.mxu0 %v2322
      %v2437 = vpop.f32.mrf.mxu0
      %v2438 = vadd.f32 0.0, %v2437
      %2439 = vmatmul.f32.gmra.mxu0 %v2325
      %v2440 = vpop.f32.mrf.mxu0
      %v2441 = vadd.f32 0.0, %v2440
      %2442 = vmatmul.f32.gmra.mxu0 %v2328
      %v2443 = vpop.f32.mrf.mxu0
      %v2444 = vadd.f32 0.0, %v2443
      %2445 = vmatmul.f32.gmra.mxu0 %v2331
      %v2446 = vpop.f32.mrf.mxu0
      %v2447 = vadd.f32 0.0, %v2446
      %2448 = vmatmul.f32.gmra.mxu0 %v2334
      %v2449 = vpop.f32.mrf.mxu0
      %v2450 = vadd.f32 0.0, %v2449
      %2451 = vmatmul.f32.gmra.mxu0 %v2337
      %v2452 = vpop.f32.mrf.mxu0
      %v2453 = vadd.f32 0.0, %v2452
      %2454 = vmatmul.f32.gmra.mxu0 %v2340
      %v2455 = vpop.f32.mrf.mxu0
      %v2456 = vadd.f32 0.0, %v2455
      %2457 = vmatmul.f32.gmra.mxu0 %v2343
      %v2458 = vpop.f32.mrf.mxu0
      %v2459 = vadd.f32 0.0, %v2458
      %2460 = vmatmul.f32.gmra.mxu0 %v2346
      %v2461 = vpop.f32.mrf.mxu0
      %v2462 = vadd.f32 0.0, %v2461
      %2463 = vmatmul.f32.gmra.mxu0 %v2349
      %v2464 = vpop.f32.mrf.mxu0
      %v2465 = vadd.f32 0.0, %v2464
      %2466 = vmatmul.f32.gmra.mxu0 %v2352
      %v2467 = vpop.f32.mrf.mxu0
      %v2468 = vadd.f32 0.0, %v2467
      %2469 = vmatmul.f32.gmra.mxu0 %v2355
      %v2470 = vpop.f32.mrf.mxu0
      %v2471 = vadd.f32 0.0, %v2470
      %2472 = vmatmul.f32.gmra.mxu0 %v2358
      %v2473 = vpop.f32.mrf.mxu0
      %v2474 = vadd.f32 0.0, %v2473
      %2475 = vmatmul.f32.gmra.mxu0 %v2361
      %v2476 = vpop.f32.mrf.mxu0
      %v2477 = vadd.f32 0.0, %v2476
      %2478 = vmatmul.f32.gmra.mxu0 %v2364
      %v2479 = vpop.f32.mrf.mxu0
      %v2480 = vadd.f32 0.0, %v2479
      %2481 = vmatmul.f32.gmra.mxu0 %v2367
      %v2482 = vpop.f32.mrf.mxu0
      %v2483 = vadd.f32 0.0, %v2482
      %2484 = vmatmul.f32.gmra.mxu0 %v2370
      %v2485 = vpop.f32.mrf.mxu0
      %v2486 = vadd.f32 0.0, %v2485
      %2487 = vmatmul.f32.gmra.mxu0 %v2373
      %v2488 = vpop.f32.mrf.mxu0
      %v2489 = vadd.f32 0.0, %v2488
      %2490 = vmatmul.f32.gmra.mxu0 %v2376
      %v2491 = vpop.f32.mrf.mxu0
      %v2492 = vadd.f32 0.0, %v2491
      %2493 = vmatmul.f32.gmra.mxu0 %v2379
      %v2494 = vpop.f32.mrf.mxu0
      %v2495 = vadd.f32 0.0, %v2494
      %2496 = vmatmul.f32.gmra.mxu0 %v2382
      %v2497 = vpop.f32.mrf.mxu0
      %v2498 = vadd.f32 0.0, %v2497
      %2499 = vmatmul.f32.gmra.mxu0 %v2385
      %v2500 = vpop.f32.mrf.mxu0
      %v2501 = vadd.f32 0.0, %v2500
      %2502 = vmatmul.f32.gmra.mxu0 %v2388
      %v2503 = vpop.f32.mrf.mxu0
      %v2504 = vadd.f32 0.0, %v2503
      %2505 = vmatmul.f32.gmra.mxu0 %v2391
      %v2506 = vpop.f32.mrf.mxu0
      %v2507 = vadd.f32 0.0, %v2506
      %2508 = vmatmul.f32.gmra.mxu0 %v2394
      %v2509 = vpop.f32.mrf.mxu0
      %v2510 = vadd.f32 0.0, %v2509
      %2511 = vmatmul.f32.gmra.mxu0 %v2397
      %v2512 = vpop.f32.mrf.mxu0
      %v2513 = vadd.f32 0.0, %v2512
      %2514 = vdwg.mxu0
      %v2515 = vadd.f32 %v2237, %v2420
      %v2516 = vadd.f32 %v2238, %v2423
      %v2517 = vadd.f32 %v2239, %v2426
      %v2518 = vadd.f32 %v2240, %v2429
      %v2519 = vadd.f32 %v2241, %v2432
      %v2520 = vadd.f32 %v2242, %v2435
      %v2521 = vadd.f32 %v2243, %v2438
      %v2522 = vadd.f32 %v2244, %v2441
      %v2523 = vadd.f32 %v2245, %v2444
      %v2524 = vadd.f32 %v2246, %v2447
      %v2525 = vadd.f32 %v2247, %v2450
      %v2526 = vadd.f32 %v2248, %v2453
      %v2527 = vadd.f32 %v2249, %v2456
      %v2528 = vadd.f32 %v2250, %v2459
      %v2529 = vadd.f32 %v2251, %v2462
      %v2530 = vadd.f32 %v2252, %v2465
      %v2531 = vadd.f32 %v2253, %v2468
      %v2532 = vadd.f32 %v2254, %v2471
      %v2533 = vadd.f32 %v2255, %v2474
      %v2534 = vadd.f32 %v2256, %v2477
      %v2535 = vadd.f32 %v2257, %v2480
      %v2536 = vadd.f32 %v2258, %v2483
      %v2537 = vadd.f32 %v2259, %v2486
      %v2538 = vadd.f32 %v2260, %v2489
      %v2539 = vadd.f32 %v2261, %v2492
      %v2540 = vadd.f32 %v2262, %v2495
      %v2541 = vadd.f32 %v2263, %v2498
      %v2542 = vadd.f32 %v2264, %v2501
      %v2543 = vadd.f32 %v2265, %v2504
      %v2544 = vadd.f32 %v2266, %v2507
      %v2545 = vadd.f32 %v2267, %v2510
      %v2546 = vadd.f32 %v2268, %v2513
      %v2547 = vld [vmem:[%s1990 + $0x2] sm:$0xff]
      %v2548 = vld [vmem:[%s1990 + $0xa] sm:$0xff]
      %v2549 = vld [vmem:[%s1990 + $0x1a] sm:$0xff]
      %v2550 = vld [vmem:[%s1990 + $0x22] sm:$0xff]
      %v2551 = vld [vmem:[%s1990 + $0x32] sm:$0xff]
      %v2552 = vld [vmem:[%s1990 + $0x3a] sm:$0xff]
      %v2553 = vld [vmem:[%s1990 + $0x4a] sm:$0xff]
      %v2554 = vld [vmem:[%s1990 + $0x52] sm:$0xff]
      %v2555 = vld [vmem:[%s1990 + $0x62] sm:$0xff]
      %v2556 = vld [vmem:[%s1990 + $0x6a] sm:$0xff]
      %v2557 = vld [vmem:[%s1990 + $0x7a] sm:$0xff]
      %v2558 = vld [vmem:[%s1990 + $0x82] sm:$0xff]
      %v2559 = vld [vmem:[%s1990 + $0x92] sm:$0xff]
      %v2560 = vld [vmem:[%s1990 + $0x9a] sm:$0xff]
      %v2561 = vld [vmem:[%s1990 + $0xaa] sm:$0xff]
      %v2562 = vld [vmem:[%s1990 + $0xb2] sm:$0xff]
      %v2563 = vld [vmem:[%s1990 + $0xc2] sm:$0xff]
      %v2564 = vld [vmem:[%s1990 + $0xca] sm:$0xff]
      %v2565 = vld [vmem:[%s1990 + $0xda] sm:$0xff]
      %v2566 = vld [vmem:[%s1990 + $0xe2] sm:$0xff]
      %v2567 = vld [vmem:[%s1990 + $0xf2] sm:$0xff]
      %v2568 = vld [vmem:[%s1990 + $0xfa] sm:$0xff]
      %v2569 = vld [vmem:[%s1990 + $0x10a] sm:$0xff]
      %v2570 = vld [vmem:[%s1990 + $0x112] sm:$0xff]
      %v2571 = vld [vmem:[%s1990 + $0x122] sm:$0xff]
      %v2572 = vld [vmem:[%s1990 + $0x12a] sm:$0xff]
      %v2573 = vld [vmem:[%s1990 + $0x13a] sm:$0xff]
      %v2574 = vld [vmem:[%s1990 + $0x142] sm:$0xff]
      %v2575 = vld [vmem:[%s1990 + $0x152] sm:$0xff]
      %v2576 = vld [vmem:[%s1990 + $0x15a] sm:$0xff]
      %v2577 = vld [vmem:[%s1990 + $0x16a] sm:$0xff]
      %v2578 = vld [vmem:[%s1990 + $0x172] sm:$0xff]
      %s2579 = scalar_lea.vmem %s1, 32
      %v2580 = vld [vmem:[%s2579] sm:$0xf]
      %v2582 = vsel %vm225, %v2547, 0
      %v2585 = vsel %vm225, %v2548, 0
      %v2588 = vsel %vm225, %v2549, 0
      %v2591 = vsel %vm225, %v2550, 0
      %v2594 = vsel %vm225, %v2551, 0
      %v2597 = vsel %vm225, %v2552, 0
      %v2600 = vsel %vm225, %v2553, 0
      %v2603 = vsel %vm225, %v2554, 0
      %v2606 = vsel %vm225, %v2555, 0
      %v2609 = vsel %vm225, %v2556, 0
      %v2612 = vsel %vm225, %v2557, 0
      %v2615 = vsel %vm225, %v2558, 0
      %v2618 = vsel %vm225, %v2559, 0
      %v2621 = vsel %vm225, %v2560, 0
      %v2624 = vsel %vm225, %v2561, 0
      %v2627 = vsel %vm225, %v2562, 0
      %v2630 = vsel %vm225, %v2563, 0
      %v2633 = vsel %vm225, %v2564, 0
      %v2636 = vsel %vm225, %v2565, 0
      %v2639 = vsel %vm225, %v2566, 0
      %v2642 = vsel %vm225, %v2567, 0
      %v2645 = vsel %vm225, %v2568, 0
      %v2648 = vsel %vm225, %v2569, 0
      %v2651 = vsel %vm225, %v2570, 0
      %v2654 = vsel %vm225, %v2571, 0
      %v2657 = vsel %vm225, %v2572, 0
      %v2660 = vsel %vm225, %v2573, 0
      %v2663 = vsel %vm225, %v2574, 0
      %v2666 = vsel %vm225, %v2575, 0
      %v2669 = vsel %vm225, %v2576, 0
      %v2672 = vsel %vm225, %v2577, 0
      %v2675 = vsel %vm225, %v2578, 0
      %v2678 = vsel %vm544, %v2580, 0
      %2680 = vmatpush.msra.mxu0 0.0
      %2681 = vmatpush.msra.mxu0 0.0
      %2682 = vmatpush.msra.mxu0 0.0
      %2683 = vmatpush.msra.mxu0 0.0
      %2684 = vmatpush.msra.mxu0 0.0
      %2685 = vmatpush.msra.mxu0 0.0
      %2686 = vmatpush.msra.mxu0 0.0
      %2687 = vmatpush.msra.mxu0 0.0
      %2688 = vmatpush.msra.mxu0 0.0
      %2689 = vmatpush.msra.mxu0 0.0
      %2690 = vmatpush.msra.mxu0 0.0
      %2691 = vmatpush.msra.mxu0 0.0
      %2692 = vmatpush.msra.mxu0 0.0
      %2693 = vmatpush.msra.mxu0 0.0
      %2694 = vmatpush.msra.mxu0 0.0
      %2695 = vmatpush.msra.mxu0 %v2678
      %2696 = vmatmul.f32.gmra.mxu0 %v2582
      %v2697 = vpop.f32.mrf.mxu0
      %v2698 = vadd.f32 0.0, %v2697
      %2699 = vmatmul.f32.gmra.mxu0 %v2585
      %v2700 = vpop.f32.mrf.mxu0
      %v2701 = vadd.f32 0.0, %v2700
      %2702 = vmatmul.f32.gmra.mxu0 %v2588
      %v2703 = vpop.f32.mrf.mxu0
      %v2704 = vadd.f32 0.0, %v2703
      %2705 = vmatmul.f32.gmra.mxu0 %v2591
      %v2706 = vpop.f32.mrf.mxu0
      %v2707 = vadd.f32 0.0, %v2706
      %2708 = vmatmul.f32.gmra.mxu0 %v2594
      %v2709 = vpop.f32.mrf.mxu0
      %v2710 = vadd.f32 0.0, %v2709
      %2711 = vmatmul.f32.gmra.mxu0 %v2597
      %v2712 = vpop.f32.mrf.mxu0
      %v2713 = vadd.f32 0.0, %v2712
      %2714 = vmatmul.f32.gmra.mxu0 %v2600
      %v2715 = vpop.f32.mrf.mxu0
      %v2716 = vadd.f32 0.0, %v2715
      %2717 = vmatmul.f32.gmra.mxu0 %v2603
      %v2718 = vpop.f32.mrf.mxu0
      %v2719 = vadd.f32 0.0, %v2718
      %2720 = vmatmul.f32.gmra.mxu0 %v2606
      %v2721 = vpop.f32.mrf.mxu0
      %v2722 = vadd.f32 0.0, %v2721
      %2723 = vmatmul.f32.gmra.mxu0 %v2609
      %v2724 = vpop.f32.mrf.mxu0
      %v2725 = vadd.f32 0.0, %v2724
      %2726 = vmatmul.f32.gmra.mxu0 %v2612
      %v2727 = vpop.f32.mrf.mxu0
      %v2728 = vadd.f32 0.0, %v2727
      %2729 = vmatmul.f32.gmra.mxu0 %v2615
      %v2730 = vpop.f32.mrf.mxu0
      %v2731 = vadd.f32 0.0, %v2730
      %2732 = vmatmul.f32.gmra.mxu0 %v2618
      %v2733 = vpop.f32.mrf.mxu0
      %v2734 = vadd.f32 0.0, %v2733
      %2735 = vmatmul.f32.gmra.mxu0 %v2621
      %v2736 = vpop.f32.mrf.mxu0
      %v2737 = vadd.f32 0.0, %v2736
      %2738 = vmatmul.f32.gmra.mxu0 %v2624
      %v2739 = vpop.f32.mrf.mxu0
      %v2740 = vadd.f32 0.0, %v2739
      %2741 = vmatmul.f32.gmra.mxu0 %v2627
      %v2742 = vpop.f32.mrf.mxu0
      %v2743 = vadd.f32 0.0, %v2742
      %2744 = vmatmul.f32.gmra.mxu0 %v2630
      %v2745 = vpop.f32.mrf.mxu0
      %v2746 = vadd.f32 0.0, %v2745
      %2747 = vmatmul.f32.gmra.mxu0 %v2633
      %v2748 = vpop.f32.mrf.mxu0
      %v2749 = vadd.f32 0.0, %v2748
      %2750 = vmatmul.f32.gmra.mxu0 %v2636
      %v2751 = vpop.f32.mrf.mxu0
      %v2752 = vadd.f32 0.0, %v2751
      %2753 = vmatmul.f32.gmra.mxu0 %v2639
      %v2754 = vpop.f32.mrf.mxu0
      %v2755 = vadd.f32 0.0, %v2754
      %2756 = vmatmul.f32.gmra.mxu0 %v2642
      %v2757 = vpop.f32.mrf.mxu0
      %v2758 = vadd.f32 0.0, %v2757
      %2759 = vmatmul.f32.gmra.mxu0 %v2645
      %v2760 = vpop.f32.mrf.mxu0
      %v2761 = vadd.f32 0.0, %v2760
      %2762 = vmatmul.f32.gmra.mxu0 %v2648
      %v2763 = vpop.f32.mrf.mxu0
      %v2764 = vadd.f32 0.0, %v2763
      %2765 = vmatmul.f32.gmra.mxu0 %v2651
      %v2766 = vpop.f32.mrf.mxu0
      %v2767 = vadd.f32 0.0, %v2766
      %2768 = vmatmul.f32.gmra.mxu0 %v2654
      %v2769 = vpop.f32.mrf.mxu0
      %v2770 = vadd.f32 0.0, %v2769
      %2771 = vmatmul.f32.gmra.mxu0 %v2657
      %v2772 = vpop.f32.mrf.mxu0
      %v2773 = vadd.f32 0.0, %v2772
      %2774 = vmatmul.f32.gmra.mxu0 %v2660
      %v2775 = vpop.f32.mrf.mxu0
      %v2776 = vadd.f32 0.0, %v2775
      %2777 = vmatmul.f32.gmra.mxu0 %v2663
      %v2778 = vpop.f32.mrf.mxu0
      %v2779 = vadd.f32 0.0, %v2778
      %2780 = vmatmul.f32.gmra.mxu0 %v2666
      %v2781 = vpop.f32.mrf.mxu0
      %v2782 = vadd.f32 0.0, %v2781
      %2783 = vmatmul.f32.gmra.mxu0 %v2669
      %v2784 = vpop.f32.mrf.mxu0
      %v2785 = vadd.f32 0.0, %v2784
      %2786 = vmatmul.f32.gmra.mxu0 %v2672
      %v2787 = vpop.f32.mrf.mxu0
      %v2788 = vadd.f32 0.0, %v2787
      %2789 = vmatmul.f32.gmra.mxu0 %v2675
      %v2790 = vpop.f32.mrf.mxu0
      %v2791 = vadd.f32 0.0, %v2790
      %2792 = vdwg.mxu0
      %v2793 = vadd.f32 %v2515, %v2698
      %v2794 = vadd.f32 %v2516, %v2701
      %v2795 = vadd.f32 %v2517, %v2704
      %v2796 = vadd.f32 %v2518, %v2707
      %v2797 = vadd.f32 %v2519, %v2710
      %v2798 = vadd.f32 %v2520, %v2713
      %v2799 = vadd.f32 %v2521, %v2716
      %v2800 = vadd.f32 %v2522, %v2719
      %v2801 = vadd.f32 %v2523, %v2722
      %v2802 = vadd.f32 %v2524, %v2725
      %v2803 = vadd.f32 %v2525, %v2728
      %v2804 = vadd.f32 %v2526, %v2731
      %v2805 = vadd.f32 %v2527, %v2734
      %v2806 = vadd.f32 %v2528, %v2737
      %v2807 = vadd.f32 %v2529, %v2740
      %v2808 = vadd.f32 %v2530, %v2743
      %v2809 = vadd.f32 %v2531, %v2746
      %v2810 = vadd.f32 %v2532, %v2749
      %v2811 = vadd.f32 %v2533, %v2752
      %v2812 = vadd.f32 %v2534, %v2755
      %v2813 = vadd.f32 %v2535, %v2758
      %v2814 = vadd.f32 %v2536, %v2761
      %v2815 = vadd.f32 %v2537, %v2764
      %v2816 = vadd.f32 %v2538, %v2767
      %v2817 = vadd.f32 %v2539, %v2770
      %v2818 = vadd.f32 %v2540, %v2773
      %v2819 = vadd.f32 %v2541, %v2776
      %v2820 = vadd.f32 %v2542, %v2779
      %v2821 = vadd.f32 %v2543, %v2782
      %v2822 = vadd.f32 %v2544, %v2785
      %v2823 = vadd.f32 %v2545, %v2788
      %v2824 = vadd.f32 %v2546, %v2791
      %v2825 = vld [vmem:[%s3] sm:$0x1]
      %v2827 = vperm.slane %v2825, 0
      %v2829 = vadd.f32 %v2793, %v2827
      %v2830 = vadd.f32 %v2794, %v2827
      %v2831 = vadd.f32 %v2795, %v2827
      %v2832 = vadd.f32 %v2796, %v2827
      %v2833 = vadd.f32 %v2797, %v2827
      %v2834 = vadd.f32 %v2798, %v2827
      %v2835 = vadd.f32 %v2799, %v2827
      %v2836 = vadd.f32 %v2800, %v2827
      %v2837 = vadd.f32 %v2801, %v2827
      %v2838 = vadd.f32 %v2802, %v2827
      %v2839 = vadd.f32 %v2803, %v2827
      %v2840 = vadd.f32 %v2804, %v2827
      %v2841 = vadd.f32 %v2805, %v2827
      %v2842 = vadd.f32 %v2806, %v2827
      %v2843 = vadd.f32 %v2807, %v2827
      %v2844 = vadd.f32 %v2808, %v2827
      %v2845 = vadd.f32 %v2809, %v2827
      %v2846 = vadd.f32 %v2810, %v2827
      %v2847 = vadd.f32 %v2811, %v2827
      %v2848 = vadd.f32 %v2812, %v2827
      %v2849 = vadd.f32 %v2813, %v2827
      %v2850 = vadd.f32 %v2814, %v2827
      %v2851 = vadd.f32 %v2815, %v2827
      %v2852 = vadd.f32 %v2816, %v2827
      %v2853 = vadd.f32 %v2817, %v2827
      %v2854 = vadd.f32 %v2818, %v2827
      %v2855 = vadd.f32 %v2819, %v2827
      %v2856 = vadd.f32 %v2820, %v2827
      %v2857 = vadd.f32 %v2821, %v2827
      %v2858 = vadd.f32 %v2822, %v2827
      %v2859 = vadd.f32 %v2823, %v2827
      %v2860 = vadd.f32 %v2824, %v2827
      %v2861 = vmax.f32 %v2829, 0.0
      %v2862 = vmax.f32 %v2830, 0.0
      %v2863 = vmax.f32 %v2831, 0.0
      %v2864 = vmax.f32 %v2832, 0.0
      %v2865 = vmax.f32 %v2833, 0.0
      %v2866 = vmax.f32 %v2834, 0.0
      %v2867 = vmax.f32 %v2835, 0.0
      %v2868 = vmax.f32 %v2836, 0.0
      %v2869 = vmax.f32 %v2837, 0.0
      %v2870 = vmax.f32 %v2838, 0.0
      %v2871 = vmax.f32 %v2839, 0.0
      %v2872 = vmax.f32 %v2840, 0.0
      %v2873 = vmax.f32 %v2841, 0.0
      %v2874 = vmax.f32 %v2842, 0.0
      %v2875 = vmax.f32 %v2843, 0.0
      %v2876 = vmax.f32 %v2844, 0.0
      %v2877 = vmax.f32 %v2845, 0.0
      %v2878 = vmax.f32 %v2846, 0.0
      %v2879 = vmax.f32 %v2847, 0.0
      %v2880 = vmax.f32 %v2848, 0.0
      %v2881 = vmax.f32 %v2849, 0.0
      %v2882 = vmax.f32 %v2850, 0.0
      %v2883 = vmax.f32 %v2851, 0.0
      %v2884 = vmax.f32 %v2852, 0.0
      %v2885 = vmax.f32 %v2853, 0.0
      %v2886 = vmax.f32 %v2854, 0.0
      %v2887 = vmax.f32 %v2855, 0.0
      %v2888 = vmax.f32 %v2856, 0.0
      %v2889 = vmax.f32 %v2857, 0.0
      %v2890 = vmax.f32 %v2858, 0.0
      %v2891 = vmax.f32 %v2859, 0.0
      %v2892 = vmax.f32 %v2860, 0.0
      %s2893 = scalar_lea.vmem [#allocation3], %s1152
      %2894 = vst.msk [vmem:[%s2893 + $0x1] sm:$0xff] %vm225, %v2861
      %2895 = vst.msk [vmem:[%s2893 + $0x9] sm:$0xff] %vm225, %v2862
      %2896 = vst.msk [vmem:[%s2893 + $0x19] sm:$0xff] %vm225, %v2863
      %2897 = vst.msk [vmem:[%s2893 + $0x21] sm:$0xff] %vm225, %v2864
      %2898 = vst.msk [vmem:[%s2893 + $0x31] sm:$0xff] %vm225, %v2865
      %2899 = vst.msk [vmem:[%s2893 + $0x39] sm:$0xff] %vm225, %v2866
      %2900 = vst.msk [vmem:[%s2893 + $0x49] sm:$0xff] %vm225, %v2867
      %2901 = vst.msk [vmem:[%s2893 + $0x51] sm:$0xff] %vm225, %v2868
      %2902 = vst.msk [vmem:[%s2893 + $0x61] sm:$0xff] %vm225, %v2869
      %2903 = vst.msk [vmem:[%s2893 + $0x69] sm:$0xff] %vm225, %v2870
      %2904 = vst.msk [vmem:[%s2893 + $0x79] sm:$0xff] %vm225, %v2871
      %2905 = vst.msk [vmem:[%s2893 + $0x81] sm:$0xff] %vm225, %v2872
      %2906 = vst.msk [vmem:[%s2893 + $0x91] sm:$0xff] %vm225, %v2873
      %2907 = vst.msk [vmem:[%s2893 + $0x99] sm:$0xff] %vm225, %v2874
      %2908 = vst.msk [vmem:[%s2893 + $0xa9] sm:$0xff] %vm225, %v2875
      %2909 = vst.msk [vmem:[%s2893 + $0xb1] sm:$0xff] %vm225, %v2876
      %2910 = vst.msk [vmem:[%s2893 + $0xc1] sm:$0xff] %vm225, %v2877
      %2911 = vst.msk [vmem:[%s2893 + $0xc9] sm:$0xff] %vm225, %v2878
      %2912 = vst.msk [vmem:[%s2893 + $0xd9] sm:$0xff] %vm225, %v2879
      %2913 = vst.msk [vmem:[%s2893 + $0xe1] sm:$0xff] %vm225, %v2880
      %2914 = vst.msk [vmem:[%s2893 + $0xf1] sm:$0xff] %vm225, %v2881
      %2915 = vst.msk [vmem:[%s2893 + $0xf9] sm:$0xff] %vm225, %v2882
      %2916 = vst.msk [vmem:[%s2893 + $0x109] sm:$0xff] %vm225, %v2883
      %2917 = vst.msk [vmem:[%s2893 + $0x111] sm:$0xff] %vm225, %v2884
      %2918 = vst.msk [vmem:[%s2893 + $0x121] sm:$0xff] %vm225, %v2885
      %2919 = vst.msk [vmem:[%s2893 + $0x129] sm:$0xff] %vm225, %v2886
      %2920 = vst.msk [vmem:[%s2893 + $0x139] sm:$0xff] %vm225, %v2887
      %2921 = vst.msk [vmem:[%s2893 + $0x141] sm:$0xff] %vm225, %v2888
      %2922 = vst.msk [vmem:[%s2893 + $0x151] sm:$0xff] %vm225, %v2889
      %2923 = vst.msk [vmem:[%s2893 + $0x159] sm:$0xff] %vm225, %v2890
      %2924 = vst.msk [vmem:[%s2893 + $0x169] sm:$0xff] %vm225, %v2891
      %2925 = vst.msk [vmem:[%s2893 + $0x171] sm:$0xff] %vm225, %v2892
      %s2926 = scalar_lea.vmem [#allocation3], %s379
      %v2927 = vld [vmem:[%s2926] sm:$0xff]
      %v2928 = vld [vmem:[%s2926 + $0x8] sm:$0xff]
      %v2929 = vld [vmem:[%s2926 + $0x18] sm:$0xff]
      %v2930 = vld [vmem:[%s2926 + $0x20] sm:$0xff]
      %v2931 = vld [vmem:[%s2926 + $0x30] sm:$0xff]
      %v2932 = vld [vmem:[%s2926 + $0x38] sm:$0xff]
      %v2933 = vld [vmem:[%s2926 + $0x48] sm:$0xff]
      %v2934 = vld [vmem:[%s2926 + $0x50] sm:$0xff]
      %v2935 = vld [vmem:[%s2926 + $0x60] sm:$0xff]
      %v2936 = vld [vmem:[%s2926 + $0x68] sm:$0xff]
      %v2937 = vld [vmem:[%s2926 + $0x78] sm:$0xff]
      %v2938 = vld [vmem:[%s2926 + $0x80] sm:$0xff]
      %v2939 = vld [vmem:[%s2926 + $0x90] sm:$0xff]
      %v2940 = vld [vmem:[%s2926 + $0x98] sm:$0xff]
      %v2941 = vld [vmem:[%s2926 + $0xa8] sm:$0xff]
      %v2942 = vld [vmem:[%s2926 + $0xb0] sm:$0xff]
      %v2943 = vld [vmem:[%s2926 + $0xc0] sm:$0xff]
      %v2944 = vld [vmem:[%s2926 + $0xc8] sm:$0xff]
      %v2945 = vld [vmem:[%s2926 + $0xd8] sm:$0xff]
      %v2946 = vld [vmem:[%s2926 + $0xe0] sm:$0xff]
      %v2947 = vld [vmem:[%s2926 + $0xf0] sm:$0xff]
      %v2948 = vld [vmem:[%s2926 + $0xf8] sm:$0xff]
      %v2949 = vld [vmem:[%s2926 + $0x108] sm:$0xff]
      %v2950 = vld [vmem:[%s2926 + $0x110] sm:$0xff]
      %v2951 = vld [vmem:[%s2926 + $0x120] sm:$0xff]
      %v2952 = vld [vmem:[%s2926 + $0x128] sm:$0xff]
      %v2953 = vld [vmem:[%s2926 + $0x138] sm:$0xff]
      %v2954 = vld [vmem:[%s2926 + $0x140] sm:$0xff]
      %v2955 = vld [vmem:[%s2926 + $0x150] sm:$0xff]
      %v2956 = vld [vmem:[%s2926 + $0x158] sm:$0xff]
      %v2957 = vld [vmem:[%s2926 + $0x168] sm:$0xff]
      %v2958 = vld [vmem:[%s2926 + $0x170] sm:$0xff]
      %v2959 = vld [vmem:[%s2] sm:$0xf]
      %v2960 = vld [vmem:[%s2926 + $0x1] sm:$0xff]
      %v2961 = vld [vmem:[%s2926 + $0x9] sm:$0xff]
      %v2962 = vld [vmem:[%s2926 + $0x19] sm:$0xff]
      %v2963 = vld [vmem:[%s2926 + $0x21] sm:$0xff]
      %v2964 = vld [vmem:[%s2926 + $0x31] sm:$0xff]
      %v2965 = vld [vmem:[%s2926 + $0x39] sm:$0xff]
      %v2966 = vld [vmem:[%s2926 + $0x49] sm:$0xff]
      %v2967 = vld [vmem:[%s2926 + $0x51] sm:$0xff]
      %v2968 = vld [vmem:[%s2926 + $0x61] sm:$0xff]
      %v2969 = vld [vmem:[%s2926 + $0x69] sm:$0xff]
      %v2970 = vld [vmem:[%s2926 + $0x79] sm:$0xff]
      %v2971 = vld [vmem:[%s2926 + $0x81] sm:$0xff]
      %v2972 = vld [vmem:[%s2926 + $0x91] sm:$0xff]
      %v2973 = vld [vmem:[%s2926 + $0x99] sm:$0xff]
      %v2974 = vld [vmem:[%s2926 + $0xa9] sm:$0xff]
      %v2975 = vld [vmem:[%s2926 + $0xb1] sm:$0xff]
      %v2976 = vld [vmem:[%s2926 + $0xc1] sm:$0xff]
      %v2977 = vld [vmem:[%s2926 + $0xc9] sm:$0xff]
      %v2978 = vld [vmem:[%s2926 + $0xd9] sm:$0xff]
      %v2979 = vld [vmem:[%s2926 + $0xe1] sm:$0xff]
      %v2980 = vld [vmem:[%s2926 + $0xf1] sm:$0xff]
      %v2981 = vld [vmem:[%s2926 + $0xf9] sm:$0xff]
      %v2982 = vld [vmem:[%s2926 + $0x109] sm:$0xff]
      %v2983 = vld [vmem:[%s2926 + $0x111] sm:$0xff]
      %v2984 = vld [vmem:[%s2926 + $0x121] sm:$0xff]
      %v2985 = vld [vmem:[%s2926 + $0x129] sm:$0xff]
      %v2986 = vld [vmem:[%s2926 + $0x139] sm:$0xff]
      %v2987 = vld [vmem:[%s2926 + $0x141] sm:$0xff]
      %v2988 = vld [vmem:[%s2926 + $0x151] sm:$0xff]
      %v2989 = vld [vmem:[%s2926 + $0x159] sm:$0xff]
      %v2990 = vld [vmem:[%s2926 + $0x169] sm:$0xff]
      %v2991 = vld [vmem:[%s2926 + $0x171] sm:$0xff]
      %s2992 = scalar_lea.vmem %s2, 4
      %v2993 = vld [vmem:[%s2992] sm:$0xf]
      %v2995 = vsel %vm225, %v2960, 0
      %v2998 = vsel %vm225, %v2961, 0
      %v3001 = vsel %vm225, %v2962, 0
      %v3004 = vsel %vm225, %v2963, 0
      %v3007 = vsel %vm225, %v2964, 0
      %v3010 = vsel %vm225, %v2965, 0
      %v3013 = vsel %vm225, %v2966, 0
      %v3016 = vsel %vm225, %v2967, 0
      %v3019 = vsel %vm225, %v2968, 0
      %v3022 = vsel %vm225, %v2969, 0
      %v3025 = vsel %vm225, %v2970, 0
      %v3028 = vsel %vm225, %v2971, 0
      %v3031 = vsel %vm225, %v2972, 0
      %v3034 = vsel %vm225, %v2973, 0
      %v3037 = vsel %vm225, %v2974, 0
      %v3040 = vsel %vm225, %v2975, 0
      %v3043 = vsel %vm225, %v2976, 0
      %v3046 = vsel %vm225, %v2977, 0
      %v3049 = vsel %vm225, %v2978, 0
      %v3052 = vsel %vm225, %v2979, 0
      %v3055 = vsel %vm225, %v2980, 0
      %v3058 = vsel %vm225, %v2981, 0
      %v3061 = vsel %vm225, %v2982, 0
      %v3064 = vsel %vm225, %v2983, 0
      %v3067 = vsel %vm225, %v2984, 0
      %v3070 = vsel %vm225, %v2985, 0
      %v3073 = vsel %vm225, %v2986, 0
      %v3076 = vsel %vm225, %v2987, 0
      %v3079 = vsel %vm225, %v2988, 0
      %v3082 = vsel %vm225, %v2989, 0
      %v3085 = vsel %vm225, %v2990, 0
      %v3088 = vsel %vm225, %v2991, 0
      %v3091 = vsel %vm544, %v2993, 0
      %3093 = vmatpush.msra.mxu0 0.0
      %3094 = vmatpush.msra.mxu0 0.0
      %3095 = vmatpush.msra.mxu0 0.0
      %3096 = vmatpush.msra.mxu0 0.0
      %3097 = vmatpush.msra.mxu0 0.0
      %3098 = vmatpush.msra.mxu0 0.0
      %3099 = vmatpush.msra.mxu0 0.0
      %3100 = vmatpush.msra.mxu0 0.0
      %3101 = vmatpush.msra.mxu0 0.0
      %3102 = vmatpush.msra.mxu0 0.0
      %3103 = vmatpush.msra.mxu0 0.0
      %3104 = vmatpush.msra.mxu0 0.0
      %3105 = vmatpush.msra.mxu0 0.0
      %3106 = vmatpush.msra.mxu0 0.0
      %3107 = vmatpush.msra.mxu0 0.0
      %3108 = vmatpush.msra.mxu0 %v3091
      %3109 = vmatmul.f32.gmra.mxu0 %v2995
      %v3110 = vpop.f32.mrf.mxu0
      %v3111 = vadd.f32 0.0, %v3110
      %3112 = vmatmul.f32.gmra.mxu0 %v2998
      %v3113 = vpop.f32.mrf.mxu0
      %v3114 = vadd.f32 0.0, %v3113
      %3115 = vmatmul.f32.gmra.mxu0 %v3001
      %v3116 = vpop.f32.mrf.mxu0
      %v3117 = vadd.f32 0.0, %v3116
      %3118 = vmatmul.f32.gmra.mxu0 %v3004
      %v3119 = vpop.f32.mrf.mxu0
      %v3120 = vadd.f32 0.0, %v3119
      %3121 = vmatmul.f32.gmra.mxu0 %v3007
      %v3122 = vpop.f32.mrf.mxu0
      %v3123 = vadd.f32 0.0, %v3122
      %3124 = vmatmul.f32.gmra.mxu0 %v3010
      %v3125 = vpop.f32.mrf.mxu0
      %v3126 = vadd.f32 0.0, %v3125
      %3127 = vmatmul.f32.gmra.mxu0 %v3013
      %v3128 = vpop.f32.mrf.mxu0
      %v3129 = vadd.f32 0.0, %v3128
      %3130 = vmatmul.f32.gmra.mxu0 %v3016
      %v3131 = vpop.f32.mrf.mxu0
      %v3132 = vadd.f32 0.0, %v3131
      %3133 = vmatmul.f32.gmra.mxu0 %v3019
      %v3134 = vpop.f32.mrf.mxu0
      %v3135 = vadd.f32 0.0, %v3134
      %3136 = vmatmul.f32.gmra.mxu0 %v3022
      %v3137 = vpop.f32.mrf.mxu0
      %v3138 = vadd.f32 0.0, %v3137
      %3139 = vmatmul.f32.gmra.mxu0 %v3025
      %v3140 = vpop.f32.mrf.mxu0
      %v3141 = vadd.f32 0.0, %v3140
      %3142 = vmatmul.f32.gmra.mxu0 %v3028
      %v3143 = vpop.f32.mrf.mxu0
      %v3144 = vadd.f32 0.0, %v3143
      %3145 = vmatmul.f32.gmra.mxu0 %v3031
      %v3146 = vpop.f32.mrf.mxu0
      %v3147 = vadd.f32 0.0, %v3146
      %3148 = vmatmul.f32.gmra.mxu0 %v3034
      %v3149 = vpop.f32.mrf.mxu0
      %v3150 = vadd.f32 0.0, %v3149
      %3151 = vmatmul.f32.gmra.mxu0 %v3037
      %v3152 = vpop.f32.mrf.mxu0
      %v3153 = vadd.f32 0.0, %v3152
      %3154 = vmatmul.f32.gmra.mxu0 %v3040
      %v3155 = vpop.f32.mrf.mxu0
      %v3156 = vadd.f32 0.0, %v3155
      %3157 = vmatmul.f32.gmra.mxu0 %v3043
      %v3158 = vpop.f32.mrf.mxu0
      %v3159 = vadd.f32 0.0, %v3158
      %3160 = vmatmul.f32.gmra.mxu0 %v3046
      %v3161 = vpop.f32.mrf.mxu0
      %v3162 = vadd.f32 0.0, %v3161
      %3163 = vmatmul.f32.gmra.mxu0 %v3049
      %v3164 = vpop.f32.mrf.mxu0
      %v3165 = vadd.f32 0.0, %v3164
      %3166 = vmatmul.f32.gmra.mxu0 %v3052
      %v3167 = vpop.f32.mrf.mxu0
      %v3168 = vadd.f32 0.0, %v3167
      %3169 = vmatmul.f32.gmra.mxu0 %v3055
      %v3170 = vpop.f32.mrf.mxu0
      %v3171 = vadd.f32 0.0, %v3170
      %3172 = vmatmul.f32.gmra.mxu0 %v3058
      %v3173 = vpop.f32.mrf.mxu0
      %v3174 = vadd.f32 0.0, %v3173
      %3175 = vmatmul.f32.gmra.mxu0 %v3061
      %v3176 = vpop.f32.mrf.mxu0
      %v3177 = vadd.f32 0.0, %v3176
      %3178 = vmatmul.f32.gmra.mxu0 %v3064
      %v3179 = vpop.f32.mrf.mxu0
      %v3180 = vadd.f32 0.0, %v3179
      %3181 = vmatmul.f32.gmra.mxu0 %v3067
      %v3182 = vpop.f32.mrf.mxu0
      %v3183 = vadd.f32 0.0, %v3182
      %3184 = vmatmul.f32.gmra.mxu0 %v3070
      %v3185 = vpop.f32.mrf.mxu0
      %v3186 = vadd.f32 0.0, %v3185
      %3187 = vmatmul.f32.gmra.mxu0 %v3073
      %v3188 = vpop.f32.mrf.mxu0
      %v3189 = vadd.f32 0.0, %v3188
      %3190 = vmatmul.f32.gmra.mxu0 %v3076
      %v3191 = vpop.f32.mrf.mxu0
      %v3192 = vadd.f32 0.0, %v3191
      %3193 = vmatmul.f32.gmra.mxu0 %v3079
      %v3194 = vpop.f32.mrf.mxu0
      %v3195 = vadd.f32 0.0, %v3194
      %3196 = vmatmul.f32.gmra.mxu0 %v3082
      %v3197 = vpop.f32.mrf.mxu0
      %v3198 = vadd.f32 0.0, %v3197
      %3199 = vmatmul.f32.gmra.mxu0 %v3085
      %v3200 = vpop.f32.mrf.mxu0
      %v3201 = vadd.f32 0.0, %v3200
      %3202 = vmatmul.f32.gmra.mxu0 %v3088
      %v3203 = vpop.f32.mrf.mxu0
      %v3204 = vadd.f32 0.0, %v3203
      %3205 = vdwg.mxu0
      %v3207 = vsel %vm225, %v2927, 0
      %v3210 = vsel %vm225, %v2928, 0
      %v3213 = vsel %vm225, %v2929, 0
      %v3216 = vsel %vm225, %v2930, 0
      %v3219 = vsel %vm225, %v2931, 0
      %v3222 = vsel %vm225, %v2932, 0
      %v3225 = vsel %vm225, %v2933, 0
      %v3228 = vsel %vm225, %v2934, 0
      %v3231 = vsel %vm225, %v2935, 0
      %v3234 = vsel %vm225, %v2936, 0
      %v3237 = vsel %vm225, %v2937, 0
      %v3240 = vsel %vm225, %v2938, 0
      %v3243 = vsel %vm225, %v2939, 0
      %v3246 = vsel %vm225, %v2940, 0
      %v3249 = vsel %vm225, %v2941, 0
      %v3252 = vsel %vm225, %v2942, 0
      %v3255 = vsel %vm225, %v2943, 0
      %v3258 = vsel %vm225, %v2944, 0
      %v3261 = vsel %vm225, %v2945, 0
      %v3264 = vsel %vm225, %v2946, 0
      %v3267 = vsel %vm225, %v2947, 0
      %v3270 = vsel %vm225, %v2948, 0
      %v3273 = vsel %vm225, %v2949, 0
      %v3276 = vsel %vm225, %v2950, 0
      %v3279 = vsel %vm225, %v2951, 0
      %v3282 = vsel %vm225, %v2952, 0
      %v3285 = vsel %vm225, %v2953, 0
      %v3288 = vsel %vm225, %v2954, 0
      %v3291 = vsel %vm225, %v2955, 0
      %v3294 = vsel %vm225, %v2956, 0
      %v3297 = vsel %vm225, %v2957, 0
      %v3300 = vsel %vm225, %v2958, 0
      %v3303 = vsel %vm544, %v2959, 0
      %3305 = vmatpush.msra.mxu0 0.0
      %3306 = vmatpush.msra.mxu0 0.0
      %3307 = vmatpush.msra.mxu0 0.0
      %3308 = vmatpush.msra.mxu0 0.0
      %3309 = vmatpush.msra.mxu0 0.0
      %3310 = vmatpush.msra.mxu0 0.0
      %3311 = vmatpush.msra.mxu0 0.0
      %3312 = vmatpush.msra.mxu0 0.0
      %3313 = vmatpush.msra.mxu0 0.0
      %3314 = vmatpush.msra.mxu0 0.0
      %3315 = vmatpush.msra.mxu0 0.0
      %3316 = vmatpush.msra.mxu0 0.0
      %3317 = vmatpush.msra.mxu0 0.0
      %3318 = vmatpush.msra.mxu0 0.0
      %3319 = vmatpush.msra.mxu0 0.0
      %3320 = vmatpush.msra.mxu0 %v3303
      %3321 = vmatmul.f32.gmra.mxu0 %v3207
      %v3322 = vpop.f32.mrf.mxu0
      %v3323 = vadd.f32 %v3111, %v3322
      %3324 = vmatmul.f32.gmra.mxu0 %v3210
      %v3325 = vpop.f32.mrf.mxu0
      %v3326 = vadd.f32 %v3114, %v3325
      %3327 = vmatmul.f32.gmra.mxu0 %v3213
      %v3328 = vpop.f32.mrf.mxu0
      %v3329 = vadd.f32 %v3117, %v3328
      %3330 = vmatmul.f32.gmra.mxu0 %v3216
      %v3331 = vpop.f32.mrf.mxu0
      %v3332 = vadd.f32 %v3120, %v3331
      %3333 = vmatmul.f32.gmra.mxu0 %v3219
      %v3334 = vpop.f32.mrf.mxu0
      %v3335 = vadd.f32 %v3123, %v3334
      %3336 = vmatmul.f32.gmra.mxu0 %v3222
      %v3337 = vpop.f32.mrf.mxu0
      %v3338 = vadd.f32 %v3126, %v3337
      %3339 = vmatmul.f32.gmra.mxu0 %v3225
      %v3340 = vpop.f32.mrf.mxu0
      %v3341 = vadd.f32 %v3129, %v3340
      %3342 = vmatmul.f32.gmra.mxu0 %v3228
      %v3343 = vpop.f32.mrf.mxu0
      %v3344 = vadd.f32 %v3132, %v3343
      %3345 = vmatmul.f32.gmra.mxu0 %v3231
      %v3346 = vpop.f32.mrf.mxu0
      %v3347 = vadd.f32 %v3135, %v3346
      %3348 = vmatmul.f32.gmra.mxu0 %v3234
      %v3349 = vpop.f32.mrf.mxu0
      %v3350 = vadd.f32 %v3138, %v3349
      %3351 = vmatmul.f32.gmra.mxu0 %v3237
      %v3352 = vpop.f32.mrf.mxu0
      %v3353 = vadd.f32 %v3141, %v3352
      %3354 = vmatmul.f32.gmra.mxu0 %v3240
      %v3355 = vpop.f32.mrf.mxu0
      %v3356 = vadd.f32 %v3144, %v3355
      %3357 = vmatmul.f32.gmra.mxu0 %v3243
      %v3358 = vpop.f32.mrf.mxu0
      %v3359 = vadd.f32 %v3147, %v3358
      %3360 = vmatmul.f32.gmra.mxu0 %v3246
      %v3361 = vpop.f32.mrf.mxu0
      %v3362 = vadd.f32 %v3150, %v3361
      %3363 = vmatmul.f32.gmra.mxu0 %v3249
      %v3364 = vpop.f32.mrf.mxu0
      %v3365 = vadd.f32 %v3153, %v3364
      %3366 = vmatmul.f32.gmra.mxu0 %v3252
      %v3367 = vpop.f32.mrf.mxu0
      %v3368 = vadd.f32 %v3156, %v3367
      %3369 = vmatmul.f32.gmra.mxu0 %v3255
      %v3370 = vpop.f32.mrf.mxu0
      %v3371 = vadd.f32 %v3159, %v3370
      %3372 = vmatmul.f32.gmra.mxu0 %v3258
      %v3373 = vpop.f32.mrf.mxu0
      %v3374 = vadd.f32 %v3162, %v3373
      %3375 = vmatmul.f32.gmra.mxu0 %v3261
      %v3376 = vpop.f32.mrf.mxu0
      %v3377 = vadd.f32 %v3165, %v3376
      %3378 = vmatmul.f32.gmra.mxu0 %v3264
      %v3379 = vpop.f32.mrf.mxu0
      %v3380 = vadd.f32 %v3168, %v3379
      %3381 = vmatmul.f32.gmra.mxu0 %v3267
      %v3382 = vpop.f32.mrf.mxu0
      %v3383 = vadd.f32 %v3171, %v3382
      %3384 = vmatmul.f32.gmra.mxu0 %v3270
      %v3385 = vpop.f32.mrf.mxu0
      %v3386 = vadd.f32 %v3174, %v3385
      %3387 = vmatmul.f32.gmra.mxu0 %v3273
      %v3388 = vpop.f32.mrf.mxu0
      %v3389 = vadd.f32 %v3177, %v3388
      %3390 = vmatmul.f32.gmra.mxu0 %v3276
      %v3391 = vpop.f32.mrf.mxu0
      %v3392 = vadd.f32 %v3180, %v3391
      %3393 = vmatmul.f32.gmra.mxu0 %v3279
      %v3394 = vpop.f32.mrf.mxu0
      %v3395 = vadd.f32 %v3183, %v3394
      %3396 = vmatmul.f32.gmra.mxu0 %v3282
      %v3397 = vpop.f32.mrf.mxu0
      %v3398 = vadd.f32 %v3186, %v3397
      %3399 = vmatmul.f32.gmra.mxu0 %v3285
      %v3400 = vpop.f32.mrf.mxu0
      %v3401 = vadd.f32 %v3189, %v3400
      %3402 = vmatmul.f32.gmra.mxu0 %v3288
      %v3403 = vpop.f32.mrf.mxu0
      %v3404 = vadd.f32 %v3192, %v3403
      %3405 = vmatmul.f32.gmra.mxu0 %v3291
      %v3406 = vpop.f32.mrf.mxu0
      %v3407 = vadd.f32 %v3195, %v3406
      %3408 = vmatmul.f32.gmra.mxu0 %v3294
      %v3409 = vpop.f32.mrf.mxu0
      %v3410 = vadd.f32 %v3198, %v3409
      %3411 = vmatmul.f32.gmra.mxu0 %v3297
      %v3412 = vpop.f32.mrf.mxu0
      %v3413 = vadd.f32 %v3201, %v3412
      %3414 = vmatmul.f32.gmra.mxu0 %v3300
      %v3415 = vpop.f32.mrf.mxu0
      %v3416 = vadd.f32 %v3204, %v3415
      %3417 = vdwg.mxu0
      %v3418 = vld [vmem:[%s2926 + $0x2] sm:$0xff]
      %v3419 = vld [vmem:[%s2926 + $0xa] sm:$0xff]
      %v3420 = vld [vmem:[%s2926 + $0x1a] sm:$0xff]
      %v3421 = vld [vmem:[%s2926 + $0x22] sm:$0xff]
      %v3422 = vld [vmem:[%s2926 + $0x32] sm:$0xff]
      %v3423 = vld [vmem:[%s2926 + $0x3a] sm:$0xff]
      %v3424 = vld [vmem:[%s2926 + $0x4a] sm:$0xff]
      %v3425 = vld [vmem:[%s2926 + $0x52] sm:$0xff]
      %v3426 = vld [vmem:[%s2926 + $0x62] sm:$0xff]
      %v3427 = vld [vmem:[%s2926 + $0x6a] sm:$0xff]
      %v3428 = vld [vmem:[%s2926 + $0x7a] sm:$0xff]
      %v3429 = vld [vmem:[%s2926 + $0x82] sm:$0xff]
      %v3430 = vld [vmem:[%s2926 + $0x92] sm:$0xff]
      %v3431 = vld [vmem:[%s2926 + $0x9a] sm:$0xff]
      %v3432 = vld [vmem:[%s2926 + $0xaa] sm:$0xff]
      %v3433 = vld [vmem:[%s2926 + $0xb2] sm:$0xff]
      %v3434 = vld [vmem:[%s2926 + $0xc2] sm:$0xff]
      %v3435 = vld [vmem:[%s2926 + $0xca] sm:$0xff]
      %v3436 = vld [vmem:[%s2926 + $0xda] sm:$0xff]
      %v3437 = vld [vmem:[%s2926 + $0xe2] sm:$0xff]
      %v3438 = vld [vmem:[%s2926 + $0xf2] sm:$0xff]
      %v3439 = vld [vmem:[%s2926 + $0xfa] sm:$0xff]
      %v3440 = vld [vmem:[%s2926 + $0x10a] sm:$0xff]
      %v3441 = vld [vmem:[%s2926 + $0x112] sm:$0xff]
      %v3442 = vld [vmem:[%s2926 + $0x122] sm:$0xff]
      %v3443 = vld [vmem:[%s2926 + $0x12a] sm:$0xff]
      %v3444 = vld [vmem:[%s2926 + $0x13a] sm:$0xff]
      %v3445 = vld [vmem:[%s2926 + $0x142] sm:$0xff]
      %v3446 = vld [vmem:[%s2926 + $0x152] sm:$0xff]
      %v3447 = vld [vmem:[%s2926 + $0x15a] sm:$0xff]
      %v3448 = vld [vmem:[%s2926 + $0x16a] sm:$0xff]
      %v3449 = vld [vmem:[%s2926 + $0x172] sm:$0xff]
      %s3450 = scalar_lea.vmem %s2, 8
      %v3451 = vld [vmem:[%s3450] sm:$0xf]
      %v3453 = vsel %vm225, %v3418, 0
      %v3456 = vsel %vm225, %v3419, 0
      %v3459 = vsel %vm225, %v3420, 0
      %v3462 = vsel %vm225, %v3421, 0
      %v3465 = vsel %vm225, %v3422, 0
      %v3468 = vsel %vm225, %v3423, 0
      %v3471 = vsel %vm225, %v3424, 0
      %v3474 = vsel %vm225, %v3425, 0
      %v3477 = vsel %vm225, %v3426, 0
      %v3480 = vsel %vm225, %v3427, 0
      %v3483 = vsel %vm225, %v3428, 0
      %v3486 = vsel %vm225, %v3429, 0
      %v3489 = vsel %vm225, %v3430, 0
      %v3492 = vsel %vm225, %v3431, 0
      %v3495 = vsel %vm225, %v3432, 0
      %v3498 = vsel %vm225, %v3433, 0
      %v3501 = vsel %vm225, %v3434, 0
      %v3504 = vsel %vm225, %v3435, 0
      %v3507 = vsel %vm225, %v3436, 0
      %v3510 = vsel %vm225, %v3437, 0
      %v3513 = vsel %vm225, %v3438, 0
      %v3516 = vsel %vm225, %v3439, 0
      %v3519 = vsel %vm225, %v3440, 0
      %v3522 = vsel %vm225, %v3441, 0
      %v3525 = vsel %vm225, %v3442, 0
      %v3528 = vsel %vm225, %v3443, 0
      %v3531 = vsel %vm225, %v3444, 0
      %v3534 = vsel %vm225, %v3445, 0
      %v3537 = vsel %vm225, %v3446, 0
      %v3540 = vsel %vm225, %v3447, 0
      %v3543 = vsel %vm225, %v3448, 0
      %v3546 = vsel %vm225, %v3449, 0
      %v3549 = vsel %vm544, %v3451, 0
      %3551 = vmatpush.msra.mxu0 0.0
      %3552 = vmatpush.msra.mxu0 0.0
      %3553 = vmatpush.msra.mxu0 0.0
      %3554 = vmatpush.msra.mxu0 0.0
      %3555 = vmatpush.msra.mxu0 0.0
      %3556 = vmatpush.msra.mxu0 0.0
      %3557 = vmatpush.msra.mxu0 0.0
      %3558 = vmatpush.msra.mxu0 0.0
      %3559 = vmatpush.msra.mxu0 0.0
      %3560 = vmatpush.msra.mxu0 0.0
      %3561 = vmatpush.msra.mxu0 0.0
      %3562 = vmatpush.msra.mxu0 0.0
      %3563 = vmatpush.msra.mxu0 0.0
      %3564 = vmatpush.msra.mxu0 0.0
      %3565 = vmatpush.msra.mxu0 0.0
      %3566 = vmatpush.msra.mxu0 %v3549
      %3567 = vmatmul.f32.gmra.mxu0 %v3453
      %v3568 = vpop.f32.mrf.mxu0
      %v3569 = vadd.f32 0.0, %v3568
      %3570 = vmatmul.f32.gmra.mxu0 %v3456
      %v3571 = vpop.f32.mrf.mxu0
      %v3572 = vadd.f32 0.0, %v3571
      %3573 = vmatmul.f32.gmra.mxu0 %v3459
      %v3574 = vpop.f32.mrf.mxu0
      %v3575 = vadd.f32 0.0, %v3574
      %3576 = vmatmul.f32.gmra.mxu0 %v3462
      %v3577 = vpop.f32.mrf.mxu0
      %v3578 = vadd.f32 0.0, %v3577
      %3579 = vmatmul.f32.gmra.mxu0 %v3465
      %v3580 = vpop.f32.mrf.mxu0
      %v3581 = vadd.f32 0.0, %v3580
      %3582 = vmatmul.f32.gmra.mxu0 %v3468
      %v3583 = vpop.f32.mrf.mxu0
      %v3584 = vadd.f32 0.0, %v3583
      %3585 = vmatmul.f32.gmra.mxu0 %v3471
      %v3586 = vpop.f32.mrf.mxu0
      %v3587 = vadd.f32 0.0, %v3586
      %3588 = vmatmul.f32.gmra.mxu0 %v3474
      %v3589 = vpop.f32.mrf.mxu0
      %v3590 = vadd.f32 0.0, %v3589
      %3591 = vmatmul.f32.gmra.mxu0 %v3477
      %v3592 = vpop.f32.mrf.mxu0
      %v3593 = vadd.f32 0.0, %v3592
      %3594 = vmatmul.f32.gmra.mxu0 %v3480
      %v3595 = vpop.f32.mrf.mxu0
      %v3596 = vadd.f32 0.0, %v3595
      %3597 = vmatmul.f32.gmra.mxu0 %v3483
      %v3598 = vpop.f32.mrf.mxu0
      %v3599 = vadd.f32 0.0, %v3598
      %3600 = vmatmul.f32.gmra.mxu0 %v3486
      %v3601 = vpop.f32.mrf.mxu0
      %v3602 = vadd.f32 0.0, %v3601
      %3603 = vmatmul.f32.gmra.mxu0 %v3489
      %v3604 = vpop.f32.mrf.mxu0
      %v3605 = vadd.f32 0.0, %v3604
      %3606 = vmatmul.f32.gmra.mxu0 %v3492
      %v3607 = vpop.f32.mrf.mxu0
      %v3608 = vadd.f32 0.0, %v3607
      %3609 = vmatmul.f32.gmra.mxu0 %v3495
      %v3610 = vpop.f32.mrf.mxu0
      %v3611 = vadd.f32 0.0, %v3610
      %3612 = vmatmul.f32.gmra.mxu0 %v3498
      %v3613 = vpop.f32.mrf.mxu0
      %v3614 = vadd.f32 0.0, %v3613
      %3615 = vmatmul.f32.gmra.mxu0 %v3501
      %v3616 = vpop.f32.mrf.mxu0
      %v3617 = vadd.f32 0.0, %v3616
      %3618 = vmatmul.f32.gmra.mxu0 %v3504
      %v3619 = vpop.f32.mrf.mxu0
      %v3620 = vadd.f32 0.0, %v3619
      %3621 = vmatmul.f32.gmra.mxu0 %v3507
      %v3622 = vpop.f32.mrf.mxu0
      %v3623 = vadd.f32 0.0, %v3622
      %3624 = vmatmul.f32.gmra.mxu0 %v3510
      %v3625 = vpop.f32.mrf.mxu0
      %v3626 = vadd.f32 0.0, %v3625
      %3627 = vmatmul.f32.gmra.mxu0 %v3513
      %v3628 = vpop.f32.mrf.mxu0
      %v3629 = vadd.f32 0.0, %v3628
      %3630 = vmatmul.f32.gmra.mxu0 %v3516
      %v3631 = vpop.f32.mrf.mxu0
      %v3632 = vadd.f32 0.0, %v3631
      %3633 = vmatmul.f32.gmra.mxu0 %v3519
      %v3634 = vpop.f32.mrf.mxu0
      %v3635 = vadd.f32 0.0, %v3634
      %3636 = vmatmul.f32.gmra.mxu0 %v3522
      %v3637 = vpop.f32.mrf.mxu0
      %v3638 = vadd.f32 0.0, %v3637
      %3639 = vmatmul.f32.gmra.mxu0 %v3525
      %v3640 = vpop.f32.mrf.mxu0
      %v3641 = vadd.f32 0.0, %v3640
      %3642 = vmatmul.f32.gmra.mxu0 %v3528
      %v3643 = vpop.f32.mrf.mxu0
      %v3644 = vadd.f32 0.0, %v3643
      %3645 = vmatmul.f32.gmra.mxu0 %v3531
      %v3646 = vpop.f32.mrf.mxu0
      %v3647 = vadd.f32 0.0, %v3646
      %3648 = vmatmul.f32.gmra.mxu0 %v3534
      %v3649 = vpop.f32.mrf.mxu0
      %v3650 = vadd.f32 0.0, %v3649
      %3651 = vmatmul.f32.gmra.mxu0 %v3537
      %v3652 = vpop.f32.mrf.mxu0
      %v3653 = vadd.f32 0.0, %v3652
      %3654 = vmatmul.f32.gmra.mxu0 %v3540
      %v3655 = vpop.f32.mrf.mxu0
      %v3656 = vadd.f32 0.0, %v3655
      %3657 = vmatmul.f32.gmra.mxu0 %v3543
      %v3658 = vpop.f32.mrf.mxu0
      %v3659 = vadd.f32 0.0, %v3658
      %3660 = vmatmul.f32.gmra.mxu0 %v3546
      %v3661 = vpop.f32.mrf.mxu0
      %v3662 = vadd.f32 0.0, %v3661
      %3663 = vdwg.mxu0
      %v3664 = vadd.f32 %v3323, %v3569
      %v3665 = vadd.f32 %v3326, %v3572
      %v3666 = vadd.f32 %v3329, %v3575
      %v3667 = vadd.f32 %v3332, %v3578
      %v3668 = vadd.f32 %v3335, %v3581
      %v3669 = vadd.f32 %v3338, %v3584
      %v3670 = vadd.f32 %v3341, %v3587
      %v3671 = vadd.f32 %v3344, %v3590
      %v3672 = vadd.f32 %v3347, %v3593
      %v3673 = vadd.f32 %v3350, %v3596
      %v3674 = vadd.f32 %v3353, %v3599
      %v3675 = vadd.f32 %v3356, %v3602
      %v3676 = vadd.f32 %v3359, %v3605
      %v3677 = vadd.f32 %v3362, %v3608
      %v3678 = vadd.f32 %v3365, %v3611
      %v3679 = vadd.f32 %v3368, %v3614
      %v3680 = vadd.f32 %v3371, %v3617
      %v3681 = vadd.f32 %v3374, %v3620
      %v3682 = vadd.f32 %v3377, %v3623
      %v3683 = vadd.f32 %v3380, %v3626
      %v3684 = vadd.f32 %v3383, %v3629
      %v3685 = vadd.f32 %v3386, %v3632
      %v3686 = vadd.f32 %v3389, %v3635
      %v3687 = vadd.f32 %v3392, %v3638
      %v3688 = vadd.f32 %v3395, %v3641
      %v3689 = vadd.f32 %v3398, %v3644
      %v3690 = vadd.f32 %v3401, %v3647
      %v3691 = vadd.f32 %v3404, %v3650
      %v3692 = vadd.f32 %v3407, %v3653
      %v3693 = vadd.f32 %v3410, %v3656
      %v3694 = vadd.f32 %v3413, %v3659
      %v3695 = vadd.f32 %v3416, %v3662
      %v3696 = vld [vmem:[%s2893] sm:$0xff]
      %v3697 = vld [vmem:[%s2893 + $0x8] sm:$0xff]
      %v3698 = vld [vmem:[%s2893 + $0x18] sm:$0xff]
      %v3699 = vld [vmem:[%s2893 + $0x20] sm:$0xff]
      %v3700 = vld [vmem:[%s2893 + $0x30] sm:$0xff]
      %v3701 = vld [vmem:[%s2893 + $0x38] sm:$0xff]
      %v3702 = vld [vmem:[%s2893 + $0x48] sm:$0xff]
      %v3703 = vld [vmem:[%s2893 + $0x50] sm:$0xff]
      %v3704 = vld [vmem:[%s2893 + $0x60] sm:$0xff]
      %v3705 = vld [vmem:[%s2893 + $0x68] sm:$0xff]
      %v3706 = vld [vmem:[%s2893 + $0x78] sm:$0xff]
      %v3707 = vld [vmem:[%s2893 + $0x80] sm:$0xff]
      %v3708 = vld [vmem:[%s2893 + $0x90] sm:$0xff]
      %v3709 = vld [vmem:[%s2893 + $0x98] sm:$0xff]
      %v3710 = vld [vmem:[%s2893 + $0xa8] sm:$0xff]
      %v3711 = vld [vmem:[%s2893 + $0xb0] sm:$0xff]
      %v3712 = vld [vmem:[%s2893 + $0xc0] sm:$0xff]
      %v3713 = vld [vmem:[%s2893 + $0xc8] sm:$0xff]
      %v3714 = vld [vmem:[%s2893 + $0xd8] sm:$0xff]
      %v3715 = vld [vmem:[%s2893 + $0xe0] sm:$0xff]
      %v3716 = vld [vmem:[%s2893 + $0xf0] sm:$0xff]
      %v3717 = vld [vmem:[%s2893 + $0xf8] sm:$0xff]
      %v3718 = vld [vmem:[%s2893 + $0x108] sm:$0xff]
      %v3719 = vld [vmem:[%s2893 + $0x110] sm:$0xff]
      %v3720 = vld [vmem:[%s2893 + $0x120] sm:$0xff]
      %v3721 = vld [vmem:[%s2893 + $0x128] sm:$0xff]
      %v3722 = vld [vmem:[%s2893 + $0x138] sm:$0xff]
      %v3723 = vld [vmem:[%s2893 + $0x140] sm:$0xff]
      %v3724 = vld [vmem:[%s2893 + $0x150] sm:$0xff]
      %v3725 = vld [vmem:[%s2893 + $0x158] sm:$0xff]
      %v3726 = vld [vmem:[%s2893 + $0x168] sm:$0xff]
      %v3727 = vld [vmem:[%s2893 + $0x170] sm:$0xff]
      %s3728 = scalar_lea.vmem %s2, 12
      %v3729 = vld [vmem:[%s3728] sm:$0xf]
      %v3731 = vsel %vm225, %v3696, 0
      %v3734 = vsel %vm225, %v3697, 0
      %v3737 = vsel %vm225, %v3698, 0
      %v3740 = vsel %vm225, %v3699, 0
      %v3743 = vsel %vm225, %v3700, 0
      %v3746 = vsel %vm225, %v3701, 0
      %v3749 = vsel %vm225, %v3702, 0
      %v3752 = vsel %vm225, %v3703, 0
      %v3755 = vsel %vm225, %v3704, 0
      %v3758 = vsel %vm225, %v3705, 0
      %v3761 = vsel %vm225, %v3706, 0
      %v3764 = vsel %vm225, %v3707, 0
      %v3767 = vsel %vm225, %v3708, 0
      %v3770 = vsel %vm225, %v3709, 0
      %v3773 = vsel %vm225, %v3710, 0
      %v3776 = vsel %vm225, %v3711, 0
      %v3779 = vsel %vm225, %v3712, 0
      %v3782 = vsel %vm225, %v3713, 0
      %v3785 = vsel %vm225, %v3714, 0
      %v3788 = vsel %vm225, %v3715, 0
      %v3791 = vsel %vm225, %v3716, 0
      %v3794 = vsel %vm225, %v3717, 0
      %v3797 = vsel %vm225, %v3718, 0
      %v3800 = vsel %vm225, %v3719, 0
      %v3803 = vsel %vm225, %v3720, 0
      %v3806 = vsel %vm225, %v3721, 0
      %v3809 = vsel %vm225, %v3722, 0
      %v3812 = vsel %vm225, %v3723, 0
      %v3815 = vsel %vm225, %v3724, 0
      %v3818 = vsel %vm225, %v3725, 0
      %v3821 = vsel %vm225, %v3726, 0
      %v3824 = vsel %vm225, %v3727, 0
      %v3827 = vsel %vm544, %v3729, 0
      %3829 = vmatpush.msra.mxu0 0.0
      %3830 = vmatpush.msra.mxu0 0.0
      %3831 = vmatpush.msra.mxu0 0.0
      %3832 = vmatpush.msra.mxu0 0.0
      %3833 = vmatpush.msra.mxu0 0.0
      %3834 = vmatpush.msra.mxu0 0.0
      %3835 = vmatpush.msra.mxu0 0.0
      %3836 = vmatpush.msra.mxu0 0.0
      %3837 = vmatpush.msra.mxu0 0.0
      %3838 = vmatpush.msra.mxu0 0.0
      %3839 = vmatpush.msra.mxu0 0.0
      %3840 = vmatpush.msra.mxu0 0.0
      %3841 = vmatpush.msra.mxu0 0.0
      %3842 = vmatpush.msra.mxu0 0.0
      %3843 = vmatpush.msra.mxu0 0.0
      %3844 = vmatpush.msra.mxu0 %v3827
      %3845 = vmatmul.f32.gmra.mxu0 %v3731
      %v3846 = vpop.f32.mrf.mxu0
      %v3847 = vadd.f32 0.0, %v3846
      %3848 = vmatmul.f32.gmra.mxu0 %v3734
      %v3849 = vpop.f32.mrf.mxu0
      %v3850 = vadd.f32 0.0, %v3849
      %3851 = vmatmul.f32.gmra.mxu0 %v3737
      %v3852 = vpop.f32.mrf.mxu0
      %v3853 = vadd.f32 0.0, %v3852
      %3854 = vmatmul.f32.gmra.mxu0 %v3740
      %v3855 = vpop.f32.mrf.mxu0
      %v3856 = vadd.f32 0.0, %v3855
      %3857 = vmatmul.f32.gmra.mxu0 %v3743
      %v3858 = vpop.f32.mrf.mxu0
      %v3859 = vadd.f32 0.0, %v3858
      %3860 = vmatmul.f32.gmra.mxu0 %v3746
      %v3861 = vpop.f32.mrf.mxu0
      %v3862 = vadd.f32 0.0, %v3861
      %3863 = vmatmul.f32.gmra.mxu0 %v3749
      %v3864 = vpop.f32.mrf.mxu0
      %v3865 = vadd.f32 0.0, %v3864
      %3866 = vmatmul.f32.gmra.mxu0 %v3752
      %v3867 = vpop.f32.mrf.mxu0
      %v3868 = vadd.f32 0.0, %v3867
      %3869 = vmatmul.f32.gmra.mxu0 %v3755
      %v3870 = vpop.f32.mrf.mxu0
      %v3871 = vadd.f32 0.0, %v3870
      %3872 = vmatmul.f32.gmra.mxu0 %v3758
      %v3873 = vpop.f32.mrf.mxu0
      %v3874 = vadd.f32 0.0, %v3873
      %3875 = vmatmul.f32.gmra.mxu0 %v3761
      %v3876 = vpop.f32.mrf.mxu0
      %v3877 = vadd.f32 0.0, %v3876
      %3878 = vmatmul.f32.gmra.mxu0 %v3764
      %v3879 = vpop.f32.mrf.mxu0
      %v3880 = vadd.f32 0.0, %v3879
      %3881 = vmatmul.f32.gmra.mxu0 %v3767
      %v3882 = vpop.f32.mrf.mxu0
      %v3883 = vadd.f32 0.0, %v3882
      %3884 = vmatmul.f32.gmra.mxu0 %v3770
      %v3885 = vpop.f32.mrf.mxu0
      %v3886 = vadd.f32 0.0, %v3885
      %3887 = vmatmul.f32.gmra.mxu0 %v3773
      %v3888 = vpop.f32.mrf.mxu0
      %v3889 = vadd.f32 0.0, %v3888
      %3890 = vmatmul.f32.gmra.mxu0 %v3776
      %v3891 = vpop.f32.mrf.mxu0
      %v3892 = vadd.f32 0.0, %v3891
      %3893 = vmatmul.f32.gmra.mxu0 %v3779
      %v3894 = vpop.f32.mrf.mxu0
      %v3895 = vadd.f32 0.0, %v3894
      %3896 = vmatmul.f32.gmra.mxu0 %v3782
      %v3897 = vpop.f32.mrf.mxu0
      %v3898 = vadd.f32 0.0, %v3897
      %3899 = vmatmul.f32.gmra.mxu0 %v3785
      %v3900 = vpop.f32.mrf.mxu0
      %v3901 = vadd.f32 0.0, %v3900
      %3902 = vmatmul.f32.gmra.mxu0 %v3788
      %v3903 = vpop.f32.mrf.mxu0
      %v3904 = vadd.f32 0.0, %v3903
      %3905 = vmatmul.f32.gmra.mxu0 %v3791
      %v3906 = vpop.f32.mrf.mxu0
      %v3907 = vadd.f32 0.0, %v3906
      %3908 = vmatmul.f32.gmra.mxu0 %v3794
      %v3909 = vpop.f32.mrf.mxu0
      %v3910 = vadd.f32 0.0, %v3909
      %3911 = vmatmul.f32.gmra.mxu0 %v3797
      %v3912 = vpop.f32.mrf.mxu0
      %v3913 = vadd.f32 0.0, %v3912
      %3914 = vmatmul.f32.gmra.mxu0 %v3800
      %v3915 = vpop.f32.mrf.mxu0
      %v3916 = vadd.f32 0.0, %v3915
      %3917 = vmatmul.f32.gmra.mxu0 %v3803
      %v3918 = vpop.f32.mrf.mxu0
      %v3919 = vadd.f32 0.0, %v3918
      %3920 = vmatmul.f32.gmra.mxu0 %v3806
      %v3921 = vpop.f32.mrf.mxu0
      %v3922 = vadd.f32 0.0, %v3921
      %3923 = vmatmul.f32.gmra.mxu0 %v3809
      %v3924 = vpop.f32.mrf.mxu0
      %v3925 = vadd.f32 0.0, %v3924
      %3926 = vmatmul.f32.gmra.mxu0 %v3812
      %v3927 = vpop.f32.mrf.mxu0
      %v3928 = vadd.f32 0.0, %v3927
      %3929 = vmatmul.f32.gmra.mxu0 %v3815
      %v3930 = vpop.f32.mrf.mxu0
      %v3931 = vadd.f32 0.0, %v3930
      %3932 = vmatmul.f32.gmra.mxu0 %v3818
      %v3933 = vpop.f32.mrf.mxu0
      %v3934 = vadd.f32 0.0, %v3933
      %3935 = vmatmul.f32.gmra.mxu0 %v3821
      %v3936 = vpop.f32.mrf.mxu0
      %v3937 = vadd.f32 0.0, %v3936
      %3938 = vmatmul.f32.gmra.mxu0 %v3824
      %v3939 = vpop.f32.mrf.mxu0
      %v3940 = vadd.f32 0.0, %v3939
      %3941 = vdwg.mxu0
      %v3942 = vadd.f32 %v3664, %v3847
      %v3943 = vadd.f32 %v3665, %v3850
      %v3944 = vadd.f32 %v3666, %v3853
      %v3945 = vadd.f32 %v3667, %v3856
      %v3946 = vadd.f32 %v3668, %v3859
      %v3947 = vadd.f32 %v3669, %v3862
      %v3948 = vadd.f32 %v3670, %v3865
      %v3949 = vadd.f32 %v3671, %v3868
      %v3950 = vadd.f32 %v3672, %v3871
      %v3951 = vadd.f32 %v3673, %v3874
      %v3952 = vadd.f32 %v3674, %v3877
      %v3953 = vadd.f32 %v3675, %v3880
      %v3954 = vadd.f32 %v3676, %v3883
      %v3955 = vadd.f32 %v3677, %v3886
      %v3956 = vadd.f32 %v3678, %v3889
      %v3957 = vadd.f32 %v3679, %v3892
      %v3958 = vadd.f32 %v3680, %v3895
      %v3959 = vadd.f32 %v3681, %v3898
      %v3960 = vadd.f32 %v3682, %v3901
      %v3961 = vadd.f32 %v3683, %v3904
      %v3962 = vadd.f32 %v3684, %v3907
      %v3963 = vadd.f32 %v3685, %v3910
      %v3964 = vadd.f32 %v3686, %v3913
      %v3965 = vadd.f32 %v3687, %v3916
      %v3966 = vadd.f32 %v3688, %v3919
      %v3967 = vadd.f32 %v3689, %v3922
      %v3968 = vadd.f32 %v3690, %v3925
      %v3969 = vadd.f32 %v3691, %v3928
      %v3970 = vadd.f32 %v3692, %v3931
      %v3971 = vadd.f32 %v3693, %v3934
      %v3972 = vadd.f32 %v3694, %v3937
      %v3973 = vadd.f32 %v3695, %v3940
      %v3974 = vld [vmem:[%s2893 + $0x1] sm:$0xff]
      %v3975 = vld [vmem:[%s2893 + $0x9] sm:$0xff]
      %v3976 = vld [vmem:[%s2893 + $0x19] sm:$0xff]
      %v3977 = vld [vmem:[%s2893 + $0x21] sm:$0xff]
      %v3978 = vld [vmem:[%s2893 + $0x31] sm:$0xff]
      %v3979 = vld [vmem:[%s2893 + $0x39] sm:$0xff]
      %v3980 = vld [vmem:[%s2893 + $0x49] sm:$0xff]
      %v3981 = vld [vmem:[%s2893 + $0x51] sm:$0xff]
      %v3982 = vld [vmem:[%s2893 + $0x61] sm:$0xff]
      %v3983 = vld [vmem:[%s2893 + $0x69] sm:$0xff]
      %v3984 = vld [vmem:[%s2893 + $0x79] sm:$0xff]
      %v3985 = vld [vmem:[%s2893 + $0x81] sm:$0xff]
      %v3986 = vld [vmem:[%s2893 + $0x91] sm:$0xff]
      %v3987 = vld [vmem:[%s2893 + $0x99] sm:$0xff]
      %v3988 = vld [vmem:[%s2893 + $0xa9] sm:$0xff]
      %v3989 = vld [vmem:[%s2893 + $0xb1] sm:$0xff]
      %v3990 = vld [vmem:[%s2893 + $0xc1] sm:$0xff]
      %v3991 = vld [vmem:[%s2893 + $0xc9] sm:$0xff]
      %v3992 = vld [vmem:[%s2893 + $0xd9] sm:$0xff]
      %v3993 = vld [vmem:[%s2893 + $0xe1] sm:$0xff]
      %v3994 = vld [vmem:[%s2893 + $0xf1] sm:$0xff]
      %v3995 = vld [vmem:[%s2893 + $0xf9] sm:$0xff]
      %v3996 = vld [vmem:[%s2893 + $0x109] sm:$0xff]
      %v3997 = vld [vmem:[%s2893 + $0x111] sm:$0xff]
      %v3998 = vld [vmem:[%s2893 + $0x121] sm:$0xff]
      %v3999 = vld [vmem:[%s2893 + $0x129] sm:$0xff]
      %v4000 = vld [vmem:[%s2893 + $0x139] sm:$0xff]
      %v4001 = vld [vmem:[%s2893 + $0x141] sm:$0xff]
      %v4002 = vld [vmem:[%s2893 + $0x151] sm:$0xff]
      %v4003 = vld [vmem:[%s2893 + $0x159] sm:$0xff]
      %v4004 = vld [vmem:[%s2893 + $0x169] sm:$0xff]
      %v4005 = vld [vmem:[%s2893 + $0x171] sm:$0xff]
      %s4006 = scalar_lea.vmem %s2, 16
      %v4007 = vld [vmem:[%s4006] sm:$0xf]
      %v4009 = vsel %vm225, %v3974, 0
      %v4012 = vsel %vm225, %v3975, 0
      %v4015 = vsel %vm225, %v3976, 0
      %v4018 = vsel %vm225, %v3977, 0
      %v4021 = vsel %vm225, %v3978, 0
      %v4024 = vsel %vm225, %v3979, 0
      %v4027 = vsel %vm225, %v3980, 0
      %v4030 = vsel %vm225, %v3981, 0
      %v4033 = vsel %vm225, %v3982, 0
      %v4036 = vsel %vm225, %v3983, 0
      %v4039 = vsel %vm225, %v3984, 0
      %v4042 = vsel %vm225, %v3985, 0
      %v4045 = vsel %vm225, %v3986, 0
      %v4048 = vsel %vm225, %v3987, 0
      %v4051 = vsel %vm225, %v3988, 0
      %v4054 = vsel %vm225, %v3989, 0
      %v4057 = vsel %vm225, %v3990, 0
      %v4060 = vsel %vm225, %v3991, 0
      %v4063 = vsel %vm225, %v3992, 0
      %v4066 = vsel %vm225, %v3993, 0
      %v4069 = vsel %vm225, %v3994, 0
      %v4072 = vsel %vm225, %v3995, 0
      %v4075 = vsel %vm225, %v3996, 0
      %v4078 = vsel %vm225, %v3997, 0
      %v4081 = vsel %vm225, %v3998, 0
      %v4084 = vsel %vm225, %v3999, 0
      %v4087 = vsel %vm225, %v4000, 0
      %v4090 = vsel %vm225, %v4001, 0
      %v4093 = vsel %vm225, %v4002, 0
      %v4096 = vsel %vm225, %v4003, 0
      %v4099 = vsel %vm225, %v4004, 0
      %v4102 = vsel %vm225, %v4005, 0
      %v4105 = vsel %vm544, %v4007, 0
      %4107 = vmatpush.msra.mxu0 0.0
      %4108 = vmatpush.msra.mxu0 0.0
      %4109 = vmatpush.msra.mxu0 0.0
      %4110 = vmatpush.msra.mxu0 0.0
      %4111 = vmatpush.msra.mxu0 0.0
      %4112 = vmatpush.msra.mxu0 0.0
      %4113 = vmatpush.msra.mxu0 0.0
      %4114 = vmatpush.msra.mxu0 0.0
      %4115 = vmatpush.msra.mxu0 0.0
      %4116 = vmatpush.msra.mxu0 0.0
      %4117 = vmatpush.msra.mxu0 0.0
      %4118 = vmatpush.msra.mxu0 0.0
      %4119 = vmatpush.msra.mxu0 0.0
      %4120 = vmatpush.msra.mxu0 0.0
      %4121 = vmatpush.msra.mxu0 0.0
      %4122 = vmatpush.msra.mxu0 %v4105
      %4123 = vmatmul.f32.gmra.mxu0 %v4009
      %v4124 = vpop.f32.mrf.mxu0
      %v4125 = vadd.f32 0.0, %v4124
      %4126 = vmatmul.f32.gmra.mxu0 %v4012
      %v4127 = vpop.f32.mrf.mxu0
      %v4128 = vadd.f32 0.0, %v4127
      %4129 = vmatmul.f32.gmra.mxu0 %v4015
      %v4130 = vpop.f32.mrf.mxu0
      %v4131 = vadd.f32 0.0, %v4130
      %4132 = vmatmul.f32.gmra.mxu0 %v4018
      %v4133 = vpop.f32.mrf.mxu0
      %v4134 = vadd.f32 0.0, %v4133
      %4135 = vmatmul.f32.gmra.mxu0 %v4021
      %v4136 = vpop.f32.mrf.mxu0
      %v4137 = vadd.f32 0.0, %v4136
      %4138 = vmatmul.f32.gmra.mxu0 %v4024
      %v4139 = vpop.f32.mrf.mxu0
      %v4140 = vadd.f32 0.0, %v4139
      %4141 = vmatmul.f32.gmra.mxu0 %v4027
      %v4142 = vpop.f32.mrf.mxu0
      %v4143 = vadd.f32 0.0, %v4142
      %4144 = vmatmul.f32.gmra.mxu0 %v4030
      %v4145 = vpop.f32.mrf.mxu0
      %v4146 = vadd.f32 0.0, %v4145
      %4147 = vmatmul.f32.gmra.mxu0 %v4033
      %v4148 = vpop.f32.mrf.mxu0
      %v4149 = vadd.f32 0.0, %v4148
      %4150 = vmatmul.f32.gmra.mxu0 %v4036
      %v4151 = vpop.f32.mrf.mxu0
      %v4152 = vadd.f32 0.0, %v4151
      %4153 = vmatmul.f32.gmra.mxu0 %v4039
      %v4154 = vpop.f32.mrf.mxu0
      %v4155 = vadd.f32 0.0, %v4154
      %4156 = vmatmul.f32.gmra.mxu0 %v4042
      %v4157 = vpop.f32.mrf.mxu0
      %v4158 = vadd.f32 0.0, %v4157
      %4159 = vmatmul.f32.gmra.mxu0 %v4045
      %v4160 = vpop.f32.mrf.mxu0
      %v4161 = vadd.f32 0.0, %v4160
      %4162 = vmatmul.f32.gmra.mxu0 %v4048
      %v4163 = vpop.f32.mrf.mxu0
      %v4164 = vadd.f32 0.0, %v4163
      %4165 = vmatmul.f32.gmra.mxu0 %v4051
      %v4166 = vpop.f32.mrf.mxu0
      %v4167 = vadd.f32 0.0, %v4166
      %4168 = vmatmul.f32.gmra.mxu0 %v4054
      %v4169 = vpop.f32.mrf.mxu0
      %v4170 = vadd.f32 0.0, %v4169
      %4171 = vmatmul.f32.gmra.mxu0 %v4057
      %v4172 = vpop.f32.mrf.mxu0
      %v4173 = vadd.f32 0.0, %v4172
      %4174 = vmatmul.f32.gmra.mxu0 %v4060
      %v4175 = vpop.f32.mrf.mxu0
      %v4176 = vadd.f32 0.0, %v4175
      %4177 = vmatmul.f32.gmra.mxu0 %v4063
      %v4178 = vpop.f32.mrf.mxu0
      %v4179 = vadd.f32 0.0, %v4178
      %4180 = vmatmul.f32.gmra.mxu0 %v4066
      %v4181 = vpop.f32.mrf.mxu0
      %v4182 = vadd.f32 0.0, %v4181
      %4183 = vmatmul.f32.gmra.mxu0 %v4069
      %v4184 = vpop.f32.mrf.mxu0
      %v4185 = vadd.f32 0.0, %v4184
      %4186 = vmatmul.f32.gmra.mxu0 %v4072
      %v4187 = vpop.f32.mrf.mxu0
      %v4188 = vadd.f32 0.0, %v4187
      %4189 = vmatmul.f32.gmra.mxu0 %v4075
      %v4190 = vpop.f32.mrf.mxu0
      %v4191 = vadd.f32 0.0, %v4190
      %4192 = vmatmul.f32.gmra.mxu0 %v4078
      %v4193 = vpop.f32.mrf.mxu0
      %v4194 = vadd.f32 0.0, %v4193
      %4195 = vmatmul.f32.gmra.mxu0 %v4081
      %v4196 = vpop.f32.mrf.mxu0
      %v4197 = vadd.f32 0.0, %v4196
      %4198 = vmatmul.f32.gmra.mxu0 %v4084
      %v4199 = vpop.f32.mrf.mxu0
      %v4200 = vadd.f32 0.0, %v4199
      %4201 = vmatmul.f32.gmra.mxu0 %v4087
      %v4202 = vpop.f32.mrf.mxu0
      %v4203 = vadd.f32 0.0, %v4202
      %4204 = vmatmul.f32.gmra.mxu0 %v4090
      %v4205 = vpop.f32.mrf.mxu0
      %v4206 = vadd.f32 0.0, %v4205
      %4207 = vmatmul.f32.gmra.mxu0 %v4093
      %v4208 = vpop.f32.mrf.mxu0
      %v4209 = vadd.f32 0.0, %v4208
      %4210 = vmatmul.f32.gmra.mxu0 %v4096
      %v4211 = vpop.f32.mrf.mxu0
      %v4212 = vadd.f32 0.0, %v4211
      %4213 = vmatmul.f32.gmra.mxu0 %v4099
      %v4214 = vpop.f32.mrf.mxu0
      %v4215 = vadd.f32 0.0, %v4214
      %4216 = vmatmul.f32.gmra.mxu0 %v4102
      %v4217 = vpop.f32.mrf.mxu0
      %v4218 = vadd.f32 0.0, %v4217
      %4219 = vdwg.mxu0
      %v4220 = vadd.f32 %v3942, %v4125
      %v4221 = vadd.f32 %v3943, %v4128
      %v4222 = vadd.f32 %v3944, %v4131
      %v4223 = vadd.f32 %v3945, %v4134
      %v4224 = vadd.f32 %v3946, %v4137
      %v4225 = vadd.f32 %v3947, %v4140
      %v4226 = vadd.f32 %v3948, %v4143
      %v4227 = vadd.f32 %v3949, %v4146
      %v4228 = vadd.f32 %v3950, %v4149
      %v4229 = vadd.f32 %v3951, %v4152
      %v4230 = vadd.f32 %v3952, %v4155
      %v4231 = vadd.f32 %v3953, %v4158
      %v4232 = vadd.f32 %v3954, %v4161
      %v4233 = vadd.f32 %v3955, %v4164
      %v4234 = vadd.f32 %v3956, %v4167
      %v4235 = vadd.f32 %v3957, %v4170
      %v4236 = vadd.f32 %v3958, %v4173
      %v4237 = vadd.f32 %v3959, %v4176
      %v4238 = vadd.f32 %v3960, %v4179
      %v4239 = vadd.f32 %v3961, %v4182
      %v4240 = vadd.f32 %v3962, %v4185
      %v4241 = vadd.f32 %v3963, %v4188
      %v4242 = vadd.f32 %v3964, %v4191
      %v4243 = vadd.f32 %v3965, %v4194
      %v4244 = vadd.f32 %v3966, %v4197
      %v4245 = vadd.f32 %v3967, %v4200
      %v4246 = vadd.f32 %v3968, %v4203
      %v4247 = vadd.f32 %v3969, %v4206
      %v4248 = vadd.f32 %v3970, %v4209
      %v4249 = vadd.f32 %v3971, %v4212
      %v4250 = vadd.f32 %v3972, %v4215
      %v4251 = vadd.f32 %v3973, %v4218
      %v4252 = vld [vmem:[%s2893 + $0x2] sm:$0xff]
      %v4253 = vld [vmem:[%s2893 + $0xa] sm:$0xff]
      %v4254 = vld [vmem:[%s2893 + $0x1a] sm:$0xff]
      %v4255 = vld [vmem:[%s2893 + $0x22] sm:$0xff]
      %v4256 = vld [vmem:[%s2893 + $0x32] sm:$0xff]
      %v4257 = vld [vmem:[%s2893 + $0x3a] sm:$0xff]
      %v4258 = vld [vmem:[%s2893 + $0x4a] sm:$0xff]
      %v4259 = vld [vmem:[%s2893 + $0x52] sm:$0xff]
      %v4260 = vld [vmem:[%s2893 + $0x62] sm:$0xff]
      %v4261 = vld [vmem:[%s2893 + $0x6a] sm:$0xff]
      %v4262 = vld [vmem:[%s2893 + $0x7a] sm:$0xff]
      %v4263 = vld [vmem:[%s2893 + $0x82] sm:$0xff]
      %v4264 = vld [vmem:[%s2893 + $0x92] sm:$0xff]
      %v4265 = vld [vmem:[%s2893 + $0x9a] sm:$0xff]
      %v4266 = vld [vmem:[%s2893 + $0xaa] sm:$0xff]
      %v4267 = vld [vmem:[%s2893 + $0xb2] sm:$0xff]
      %v4268 = vld [vmem:[%s2893 + $0xc2] sm:$0xff]
      %v4269 = vld [vmem:[%s2893 + $0xca] sm:$0xff]
      %v4270 = vld [vmem:[%s2893 + $0xda] sm:$0xff]
      %v4271 = vld [vmem:[%s2893 + $0xe2] sm:$0xff]
      %v4272 = vld [vmem:[%s2893 + $0xf2] sm:$0xff]
      %v4273 = vld [vmem:[%s2893 + $0xfa] sm:$0xff]
      %v4274 = vld [vmem:[%s2893 + $0x10a] sm:$0xff]
      %v4275 = vld [vmem:[%s2893 + $0x112] sm:$0xff]
      %v4276 = vld [vmem:[%s2893 + $0x122] sm:$0xff]
      %v4277 = vld [vmem:[%s2893 + $0x12a] sm:$0xff]
      %v4278 = vld [vmem:[%s2893 + $0x13a] sm:$0xff]
      %v4279 = vld [vmem:[%s2893 + $0x142] sm:$0xff]
      %v4280 = vld [vmem:[%s2893 + $0x152] sm:$0xff]
      %v4281 = vld [vmem:[%s2893 + $0x15a] sm:$0xff]
      %v4282 = vld [vmem:[%s2893 + $0x16a] sm:$0xff]
      %v4283 = vld [vmem:[%s2893 + $0x172] sm:$0xff]
      %s4284 = scalar_lea.vmem %s2, 20
      %v4285 = vld [vmem:[%s4284] sm:$0xf]
      %v4287 = vsel %vm225, %v4252, 0
      %v4290 = vsel %vm225, %v4253, 0
      %v4293 = vsel %vm225, %v4254, 0
      %v4296 = vsel %vm225, %v4255, 0
      %v4299 = vsel %vm225, %v4256, 0
      %v4302 = vsel %vm225, %v4257, 0
      %v4305 = vsel %vm225, %v4258, 0
      %v4308 = vsel %vm225, %v4259, 0
      %v4311 = vsel %vm225, %v4260, 0
      %v4314 = vsel %vm225, %v4261, 0
      %v4317 = vsel %vm225, %v4262, 0
      %v4320 = vsel %vm225, %v4263, 0
      %v4323 = vsel %vm225, %v4264, 0
      %v4326 = vsel %vm225, %v4265, 0
      %v4329 = vsel %vm225, %v4266, 0
      %v4332 = vsel %vm225, %v4267, 0
      %v4335 = vsel %vm225, %v4268, 0
      %v4338 = vsel %vm225, %v4269, 0
      %v4341 = vsel %vm225, %v4270, 0
      %v4344 = vsel %vm225, %v4271, 0
      %v4347 = vsel %vm225, %v4272, 0
      %v4350 = vsel %vm225, %v4273, 0
      %v4353 = vsel %vm225, %v4274, 0
      %v4356 = vsel %vm225, %v4275, 0
      %v4359 = vsel %vm225, %v4276, 0
      %v4362 = vsel %vm225, %v4277, 0
      %v4365 = vsel %vm225, %v4278, 0
      %v4368 = vsel %vm225, %v4279, 0
      %v4371 = vsel %vm225, %v4280, 0
      %v4374 = vsel %vm225, %v4281, 0
      %v4377 = vsel %vm225, %v4282, 0
      %v4380 = vsel %vm225, %v4283, 0
      %v4383 = vsel %vm544, %v4285, 0
      %4385 = vmatpush.msra.mxu0 0.0
      %4386 = vmatpush.msra.mxu0 0.0
      %4387 = vmatpush.msra.mxu0 0.0
      %4388 = vmatpush.msra.mxu0 0.0
      %4389 = vmatpush.msra.mxu0 0.0
      %4390 = vmatpush.msra.mxu0 0.0
      %4391 = vmatpush.msra.mxu0 0.0
      %4392 = vmatpush.msra.mxu0 0.0
      %4393 = vmatpush.msra.mxu0 0.0
      %4394 = vmatpush.msra.mxu0 0.0
      %4395 = vmatpush.msra.mxu0 0.0
      %4396 = vmatpush.msra.mxu0 0.0
      %4397 = vmatpush.msra.mxu0 0.0
      %4398 = vmatpush.msra.mxu0 0.0
      %4399 = vmatpush.msra.mxu0 0.0
      %4400 = vmatpush.msra.mxu0 %v4383
      %4401 = vmatmul.f32.gmra.mxu0 %v4287
      %v4402 = vpop.f32.mrf.mxu0
      %v4403 = vadd.f32 0.0, %v4402
      %4404 = vmatmul.f32.gmra.mxu0 %v4290
      %v4405 = vpop.f32.mrf.mxu0
      %v4406 = vadd.f32 0.0, %v4405
      %4407 = vmatmul.f32.gmra.mxu0 %v4293
      %v4408 = vpop.f32.mrf.mxu0
      %v4409 = vadd.f32 0.0, %v4408
      %4410 = vmatmul.f32.gmra.mxu0 %v4296
      %v4411 = vpop.f32.mrf.mxu0
      %v4412 = vadd.f32 0.0, %v4411
      %4413 = vmatmul.f32.gmra.mxu0 %v4299
      %v4414 = vpop.f32.mrf.mxu0
      %v4415 = vadd.f32 0.0, %v4414
      %4416 = vmatmul.f32.gmra.mxu0 %v4302
      %v4417 = vpop.f32.mrf.mxu0
      %v4418 = vadd.f32 0.0, %v4417
      %4419 = vmatmul.f32.gmra.mxu0 %v4305
      %v4420 = vpop.f32.mrf.mxu0
      %v4421 = vadd.f32 0.0, %v4420
      %4422 = vmatmul.f32.gmra.mxu0 %v4308
      %v4423 = vpop.f32.mrf.mxu0
      %v4424 = vadd.f32 0.0, %v4423
      %4425 = vmatmul.f32.gmra.mxu0 %v4311
      %v4426 = vpop.f32.mrf.mxu0
      %v4427 = vadd.f32 0.0, %v4426
      %4428 = vmatmul.f32.gmra.mxu0 %v4314
      %v4429 = vpop.f32.mrf.mxu0
      %v4430 = vadd.f32 0.0, %v4429
      %4431 = vmatmul.f32.gmra.mxu0 %v4317
      %v4432 = vpop.f32.mrf.mxu0
      %v4433 = vadd.f32 0.0, %v4432
      %4434 = vmatmul.f32.gmra.mxu0 %v4320
      %v4435 = vpop.f32.mrf.mxu0
      %v4436 = vadd.f32 0.0, %v4435
      %4437 = vmatmul.f32.gmra.mxu0 %v4323
      %v4438 = vpop.f32.mrf.mxu0
      %v4439 = vadd.f32 0.0, %v4438
      %4440 = vmatmul.f32.gmra.mxu0 %v4326
      %v4441 = vpop.f32.mrf.mxu0
      %v4442 = vadd.f32 0.0, %v4441
      %4443 = vmatmul.f32.gmra.mxu0 %v4329
      %v4444 = vpop.f32.mrf.mxu0
      %v4445 = vadd.f32 0.0, %v4444
      %4446 = vmatmul.f32.gmra.mxu0 %v4332
      %v4447 = vpop.f32.mrf.mxu0
      %v4448 = vadd.f32 0.0, %v4447
      %4449 = vmatmul.f32.gmra.mxu0 %v4335
      %v4450 = vpop.f32.mrf.mxu0
      %v4451 = vadd.f32 0.0, %v4450
      %4452 = vmatmul.f32.gmra.mxu0 %v4338
      %v4453 = vpop.f32.mrf.mxu0
      %v4454 = vadd.f32 0.0, %v4453
      %4455 = vmatmul.f32.gmra.mxu0 %v4341
      %v4456 = vpop.f32.mrf.mxu0
      %v4457 = vadd.f32 0.0, %v4456
      %4458 = vmatmul.f32.gmra.mxu0 %v4344
      %v4459 = vpop.f32.mrf.mxu0
      %v4460 = vadd.f32 0.0, %v4459
      %4461 = vmatmul.f32.gmra.mxu0 %v4347
      %v4462 = vpop.f32.mrf.mxu0
      %v4463 = vadd.f32 0.0, %v4462
      %4464 = vmatmul.f32.gmra.mxu0 %v4350
      %v4465 = vpop.f32.mrf.mxu0
      %v4466 = vadd.f32 0.0, %v4465
      %4467 = vmatmul.f32.gmra.mxu0 %v4353
      %v4468 = vpop.f32.mrf.mxu0
      %v4469 = vadd.f32 0.0, %v4468
      %4470 = vmatmul.f32.gmra.mxu0 %v4356
      %v4471 = vpop.f32.mrf.mxu0
      %v4472 = vadd.f32 0.0, %v4471
      %4473 = vmatmul.f32.gmra.mxu0 %v4359
      %v4474 = vpop.f32.mrf.mxu0
      %v4475 = vadd.f32 0.0, %v4474
      %4476 = vmatmul.f32.gmra.mxu0 %v4362
      %v4477 = vpop.f32.mrf.mxu0
      %v4478 = vadd.f32 0.0, %v4477
      %4479 = vmatmul.f32.gmra.mxu0 %v4365
      %v4480 = vpop.f32.mrf.mxu0
      %v4481 = vadd.f32 0.0, %v4480
      %4482 = vmatmul.f32.gmra.mxu0 %v4368
      %v4483 = vpop.f32.mrf.mxu0
      %v4484 = vadd.f32 0.0, %v4483
      %4485 = vmatmul.f32.gmra.mxu0 %v4371
      %v4486 = vpop.f32.mrf.mxu0
      %v4487 = vadd.f32 0.0, %v4486
      %4488 = vmatmul.f32.gmra.mxu0 %v4374
      %v4489 = vpop.f32.mrf.mxu0
      %v4490 = vadd.f32 0.0, %v4489
      %4491 = vmatmul.f32.gmra.mxu0 %v4377
      %v4492 = vpop.f32.mrf.mxu0
      %v4493 = vadd.f32 0.0, %v4492
      %4494 = vmatmul.f32.gmra.mxu0 %v4380
      %v4495 = vpop.f32.mrf.mxu0
      %v4496 = vadd.f32 0.0, %v4495
      %4497 = vdwg.mxu0
      %v4498 = vadd.f32 %v4220, %v4403
      %v4499 = vadd.f32 %v4221, %v4406
      %v4500 = vadd.f32 %v4222, %v4409
      %v4501 = vadd.f32 %v4223, %v4412
      %v4502 = vadd.f32 %v4224, %v4415
      %v4503 = vadd.f32 %v4225, %v4418
      %v4504 = vadd.f32 %v4226, %v4421
      %v4505 = vadd.f32 %v4227, %v4424
      %v4506 = vadd.f32 %v4228, %v4427
      %v4507 = vadd.f32 %v4229, %v4430
      %v4508 = vadd.f32 %v4230, %v4433
      %v4509 = vadd.f32 %v4231, %v4436
      %v4510 = vadd.f32 %v4232, %v4439
      %v4511 = vadd.f32 %v4233, %v4442
      %v4512 = vadd.f32 %v4234, %v4445
      %v4513 = vadd.f32 %v4235, %v4448
      %v4514 = vadd.f32 %v4236, %v4451
      %v4515 = vadd.f32 %v4237, %v4454
      %v4516 = vadd.f32 %v4238, %v4457
      %v4517 = vadd.f32 %v4239, %v4460
      %v4518 = vadd.f32 %v4240, %v4463
      %v4519 = vadd.f32 %v4241, %v4466
      %v4520 = vadd.f32 %v4242, %v4469
      %v4521 = vadd.f32 %v4243, %v4472
      %v4522 = vadd.f32 %v4244, %v4475
      %v4523 = vadd.f32 %v4245, %v4478
      %v4524 = vadd.f32 %v4246, %v4481
      %v4525 = vadd.f32 %v4247, %v4484
      %v4526 = vadd.f32 %v4248, %v4487
      %v4527 = vadd.f32 %v4249, %v4490
      %v4528 = vadd.f32 %v4250, %v4493
      %v4529 = vadd.f32 %v4251, %v4496
      %s4530 = scalar_lea.vmem [#allocation3], %s1989
      %v4531 = vld [vmem:[%s4530] sm:$0xff]
      %v4532 = vld [vmem:[%s4530 + $0x8] sm:$0xff]
      %v4533 = vld [vmem:[%s4530 + $0x18] sm:$0xff]
      %v4534 = vld [vmem:[%s4530 + $0x20] sm:$0xff]
      %v4535 = vld [vmem:[%s4530 + $0x30] sm:$0xff]
      %v4536 = vld [vmem:[%s4530 + $0x38] sm:$0xff]
      %v4537 = vld [vmem:[%s4530 + $0x48] sm:$0xff]
      %v4538 = vld [vmem:[%s4530 + $0x50] sm:$0xff]
      %v4539 = vld [vmem:[%s4530 + $0x60] sm:$0xff]
      %v4540 = vld [vmem:[%s4530 + $0x68] sm:$0xff]
      %v4541 = vld [vmem:[%s4530 + $0x78] sm:$0xff]
      %v4542 = vld [vmem:[%s4530 + $0x80] sm:$0xff]
      %v4543 = vld [vmem:[%s4530 + $0x90] sm:$0xff]
      %v4544 = vld [vmem:[%s4530 + $0x98] sm:$0xff]
      %v4545 = vld [vmem:[%s4530 + $0xa8] sm:$0xff]
      %v4546 = vld [vmem:[%s4530 + $0xb0] sm:$0xff]
      %v4547 = vld [vmem:[%s4530 + $0xc0] sm:$0xff]
      %v4548 = vld [vmem:[%s4530 + $0xc8] sm:$0xff]
      %v4549 = vld [vmem:[%s4530 + $0xd8] sm:$0xff]
      %v4550 = vld [vmem:[%s4530 + $0xe0] sm:$0xff]
      %v4551 = vld [vmem:[%s4530 + $0xf0] sm:$0xff]
      %v4552 = vld [vmem:[%s4530 + $0xf8] sm:$0xff]
      %v4553 = vld [vmem:[%s4530 + $0x108] sm:$0xff]
      %v4554 = vld [vmem:[%s4530 + $0x110] sm:$0xff]
      %v4555 = vld [vmem:[%s4530 + $0x120] sm:$0xff]
      %v4556 = vld [vmem:[%s4530 + $0x128] sm:$0xff]
      %v4557 = vld [vmem:[%s4530 + $0x138] sm:$0xff]
      %v4558 = vld [vmem:[%s4530 + $0x140] sm:$0xff]
      %v4559 = vld [vmem:[%s4530 + $0x150] sm:$0xff]
      %v4560 = vld [vmem:[%s4530 + $0x158] sm:$0xff]
      %v4561 = vld [vmem:[%s4530 + $0x168] sm:$0xff]
      %v4562 = vld [vmem:[%s4530 + $0x170] sm:$0xff]
      %s4563 = scalar_lea.vmem %s2, 24
      %v4564 = vld [vmem:[%s4563] sm:$0xf]
      %v4566 = vsel %vm225, %v4531, 0
      %v4569 = vsel %vm225, %v4532, 0
      %v4572 = vsel %vm225, %v4533, 0
      %v4575 = vsel %vm225, %v4534, 0
      %v4578 = vsel %vm225, %v4535, 0
      %v4581 = vsel %vm225, %v4536, 0
      %v4584 = vsel %vm225, %v4537, 0
      %v4587 = vsel %vm225, %v4538, 0
      %v4590 = vsel %vm225, %v4539, 0
      %v4593 = vsel %vm225, %v4540, 0
      %v4596 = vsel %vm225, %v4541, 0
      %v4599 = vsel %vm225, %v4542, 0
      %v4602 = vsel %vm225, %v4543, 0
      %v4605 = vsel %vm225, %v4544, 0
      %v4608 = vsel %vm225, %v4545, 0
      %v4611 = vsel %vm225, %v4546, 0
      %v4614 = vsel %vm225, %v4547, 0
      %v4617 = vsel %vm225, %v4548, 0
      %v4620 = vsel %vm225, %v4549, 0
      %v4623 = vsel %vm225, %v4550, 0
      %v4626 = vsel %vm225, %v4551, 0
      %v4629 = vsel %vm225, %v4552, 0
      %v4632 = vsel %vm225, %v4553, 0
      %v4635 = vsel %vm225, %v4554, 0
      %v4638 = vsel %vm225, %v4555, 0
      %v4641 = vsel %vm225, %v4556, 0
      %v4644 = vsel %vm225, %v4557, 0
      %v4647 = vsel %vm225, %v4558, 0
      %v4650 = vsel %vm225, %v4559, 0
      %v4653 = vsel %vm225, %v4560, 0
      %v4656 = vsel %vm225, %v4561, 0
      %v4659 = vsel %vm225, %v4562, 0
      %v4662 = vsel %vm544, %v4564, 0
      %4664 = vmatpush.msra.mxu0 0.0
      %4665 = vmatpush.msra.mxu0 0.0
      %4666 = vmatpush.msra.mxu0 0.0
      %4667 = vmatpush.msra.mxu0 0.0
      %4668 = vmatpush.msra.mxu0 0.0
      %4669 = vmatpush.msra.mxu0 0.0
      %4670 = vmatpush.msra.mxu0 0.0
      %4671 = vmatpush.msra.mxu0 0.0
      %4672 = vmatpush.msra.mxu0 0.0
      %4673 = vmatpush.msra.mxu0 0.0
      %4674 = vmatpush.msra.mxu0 0.0
      %4675 = vmatpush.msra.mxu0 0.0
      %4676 = vmatpush.msra.mxu0 0.0
      %4677 = vmatpush.msra.mxu0 0.0
      %4678 = vmatpush.msra.mxu0 0.0
      %4679 = vmatpush.msra.mxu0 %v4662
      %4680 = vmatmul.f32.gmra.mxu0 %v4566
      %v4681 = vpop.f32.mrf.mxu0
      %v4682 = vadd.f32 0.0, %v4681
      %4683 = vmatmul.f32.gmra.mxu0 %v4569
      %v4684 = vpop.f32.mrf.mxu0
      %v4685 = vadd.f32 0.0, %v4684
      %4686 = vmatmul.f32.gmra.mxu0 %v4572
      %v4687 = vpop.f32.mrf.mxu0
      %v4688 = vadd.f32 0.0, %v4687
      %4689 = vmatmul.f32.gmra.mxu0 %v4575
      %v4690 = vpop.f32.mrf.mxu0
      %v4691 = vadd.f32 0.0, %v4690
      %4692 = vmatmul.f32.gmra.mxu0 %v4578
      %v4693 = vpop.f32.mrf.mxu0
      %v4694 = vadd.f32 0.0, %v4693
      %4695 = vmatmul.f32.gmra.mxu0 %v4581
      %v4696 = vpop.f32.mrf.mxu0
      %v4697 = vadd.f32 0.0, %v4696
      %4698 = vmatmul.f32.gmra.mxu0 %v4584
      %v4699 = vpop.f32.mrf.mxu0
      %v4700 = vadd.f32 0.0, %v4699
      %4701 = vmatmul.f32.gmra.mxu0 %v4587
      %v4702 = vpop.f32.mrf.mxu0
      %v4703 = vadd.f32 0.0, %v4702
      %4704 = vmatmul.f32.gmra.mxu0 %v4590
      %v4705 = vpop.f32.mrf.mxu0
      %v4706 = vadd.f32 0.0, %v4705
      %4707 = vmatmul.f32.gmra.mxu0 %v4593
      %v4708 = vpop.f32.mrf.mxu0
      %v4709 = vadd.f32 0.0, %v4708
      %4710 = vmatmul.f32.gmra.mxu0 %v4596
      %v4711 = vpop.f32.mrf.mxu0
      %v4712 = vadd.f32 0.0, %v4711
      %4713 = vmatmul.f32.gmra.mxu0 %v4599
      %v4714 = vpop.f32.mrf.mxu0
      %v4715 = vadd.f32 0.0, %v4714
      %4716 = vmatmul.f32.gmra.mxu0 %v4602
      %v4717 = vpop.f32.mrf.mxu0
      %v4718 = vadd.f32 0.0, %v4717
      %4719 = vmatmul.f32.gmra.mxu0 %v4605
      %v4720 = vpop.f32.mrf.mxu0
      %v4721 = vadd.f32 0.0, %v4720
      %4722 = vmatmul.f32.gmra.mxu0 %v4608
      %v4723 = vpop.f32.mrf.mxu0
      %v4724 = vadd.f32 0.0, %v4723
      %4725 = vmatmul.f32.gmra.mxu0 %v4611
      %v4726 = vpop.f32.mrf.mxu0
      %v4727 = vadd.f32 0.0, %v4726
      %4728 = vmatmul.f32.gmra.mxu0 %v4614
      %v4729 = vpop.f32.mrf.mxu0
      %v4730 = vadd.f32 0.0, %v4729
      %4731 = vmatmul.f32.gmra.mxu0 %v4617
      %v4732 = vpop.f32.mrf.mxu0
      %v4733 = vadd.f32 0.0, %v4732
      %4734 = vmatmul.f32.gmra.mxu0 %v4620
      %v4735 = vpop.f32.mrf.mxu0
      %v4736 = vadd.f32 0.0, %v4735
      %4737 = vmatmul.f32.gmra.mxu0 %v4623
      %v4738 = vpop.f32.mrf.mxu0
      %v4739 = vadd.f32 0.0, %v4738
      %4740 = vmatmul.f32.gmra.mxu0 %v4626
      %v4741 = vpop.f32.mrf.mxu0
      %v4742 = vadd.f32 0.0, %v4741
      %4743 = vmatmul.f32.gmra.mxu0 %v4629
      %v4744 = vpop.f32.mrf.mxu0
      %v4745 = vadd.f32 0.0, %v4744
      %4746 = vmatmul.f32.gmra.mxu0 %v4632
      %v4747 = vpop.f32.mrf.mxu0
      %v4748 = vadd.f32 0.0, %v4747
      %4749 = vmatmul.f32.gmra.mxu0 %v4635
      %v4750 = vpop.f32.mrf.mxu0
      %v4751 = vadd.f32 0.0, %v4750
      %4752 = vmatmul.f32.gmra.mxu0 %v4638
      %v4753 = vpop.f32.mrf.mxu0
      %v4754 = vadd.f32 0.0, %v4753
      %4755 = vmatmul.f32.gmra.mxu0 %v4641
      %v4756 = vpop.f32.mrf.mxu0
      %v4757 = vadd.f32 0.0, %v4756
      %4758 = vmatmul.f32.gmra.mxu0 %v4644
      %v4759 = vpop.f32.mrf.mxu0
      %v4760 = vadd.f32 0.0, %v4759
      %4761 = vmatmul.f32.gmra.mxu0 %v4647
      %v4762 = vpop.f32.mrf.mxu0
      %v4763 = vadd.f32 0.0, %v4762
      %4764 = vmatmul.f32.gmra.mxu0 %v4650
      %v4765 = vpop.f32.mrf.mxu0
      %v4766 = vadd.f32 0.0, %v4765
      %4767 = vmatmul.f32.gmra.mxu0 %v4653
      %v4768 = vpop.f32.mrf.mxu0
      %v4769 = vadd.f32 0.0, %v4768
      %4770 = vmatmul.f32.gmra.mxu0 %v4656
      %v4771 = vpop.f32.mrf.mxu0
      %v4772 = vadd.f32 0.0, %v4771
      %4773 = vmatmul.f32.gmra.mxu0 %v4659
      %v4774 = vpop.f32.mrf.mxu0
      %v4775 = vadd.f32 0.0, %v4774
      %4776 = vdwg.mxu0
      %v4777 = vadd.f32 %v4498, %v4682
      %v4778 = vadd.f32 %v4499, %v4685
      %v4779 = vadd.f32 %v4500, %v4688
      %v4780 = vadd.f32 %v4501, %v4691
      %v4781 = vadd.f32 %v4502, %v4694
      %v4782 = vadd.f32 %v4503, %v4697
      %v4783 = vadd.f32 %v4504, %v4700
      %v4784 = vadd.f32 %v4505, %v4703
      %v4785 = vadd.f32 %v4506, %v4706
      %v4786 = vadd.f32 %v4507, %v4709
      %v4787 = vadd.f32 %v4508, %v4712
      %v4788 = vadd.f32 %v4509, %v4715
      %v4789 = vadd.f32 %v4510, %v4718
      %v4790 = vadd.f32 %v4511, %v4721
      %v4791 = vadd.f32 %v4512, %v4724
      %v4792 = vadd.f32 %v4513, %v4727
      %v4793 = vadd.f32 %v4514, %v4730
      %v4794 = vadd.f32 %v4515, %v4733
      %v4795 = vadd.f32 %v4516, %v4736
      %v4796 = vadd.f32 %v4517, %v4739
      %v4797 = vadd.f32 %v4518, %v4742
      %v4798 = vadd.f32 %v4519, %v4745
      %v4799 = vadd.f32 %v4520, %v4748
      %v4800 = vadd.f32 %v4521, %v4751
      %v4801 = vadd.f32 %v4522, %v4754
      %v4802 = vadd.f32 %v4523, %v4757
      %v4803 = vadd.f32 %v4524, %v4760
      %v4804 = vadd.f32 %v4525, %v4763
      %v4805 = vadd.f32 %v4526, %v4766
      %v4806 = vadd.f32 %v4527, %v4769
      %v4807 = vadd.f32 %v4528, %v4772
      %v4808 = vadd.f32 %v4529, %v4775
      %v4809 = vld [vmem:[%s4530 + $0x1] sm:$0xff]
      %v4810 = vld [vmem:[%s4530 + $0x9] sm:$0xff]
      %v4811 = vld [vmem:[%s4530 + $0x19] sm:$0xff]
      %v4812 = vld [vmem:[%s4530 + $0x21] sm:$0xff]
      %v4813 = vld [vmem:[%s4530 + $0x31] sm:$0xff]
      %v4814 = vld [vmem:[%s4530 + $0x39] sm:$0xff]
      %v4815 = vld [vmem:[%s4530 + $0x49] sm:$0xff]
      %v4816 = vld [vmem:[%s4530 + $0x51] sm:$0xff]
      %v4817 = vld [vmem:[%s4530 + $0x61] sm:$0xff]
      %v4818 = vld [vmem:[%s4530 + $0x69] sm:$0xff]
      %v4819 = vld [vmem:[%s4530 + $0x79] sm:$0xff]
      %v4820 = vld [vmem:[%s4530 + $0x81] sm:$0xff]
      %v4821 = vld [vmem:[%s4530 + $0x91] sm:$0xff]
      %v4822 = vld [vmem:[%s4530 + $0x99] sm:$0xff]
      %v4823 = vld [vmem:[%s4530 + $0xa9] sm:$0xff]
      %v4824 = vld [vmem:[%s4530 + $0xb1] sm:$0xff]
      %v4825 = vld [vmem:[%s4530 + $0xc1] sm:$0xff]
      %v4826 = vld [vmem:[%s4530 + $0xc9] sm:$0xff]
      %v4827 = vld [vmem:[%s4530 + $0xd9] sm:$0xff]
      %v4828 = vld [vmem:[%s4530 + $0xe1] sm:$0xff]
      %v4829 = vld [vmem:[%s4530 + $0xf1] sm:$0xff]
      %v4830 = vld [vmem:[%s4530 + $0xf9] sm:$0xff]
      %v4831 = vld [vmem:[%s4530 + $0x109] sm:$0xff]
      %v4832 = vld [vmem:[%s4530 + $0x111] sm:$0xff]
      %v4833 = vld [vmem:[%s4530 + $0x121] sm:$0xff]
      %v4834 = vld [vmem:[%s4530 + $0x129] sm:$0xff]
      %v4835 = vld [vmem:[%s4530 + $0x139] sm:$0xff]
      %v4836 = vld [vmem:[%s4530 + $0x141] sm:$0xff]
      %v4837 = vld [vmem:[%s4530 + $0x151] sm:$0xff]
      %v4838 = vld [vmem:[%s4530 + $0x159] sm:$0xff]
      %v4839 = vld [vmem:[%s4530 + $0x169] sm:$0xff]
      %v4840 = vld [vmem:[%s4530 + $0x171] sm:$0xff]
      %s4841 = scalar_lea.vmem %s2, 28
      %v4842 = vld [vmem:[%s4841] sm:$0xf]
      %v4844 = vsel %vm225, %v4809, 0
      %v4847 = vsel %vm225, %v4810, 0
      %v4850 = vsel %vm225, %v4811, 0
      %v4853 = vsel %vm225, %v4812, 0
      %v4856 = vsel %vm225, %v4813, 0
      %v4859 = vsel %vm225, %v4814, 0
      %v4862 = vsel %vm225, %v4815, 0
      %v4865 = vsel %vm225, %v4816, 0
      %v4868 = vsel %vm225, %v4817, 0
      %v4871 = vsel %vm225, %v4818, 0
      %v4874 = vsel %vm225, %v4819, 0
      %v4877 = vsel %vm225, %v4820, 0
      %v4880 = vsel %vm225, %v4821, 0
      %v4883 = vsel %vm225, %v4822, 0
      %v4886 = vsel %vm225, %v4823, 0
      %v4889 = vsel %vm225, %v4824, 0
      %v4892 = vsel %vm225, %v4825, 0
      %v4895 = vsel %vm225, %v4826, 0
      %v4898 = vsel %vm225, %v4827, 0
      %v4901 = vsel %vm225, %v4828, 0
      %v4904 = vsel %vm225, %v4829, 0
      %v4907 = vsel %vm225, %v4830, 0
      %v4910 = vsel %vm225, %v4831, 0
      %v4913 = vsel %vm225, %v4832, 0
      %v4916 = vsel %vm225, %v4833, 0
      %v4919 = vsel %vm225, %v4834, 0
      %v4922 = vsel %vm225, %v4835, 0
      %v4925 = vsel %vm225, %v4836, 0
      %v4928 = vsel %vm225, %v4837, 0
      %v4931 = vsel %vm225, %v4838, 0
      %v4934 = vsel %vm225, %v4839, 0
      %v4937 = vsel %vm225, %v4840, 0
      %v4940 = vsel %vm544, %v4842, 0
      %4942 = vmatpush.msra.mxu0 0.0
      %4943 = vmatpush.msra.mxu0 0.0
      %4944 = vmatpush.msra.mxu0 0.0
      %4945 = vmatpush.msra.mxu0 0.0
      %4946 = vmatpush.msra.mxu0 0.0
      %4947 = vmatpush.msra.mxu0 0.0
      %4948 = vmatpush.msra.mxu0 0.0
      %4949 = vmatpush.msra.mxu0 0.0
      %4950 = vmatpush.msra.mxu0 0.0
      %4951 = vmatpush.msra.mxu0 0.0
      %4952 = vmatpush.msra.mxu0 0.0
      %4953 = vmatpush.msra.mxu0 0.0
      %4954 = vmatpush.msra.mxu0 0.0
      %4955 = vmatpush.msra.mxu0 0.0
      %4956 = vmatpush.msra.mxu0 0.0
      %4957 = vmatpush.msra.mxu0 %v4940
      %4958 = vmatmul.f32.gmra.mxu0 %v4844
      %v4959 = vpop.f32.mrf.mxu0
      %v4960 = vadd.f32 0.0, %v4959
      %4961 = vmatmul.f32.gmra.mxu0 %v4847
      %v4962 = vpop.f32.mrf.mxu0
      %v4963 = vadd.f32 0.0, %v4962
      %4964 = vmatmul.f32.gmra.mxu0 %v4850
      %v4965 = vpop.f32.mrf.mxu0
      %v4966 = vadd.f32 0.0, %v4965
      %4967 = vmatmul.f32.gmra.mxu0 %v4853
      %v4968 = vpop.f32.mrf.mxu0
      %v4969 = vadd.f32 0.0, %v4968
      %4970 = vmatmul.f32.gmra.mxu0 %v4856
      %v4971 = vpop.f32.mrf.mxu0
      %v4972 = vadd.f32 0.0, %v4971
      %4973 = vmatmul.f32.gmra.mxu0 %v4859
      %v4974 = vpop.f32.mrf.mxu0
      %v4975 = vadd.f32 0.0, %v4974
      %4976 = vmatmul.f32.gmra.mxu0 %v4862
      %v4977 = vpop.f32.mrf.mxu0
      %v4978 = vadd.f32 0.0, %v4977
      %4979 = vmatmul.f32.gmra.mxu0 %v4865
      %v4980 = vpop.f32.mrf.mxu0
      %v4981 = vadd.f32 0.0, %v4980
      %4982 = vmatmul.f32.gmra.mxu0 %v4868
      %v4983 = vpop.f32.mrf.mxu0
      %v4984 = vadd.f32 0.0, %v4983
      %4985 = vmatmul.f32.gmra.mxu0 %v4871
      %v4986 = vpop.f32.mrf.mxu0
      %v4987 = vadd.f32 0.0, %v4986
      %4988 = vmatmul.f32.gmra.mxu0 %v4874
      %v4989 = vpop.f32.mrf.mxu0
      %v4990 = vadd.f32 0.0, %v4989
      %4991 = vmatmul.f32.gmra.mxu0 %v4877
      %v4992 = vpop.f32.mrf.mxu0
      %v4993 = vadd.f32 0.0, %v4992
      %4994 = vmatmul.f32.gmra.mxu0 %v4880
      %v4995 = vpop.f32.mrf.mxu0
      %v4996 = vadd.f32 0.0, %v4995
      %4997 = vmatmul.f32.gmra.mxu0 %v4883
      %v4998 = vpop.f32.mrf.mxu0
      %v4999 = vadd.f32 0.0, %v4998
      %5000 = vmatmul.f32.gmra.mxu0 %v4886
      %v5001 = vpop.f32.mrf.mxu0
      %v5002 = vadd.f32 0.0, %v5001
      %5003 = vmatmul.f32.gmra.mxu0 %v4889
      %v5004 = vpop.f32.mrf.mxu0
      %v5005 = vadd.f32 0.0, %v5004
      %5006 = vmatmul.f32.gmra.mxu0 %v4892
      %v5007 = vpop.f32.mrf.mxu0
      %v5008 = vadd.f32 0.0, %v5007
      %5009 = vmatmul.f32.gmra.mxu0 %v4895
      %v5010 = vpop.f32.mrf.mxu0
      %v5011 = vadd.f32 0.0, %v5010
      %5012 = vmatmul.f32.gmra.mxu0 %v4898
      %v5013 = vpop.f32.mrf.mxu0
      %v5014 = vadd.f32 0.0, %v5013
      %5015 = vmatmul.f32.gmra.mxu0 %v4901
      %v5016 = vpop.f32.mrf.mxu0
      %v5017 = vadd.f32 0.0, %v5016
      %5018 = vmatmul.f32.gmra.mxu0 %v4904
      %v5019 = vpop.f32.mrf.mxu0
      %v5020 = vadd.f32 0.0, %v5019
      %5021 = vmatmul.f32.gmra.mxu0 %v4907
      %v5022 = vpop.f32.mrf.mxu0
      %v5023 = vadd.f32 0.0, %v5022
      %5024 = vmatmul.f32.gmra.mxu0 %v4910
      %v5025 = vpop.f32.mrf.mxu0
      %v5026 = vadd.f32 0.0, %v5025
      %5027 = vmatmul.f32.gmra.mxu0 %v4913
      %v5028 = vpop.f32.mrf.mxu0
      %v5029 = vadd.f32 0.0, %v5028
      %5030 = vmatmul.f32.gmra.mxu0 %v4916
      %v5031 = vpop.f32.mrf.mxu0
      %v5032 = vadd.f32 0.0, %v5031
      %5033 = vmatmul.f32.gmra.mxu0 %v4919
      %v5034 = vpop.f32.mrf.mxu0
      %v5035 = vadd.f32 0.0, %v5034
      %5036 = vmatmul.f32.gmra.mxu0 %v4922
      %v5037 = vpop.f32.mrf.mxu0
      %v5038 = vadd.f32 0.0, %v5037
      %5039 = vmatmul.f32.gmra.mxu0 %v4925
      %v5040 = vpop.f32.mrf.mxu0
      %v5041 = vadd.f32 0.0, %v5040
      %5042 = vmatmul.f32.gmra.mxu0 %v4928
      %v5043 = vpop.f32.mrf.mxu0
      %v5044 = vadd.f32 0.0, %v5043
      %5045 = vmatmul.f32.gmra.mxu0 %v4931
      %v5046 = vpop.f32.mrf.mxu0
      %v5047 = vadd.f32 0.0, %v5046
      %5048 = vmatmul.f32.gmra.mxu0 %v4934
      %v5049 = vpop.f32.mrf.mxu0
      %v5050 = vadd.f32 0.0, %v5049
      %5051 = vmatmul.f32.gmra.mxu0 %v4937
      %v5052 = vpop.f32.mrf.mxu0
      %v5053 = vadd.f32 0.0, %v5052
      %5054 = vdwg.mxu0
      %v5055 = vadd.f32 %v4777, %v4960
      %v5056 = vadd.f32 %v4778, %v4963
      %v5057 = vadd.f32 %v4779, %v4966
      %v5058 = vadd.f32 %v4780, %v4969
      %v5059 = vadd.f32 %v4781, %v4972
      %v5060 = vadd.f32 %v4782, %v4975
      %v5061 = vadd.f32 %v4783, %v4978
      %v5062 = vadd.f32 %v4784, %v4981
      %v5063 = vadd.f32 %v4785, %v4984
      %v5064 = vadd.f32 %v4786, %v4987
      %v5065 = vadd.f32 %v4787, %v4990
      %v5066 = vadd.f32 %v4788, %v4993
      %v5067 = vadd.f32 %v4789, %v4996
      %v5068 = vadd.f32 %v4790, %v4999
      %v5069 = vadd.f32 %v4791, %v5002
      %v5070 = vadd.f32 %v4792, %v5005
      %v5071 = vadd.f32 %v4793, %v5008
      %v5072 = vadd.f32 %v4794, %v5011
      %v5073 = vadd.f32 %v4795, %v5014
      %v5074 = vadd.f32 %v4796, %v5017
      %v5075 = vadd.f32 %v4797, %v5020
      %v5076 = vadd.f32 %v4798, %v5023
      %v5077 = vadd.f32 %v4799, %v5026
      %v5078 = vadd.f32 %v4800, %v5029
      %v5079 = vadd.f32 %v4801, %v5032
      %v5080 = vadd.f32 %v4802, %v5035
      %v5081 = vadd.f32 %v4803, %v5038
      %v5082 = vadd.f32 %v4804, %v5041
      %v5083 = vadd.f32 %v4805, %v5044
      %v5084 = vadd.f32 %v4806, %v5047
      %v5085 = vadd.f32 %v4807, %v5050
      %v5086 = vadd.f32 %v4808, %v5053
      %v5087 = vld [vmem:[%s4530 + $0x2] sm:$0xff]
      %v5088 = vld [vmem:[%s4530 + $0xa] sm:$0xff]
      %v5089 = vld [vmem:[%s4530 + $0x1a] sm:$0xff]
      %v5090 = vld [vmem:[%s4530 + $0x22] sm:$0xff]
      %v5091 = vld [vmem:[%s4530 + $0x32] sm:$0xff]
      %v5092 = vld [vmem:[%s4530 + $0x3a] sm:$0xff]
      %v5093 = vld [vmem:[%s4530 + $0x4a] sm:$0xff]
      %v5094 = vld [vmem:[%s4530 + $0x52] sm:$0xff]
      %v5095 = vld [vmem:[%s4530 + $0x62] sm:$0xff]
      %v5096 = vld [vmem:[%s4530 + $0x6a] sm:$0xff]
      %v5097 = vld [vmem:[%s4530 + $0x7a] sm:$0xff]
      %v5098 = vld [vmem:[%s4530 + $0x82] sm:$0xff]
      %v5099 = vld [vmem:[%s4530 + $0x92] sm:$0xff]
      %v5100 = vld [vmem:[%s4530 + $0x9a] sm:$0xff]
      %v5101 = vld [vmem:[%s4530 + $0xaa] sm:$0xff]
      %v5102 = vld [vmem:[%s4530 + $0xb2] sm:$0xff]
      %v5103 = vld [vmem:[%s4530 + $0xc2] sm:$0xff]
      %v5104 = vld [vmem:[%s4530 + $0xca] sm:$0xff]
      %v5105 = vld [vmem:[%s4530 + $0xda] sm:$0xff]
      %v5106 = vld [vmem:[%s4530 + $0xe2] sm:$0xff]
      %v5107 = vld [vmem:[%s4530 + $0xf2] sm:$0xff]
      %v5108 = vld [vmem:[%s4530 + $0xfa] sm:$0xff]
      %v5109 = vld [vmem:[%s4530 + $0x10a] sm:$0xff]
      %v5110 = vld [vmem:[%s4530 + $0x112] sm:$0xff]
      %v5111 = vld [vmem:[%s4530 + $0x122] sm:$0xff]
      %v5112 = vld [vmem:[%s4530 + $0x12a] sm:$0xff]
      %v5113 = vld [vmem:[%s4530 + $0x13a] sm:$0xff]
      %v5114 = vld [vmem:[%s4530 + $0x142] sm:$0xff]
      %v5115 = vld [vmem:[%s4530 + $0x152] sm:$0xff]
      %v5116 = vld [vmem:[%s4530 + $0x15a] sm:$0xff]
      %v5117 = vld [vmem:[%s4530 + $0x16a] sm:$0xff]
      %v5118 = vld [vmem:[%s4530 + $0x172] sm:$0xff]
      %s5119 = scalar_lea.vmem %s2, 32
      %v5120 = vld [vmem:[%s5119] sm:$0xf]
      %v5122 = vsel %vm225, %v5087, 0
      %v5125 = vsel %vm225, %v5088, 0
      %v5128 = vsel %vm225, %v5089, 0
      %v5131 = vsel %vm225, %v5090, 0
      %v5134 = vsel %vm225, %v5091, 0
      %v5137 = vsel %vm225, %v5092, 0
      %v5140 = vsel %vm225, %v5093, 0
      %v5143 = vsel %vm225, %v5094, 0
      %v5146 = vsel %vm225, %v5095, 0
      %v5149 = vsel %vm225, %v5096, 0
      %v5152 = vsel %vm225, %v5097, 0
      %v5155 = vsel %vm225, %v5098, 0
      %v5158 = vsel %vm225, %v5099, 0
      %v5161 = vsel %vm225, %v5100, 0
      %v5164 = vsel %vm225, %v5101, 0
      %v5167 = vsel %vm225, %v5102, 0
      %v5170 = vsel %vm225, %v5103, 0
      %v5173 = vsel %vm225, %v5104, 0
      %v5176 = vsel %vm225, %v5105, 0
      %v5179 = vsel %vm225, %v5106, 0
      %v5182 = vsel %vm225, %v5107, 0
      %v5185 = vsel %vm225, %v5108, 0
      %v5188 = vsel %vm225, %v5109, 0
      %v5191 = vsel %vm225, %v5110, 0
      %v5194 = vsel %vm225, %v5111, 0
      %v5197 = vsel %vm225, %v5112, 0
      %v5200 = vsel %vm225, %v5113, 0
      %v5203 = vsel %vm225, %v5114, 0
      %v5206 = vsel %vm225, %v5115, 0
      %v5209 = vsel %vm225, %v5116, 0
      %v5212 = vsel %vm225, %v5117, 0
      %v5215 = vsel %vm225, %v5118, 0
      %v5218 = vsel %vm544, %v5120, 0
      %5220 = vmatpush.msra.mxu0 0.0
      %5221 = vmatpush.msra.mxu0 0.0
      %5222 = vmatpush.msra.mxu0 0.0
      %5223 = vmatpush.msra.mxu0 0.0
      %5224 = vmatpush.msra.mxu0 0.0
      %5225 = vmatpush.msra.mxu0 0.0
      %5226 = vmatpush.msra.mxu0 0.0
      %5227 = vmatpush.msra.mxu0 0.0
      %5228 = vmatpush.msra.mxu0 0.0
      %5229 = vmatpush.msra.mxu0 0.0
      %5230 = vmatpush.msra.mxu0 0.0
      %5231 = vmatpush.msra.mxu0 0.0
      %5232 = vmatpush.msra.mxu0 0.0
      %5233 = vmatpush.msra.mxu0 0.0
      %5234 = vmatpush.msra.mxu0 0.0
      %5235 = vmatpush.msra.mxu0 %v5218
      %5236 = vmatmul.f32.gmra.mxu0 %v5122
      %v5237 = vpop.f32.mrf.mxu0
      %v5238 = vadd.f32 0.0, %v5237
      %5239 = vmatmul.f32.gmra.mxu0 %v5125
      %v5240 = vpop.f32.mrf.mxu0
      %v5241 = vadd.f32 0.0, %v5240
      %5242 = vmatmul.f32.gmra.mxu0 %v5128
      %v5243 = vpop.f32.mrf.mxu0
      %v5244 = vadd.f32 0.0, %v5243
      %5245 = vmatmul.f32.gmra.mxu0 %v5131
      %v5246 = vpop.f32.mrf.mxu0
      %v5247 = vadd.f32 0.0, %v5246
      %5248 = vmatmul.f32.gmra.mxu0 %v5134
      %v5249 = vpop.f32.mrf.mxu0
      %v5250 = vadd.f32 0.0, %v5249
      %5251 = vmatmul.f32.gmra.mxu0 %v5137
      %v5252 = vpop.f32.mrf.mxu0
      %v5253 = vadd.f32 0.0, %v5252
      %5254 = vmatmul.f32.gmra.mxu0 %v5140
      %v5255 = vpop.f32.mrf.mxu0
      %v5256 = vadd.f32 0.0, %v5255
      %5257 = vmatmul.f32.gmra.mxu0 %v5143
      %v5258 = vpop.f32.mrf.mxu0
      %v5259 = vadd.f32 0.0, %v5258
      %5260 = vmatmul.f32.gmra.mxu0 %v5146
      %v5261 = vpop.f32.mrf.mxu0
      %v5262 = vadd.f32 0.0, %v5261
      %5263 = vmatmul.f32.gmra.mxu0 %v5149
      %v5264 = vpop.f32.mrf.mxu0
      %v5265 = vadd.f32 0.0, %v5264
      %5266 = vmatmul.f32.gmra.mxu0 %v5152
      %v5267 = vpop.f32.mrf.mxu0
      %v5268 = vadd.f32 0.0, %v5267
      %5269 = vmatmul.f32.gmra.mxu0 %v5155
      %v5270 = vpop.f32.mrf.mxu0
      %v5271 = vadd.f32 0.0, %v5270
      %5272 = vmatmul.f32.gmra.mxu0 %v5158
      %v5273 = vpop.f32.mrf.mxu0
      %v5274 = vadd.f32 0.0, %v5273
      %5275 = vmatmul.f32.gmra.mxu0 %v5161
      %v5276 = vpop.f32.mrf.mxu0
      %v5277 = vadd.f32 0.0, %v5276
      %5278 = vmatmul.f32.gmra.mxu0 %v5164
      %v5279 = vpop.f32.mrf.mxu0
      %v5280 = vadd.f32 0.0, %v5279
      %5281 = vmatmul.f32.gmra.mxu0 %v5167
      %v5282 = vpop.f32.mrf.mxu0
      %v5283 = vadd.f32 0.0, %v5282
      %5284 = vmatmul.f32.gmra.mxu0 %v5170
      %v5285 = vpop.f32.mrf.mxu0
      %v5286 = vadd.f32 0.0, %v5285
      %5287 = vmatmul.f32.gmra.mxu0 %v5173
      %v5288 = vpop.f32.mrf.mxu0
      %v5289 = vadd.f32 0.0, %v5288
      %5290 = vmatmul.f32.gmra.mxu0 %v5176
      %v5291 = vpop.f32.mrf.mxu0
      %v5292 = vadd.f32 0.0, %v5291
      %5293 = vmatmul.f32.gmra.mxu0 %v5179
      %v5294 = vpop.f32.mrf.mxu0
      %v5295 = vadd.f32 0.0, %v5294
      %5296 = vmatmul.f32.gmra.mxu0 %v5182
      %v5297 = vpop.f32.mrf.mxu0
      %v5298 = vadd.f32 0.0, %v5297
      %5299 = vmatmul.f32.gmra.mxu0 %v5185
      %v5300 = vpop.f32.mrf.mxu0
      %v5301 = vadd.f32 0.0, %v5300
      %5302 = vmatmul.f32.gmra.mxu0 %v5188
      %v5303 = vpop.f32.mrf.mxu0
      %v5304 = vadd.f32 0.0, %v5303
      %5305 = vmatmul.f32.gmra.mxu0 %v5191
      %v5306 = vpop.f32.mrf.mxu0
      %v5307 = vadd.f32 0.0, %v5306
      %5308 = vmatmul.f32.gmra.mxu0 %v5194
      %v5309 = vpop.f32.mrf.mxu0
      %v5310 = vadd.f32 0.0, %v5309
      %5311 = vmatmul.f32.gmra.mxu0 %v5197
      %v5312 = vpop.f32.mrf.mxu0
      %v5313 = vadd.f32 0.0, %v5312
      %5314 = vmatmul.f32.gmra.mxu0 %v5200
      %v5315 = vpop.f32.mrf.mxu0
      %v5316 = vadd.f32 0.0, %v5315
      %5317 = vmatmul.f32.gmra.mxu0 %v5203
      %v5318 = vpop.f32.mrf.mxu0
      %v5319 = vadd.f32 0.0, %v5318
      %5320 = vmatmul.f32.gmra.mxu0 %v5206
      %v5321 = vpop.f32.mrf.mxu0
      %v5322 = vadd.f32 0.0, %v5321
      %5323 = vmatmul.f32.gmra.mxu0 %v5209
      %v5324 = vpop.f32.mrf.mxu0
      %v5325 = vadd.f32 0.0, %v5324
      %5326 = vmatmul.f32.gmra.mxu0 %v5212
      %v5327 = vpop.f32.mrf.mxu0
      %v5328 = vadd.f32 0.0, %v5327
      %5329 = vmatmul.f32.gmra.mxu0 %v5215
      %v5330 = vpop.f32.mrf.mxu0
      %v5331 = vadd.f32 0.0, %v5330
      %5332 = vdwg.mxu0
      %v5333 = vadd.f32 %v5055, %v5238
      %v5334 = vadd.f32 %v5056, %v5241
      %v5335 = vadd.f32 %v5057, %v5244
      %v5336 = vadd.f32 %v5058, %v5247
      %v5337 = vadd.f32 %v5059, %v5250
      %v5338 = vadd.f32 %v5060, %v5253
      %v5339 = vadd.f32 %v5061, %v5256
      %v5340 = vadd.f32 %v5062, %v5259
      %v5341 = vadd.f32 %v5063, %v5262
      %v5342 = vadd.f32 %v5064, %v5265
      %v5343 = vadd.f32 %v5065, %v5268
      %v5344 = vadd.f32 %v5066, %v5271
      %v5345 = vadd.f32 %v5067, %v5274
      %v5346 = vadd.f32 %v5068, %v5277
      %v5347 = vadd.f32 %v5069, %v5280
      %v5348 = vadd.f32 %v5070, %v5283
      %v5349 = vadd.f32 %v5071, %v5286
      %v5350 = vadd.f32 %v5072, %v5289
      %v5351 = vadd.f32 %v5073, %v5292
      %v5352 = vadd.f32 %v5074, %v5295
      %v5353 = vadd.f32 %v5075, %v5298
      %v5354 = vadd.f32 %v5076, %v5301
      %v5355 = vadd.f32 %v5077, %v5304
      %v5356 = vadd.f32 %v5078, %v5307
      %v5357 = vadd.f32 %v5079, %v5310
      %v5358 = vadd.f32 %v5080, %v5313
      %v5359 = vadd.f32 %v5081, %v5316
      %v5360 = vadd.f32 %v5082, %v5319
      %v5361 = vadd.f32 %v5083, %v5322
      %v5362 = vadd.f32 %v5084, %v5325
      %v5363 = vadd.f32 %v5085, %v5328
      %v5364 = vadd.f32 %v5086, %v5331
      %s5365 = smul.u32 0, 16
      %s5366 = scalar_lea.vmem %s219, %s5365
      %v5367 = vld [vmem:[%s5366] sm:$0xff]
      %v5368 = vld [vmem:[%s5366 + $0x8] sm:$0xff]
      %v5369 = vld [vmem:[%s5366 + $0x10] sm:$0xff]
      %v5370 = vld [vmem:[%s5366 + $0x18] sm:$0xff]
      %v5371 = vld [vmem:[%s5366 + $0x20] sm:$0xff]
      %v5372 = vld [vmem:[%s5366 + $0x28] sm:$0xff]
      %v5373 = vld [vmem:[%s5366 + $0x30] sm:$0xff]
      %v5374 = vld [vmem:[%s5366 + $0x38] sm:$0xff]
      %v5375 = vld [vmem:[%s5366 + $0x40] sm:$0xff]
      %v5376 = vld [vmem:[%s5366 + $0x48] sm:$0xff]
      %v5377 = vld [vmem:[%s5366 + $0x50] sm:$0xff]
      %v5378 = vld [vmem:[%s5366 + $0x58] sm:$0xff]
      %v5379 = vld [vmem:[%s5366 + $0x60] sm:$0xff]
      %v5380 = vld [vmem:[%s5366 + $0x68] sm:$0xff]
      %v5381 = vld [vmem:[%s5366 + $0x70] sm:$0xff]
      %v5382 = vld [vmem:[%s5366 + $0x78] sm:$0xff]
      %v5383 = vld [vmem:[%s5366 + $0x80] sm:$0xff]
      %v5384 = vld [vmem:[%s5366 + $0x88] sm:$0xff]
      %v5385 = vld [vmem:[%s5366 + $0x90] sm:$0xff]
      %v5386 = vld [vmem:[%s5366 + $0x98] sm:$0xff]
      %v5387 = vld [vmem:[%s5366 + $0xa0] sm:$0xff]
      %v5388 = vld [vmem:[%s5366 + $0xa8] sm:$0xff]
      %v5389 = vld [vmem:[%s5366 + $0xb0] sm:$0xff]
      %v5390 = vld [vmem:[%s5366 + $0xb8] sm:$0xff]
      %v5391 = vld [vmem:[%s5366 + $0xc0] sm:$0xff]
      %v5392 = vld [vmem:[%s5366 + $0xc8] sm:$0xff]
      %v5393 = vld [vmem:[%s5366 + $0xd0] sm:$0xff]
      %v5394 = vld [vmem:[%s5366 + $0xd8] sm:$0xff]
      %v5395 = vld [vmem:[%s5366 + $0xe0] sm:$0xff]
      %v5396 = vld [vmem:[%s5366 + $0xe8] sm:$0xff]
      %v5397 = vld [vmem:[%s5366 + $0xf0] sm:$0xff]
      %v5398 = vld [vmem:[%s5366 + $0xf8] sm:$0xff]
      %v5399 = vld [vmem:[%s4] sm:$0x1]
      %v5401 = vperm.slane %v5399, 0
      %v5403 = vadd.f32 %v5333, %v5401
      %v5404 = vadd.f32 %v5334, %v5401
      %v5405 = vadd.f32 %v5335, %v5401
      %v5406 = vadd.f32 %v5336, %v5401
      %v5407 = vadd.f32 %v5337, %v5401
      %v5408 = vadd.f32 %v5338, %v5401
      %v5409 = vadd.f32 %v5339, %v5401
      %v5410 = vadd.f32 %v5340, %v5401
      %v5411 = vadd.f32 %v5341, %v5401
      %v5412 = vadd.f32 %v5342, %v5401
      %v5413 = vadd.f32 %v5343, %v5401
      %v5414 = vadd.f32 %v5344, %v5401
      %v5415 = vadd.f32 %v5345, %v5401
      %v5416 = vadd.f32 %v5346, %v5401
      %v5417 = vadd.f32 %v5347, %v5401
      %v5418 = vadd.f32 %v5348, %v5401
      %v5419 = vadd.f32 %v5349, %v5401
      %v5420 = vadd.f32 %v5350, %v5401
      %v5421 = vadd.f32 %v5351, %v5401
      %v5422 = vadd.f32 %v5352, %v5401
      %v5423 = vadd.f32 %v5353, %v5401
      %v5424 = vadd.f32 %v5354, %v5401
      %v5425 = vadd.f32 %v5355, %v5401
      %v5426 = vadd.f32 %v5356, %v5401
      %v5427 = vadd.f32 %v5357, %v5401
      %v5428 = vadd.f32 %v5358, %v5401
      %v5429 = vadd.f32 %v5359, %v5401
      %v5430 = vadd.f32 %v5360, %v5401
      %v5431 = vadd.f32 %v5361, %v5401
      %v5432 = vadd.f32 %v5362, %v5401
      %v5433 = vadd.f32 %v5363, %v5401
      %v5434 = vadd.f32 %v5364, %v5401
      %v5435 = vadd.f32 %v5403, %v5367
      %v5436 = vadd.f32 %v5404, %v5368
      %v5437 = vadd.f32 %v5405, %v5369
      %v5438 = vadd.f32 %v5406, %v5370
      %v5439 = vadd.f32 %v5407, %v5371
      %v5440 = vadd.f32 %v5408, %v5372
      %v5441 = vadd.f32 %v5409, %v5373
      %v5442 = vadd.f32 %v5410, %v5374
      %v5443 = vadd.f32 %v5411, %v5375
      %v5444 = vadd.f32 %v5412, %v5376
      %v5445 = vadd.f32 %v5413, %v5377
      %v5446 = vadd.f32 %v5414, %v5378
      %v5447 = vadd.f32 %v5415, %v5379
      %v5448 = vadd.f32 %v5416, %v5380
      %v5449 = vadd.f32 %v5417, %v5381
      %v5450 = vadd.f32 %v5418, %v5382
      %v5451 = vadd.f32 %v5419, %v5383
      %v5452 = vadd.f32 %v5420, %v5384
      %v5453 = vadd.f32 %v5421, %v5385
      %v5454 = vadd.f32 %v5422, %v5386
      %v5455 = vadd.f32 %v5423, %v5387
      %v5456 = vadd.f32 %v5424, %v5388
      %v5457 = vadd.f32 %v5425, %v5389
      %v5458 = vadd.f32 %v5426, %v5390
      %v5459 = vadd.f32 %v5427, %v5391
      %v5460 = vadd.f32 %v5428, %v5392
      %v5461 = vadd.f32 %v5429, %v5393
      %v5462 = vadd.f32 %v5430, %v5394
      %v5463 = vadd.f32 %v5431, %v5395
      %v5464 = vadd.f32 %v5432, %v5396
      %v5465 = vadd.f32 %v5433, %v5397
      %v5466 = vadd.f32 %v5434, %v5398
      %v5467 = vmax.f32 %v5435, 0.0
      %v5468 = vmax.f32 %v5436, 0.0
      %v5469 = vmax.f32 %v5437, 0.0
      %v5470 = vmax.f32 %v5438, 0.0
      %v5471 = vmax.f32 %v5439, 0.0
      %v5472 = vmax.f32 %v5440, 0.0
      %v5473 = vmax.f32 %v5441, 0.0
      %v5474 = vmax.f32 %v5442, 0.0
      %v5475 = vmax.f32 %v5443, 0.0
      %v5476 = vmax.f32 %v5444, 0.0
      %v5477 = vmax.f32 %v5445, 0.0
      %v5478 = vmax.f32 %v5446, 0.0
      %v5479 = vmax.f32 %v5447, 0.0
      %v5480 = vmax.f32 %v5448, 0.0
      %v5481 = vmax.f32 %v5449, 0.0
      %v5482 = vmax.f32 %v5450, 0.0
      %v5483 = vmax.f32 %v5451, 0.0
      %v5484 = vmax.f32 %v5452, 0.0
      %v5485 = vmax.f32 %v5453, 0.0
      %v5486 = vmax.f32 %v5454, 0.0
      %v5487 = vmax.f32 %v5455, 0.0
      %v5488 = vmax.f32 %v5456, 0.0
      %v5489 = vmax.f32 %v5457, 0.0
      %v5490 = vmax.f32 %v5458, 0.0
      %v5491 = vmax.f32 %v5459, 0.0
      %v5492 = vmax.f32 %v5460, 0.0
      %v5493 = vmax.f32 %v5461, 0.0
      %v5494 = vmax.f32 %v5462, 0.0
      %v5495 = vmax.f32 %v5463, 0.0
      %v5496 = vmax.f32 %v5464, 0.0
      %v5497 = vmax.f32 %v5465, 0.0
      %v5498 = vmax.f32 %v5466, 0.0
      %s5499 = scalar_lea.vmem %s224, %s5365
      %5500 = vst.msk [vmem:[%s5499] sm:$0xff] %vm225, %v5467
      %5501 = vst.msk [vmem:[%s5499 + $0x8] sm:$0xff] %vm225, %v5468
      %5502 = vst.msk [vmem:[%s5499 + $0x10] sm:$0xff] %vm225, %v5469
      %5503 = vst.msk [vmem:[%s5499 + $0x18] sm:$0xff] %vm225, %v5470
      %5504 = vst.msk [vmem:[%s5499 + $0x20] sm:$0xff] %vm225, %v5471
      %5505 = vst.msk [vmem:[%s5499 + $0x28] sm:$0xff] %vm225, %v5472
      %5506 = vst.msk [vmem:[%s5499 + $0x30] sm:$0xff] %vm225, %v5473
      %5507 = vst.msk [vmem:[%s5499 + $0x38] sm:$0xff] %vm225, %v5474
      %5508 = vst.msk [vmem:[%s5499 + $0x40] sm:$0xff] %vm225, %v5475
      %5509 = vst.msk [vmem:[%s5499 + $0x48] sm:$0xff] %vm225, %v5476
      %5510 = vst.msk [vmem:[%s5499 + $0x50] sm:$0xff] %vm225, %v5477
      %5511 = vst.msk [vmem:[%s5499 + $0x58] sm:$0xff] %vm225, %v5478
      %5512 = vst.msk [vmem:[%s5499 + $0x60] sm:$0xff] %vm225, %v5479
      %5513 = vst.msk [vmem:[%s5499 + $0x68] sm:$0xff] %vm225, %v5480
      %5514 = vst.msk [vmem:[%s5499 + $0x70] sm:$0xff] %vm225, %v5481
      %5515 = vst.msk [vmem:[%s5499 + $0x78] sm:$0xff] %vm225, %v5482
      %5516 = vst.msk [vmem:[%s5499 + $0x80] sm:$0xff] %vm225, %v5483
      %5517 = vst.msk [vmem:[%s5499 + $0x88] sm:$0xff] %vm225, %v5484
      %5518 = vst.msk [vmem:[%s5499 + $0x90] sm:$0xff] %vm225, %v5485
      %5519 = vst.msk [vmem:[%s5499 + $0x98] sm:$0xff] %vm225, %v5486
      %5520 = vst.msk [vmem:[%s5499 + $0xa0] sm:$0xff] %vm225, %v5487
      %5521 = vst.msk [vmem:[%s5499 + $0xa8] sm:$0xff] %vm225, %v5488
      %5522 = vst.msk [vmem:[%s5499 + $0xb0] sm:$0xff] %vm225, %v5489
      %5523 = vst.msk [vmem:[%s5499 + $0xb8] sm:$0xff] %vm225, %v5490
      %5524 = vst.msk [vmem:[%s5499 + $0xc0] sm:$0xff] %vm225, %v5491
      %5525 = vst.msk [vmem:[%s5499 + $0xc8] sm:$0xff] %vm225, %v5492
      %5526 = vst.msk [vmem:[%s5499 + $0xd0] sm:$0xff] %vm225, %v5493
      %5527 = vst.msk [vmem:[%s5499 + $0xd8] sm:$0xff] %vm225, %v5494
      %5528 = vst.msk [vmem:[%s5499 + $0xe0] sm:$0xff] %vm225, %v5495
      %5529 = vst.msk [vmem:[%s5499 + $0xe8] sm:$0xff] %vm225, %v5496
      %5530 = vst.msk [vmem:[%s5499 + $0xf0] sm:$0xff] %vm225, %v5497
      %5531 = vst.msk [vmem:[%s5499 + $0xf8] sm:$0xff] %vm225, %v5498
      %p5532 = scmp.lt.s32.totalorder %s16, 1
      %s5533 = scalar_select %p5532, %s16, 1
      %s5534 = smul.addr %s5533, 32
      %s5535 = smul.addr %s5534, 8
      %s5536 = scalar_lea.vmem %s5, %s5535
      // Predicated region
      $region41: #{tpu_custom_call.1} parent=39 // pred_check
        %p5537 = pneg %p144
      $region42: #{tpu_custom_call.1} parent=39 // pred_check_branch
        %5539 = sbr.rel (%p5537) target = $region44
      $region43: #{tpu_custom_call.1} parent=39 // pred_region
        _
      $region44: #{tpu_custom_call.1} parent=39 // pred_fallthru
        _
    $region40: #{tpu_custom_call.1} parent=5 // pred_fallthru
      _
    %p5540 = scmp.le.s32.totalorder 2, %s11
    // Predicated region
    $region45: #{tpu_custom_call.1} parent=5 // pred_check
      %p5541 = pneg %p5540
    $region46: #{tpu_custom_call.1} parent=5 // pred_check_branch
      %5543 = sbr.rel (%p5541) target = $region48
    $region47: #{tpu_custom_call.1} parent=5 // pred_region
      %s5544 = ssub.s32 %s11, 2
      // Predicated region
      $region49: #{tpu_custom_call.1} parent=47 // pred_check
        %p5545 = pneg %p150
      $region50: #{tpu_custom_call.1} parent=47 // pred_check_branch
        %5547 = sbr.rel (%p5545) target = $region52
      $region51: #{tpu_custom_call.1} parent=47 // pred_region
        %p5548 = scmp.lt.s32.totalorder %s17, 1
        %s5549 = scalar_select %p5548, %s17, 1
        %s5550 = smul.addr %s5549, 32
        %s5551 = smul.addr %s5550, 8
        %s5552 = scalar_lea.vmem %s5, %s5551
      $region52: #{tpu_custom_call.1} parent=47 // pred_fallthru
        _
    $region48: #{tpu_custom_call.1} parent=5 // pred_fallthru
      _
  $region6: #{tpu_custom_call.1} parent=0 // loop_footer
    %s15 = sadd.s32 1, %s11
  $region7: #{tpu_custom_call.1} parent=0 // loop_footer_branch
    %10 = sbr.rel target = $region3
  $region8: #{tpu_custom_call.1} parent=0 // loop_exit
    _

</llo_original>
